<compile_context>
chip_gen: v7x
topology: tpu7x:2x2x1
jax: 0.10.0
libtpu: 0.0.40
codegen_flags: <defaults>
</compile_context>

<pallas_src>
import math
from functools import partial

import jax
import jax.numpy as jnp
from jax.experimental import pallas as pl
from jax.experimental.pallas import tpu as pltpu

EPS = 1e-6
_NEG_INF = -1e30


# ----------------------------- in-kernel helpers -----------------------------
def _norm(v, alpha, bias, eps=EPS):
    # PyTorch Norm: alpha * (x - mean) / (std + eps) + bias, UNBIASED std (ddof=1).
    n = v.shape[-1]
    mean = jnp.mean(v, axis=-1, keepdims=True)
    d = v - mean
    var = jnp.sum(d * d, axis=-1, keepdims=True) * (1.0 / (n - 1))
    return alpha * d / (jnp.sqrt(var) + eps) + bias   # exact divide (off critical slot)


def selfattn_block_kernel(L, G, dense_out,
                          xe_ref, mask_ref, wq_ref, wk_ref, wv_ref,
                          wout_ref, w1_ref, w2_ref, vec_ref, o_ref):
    M, E = xe_ref.shape            # M = TB * L rows per grid step, E = 2*d_h
    d_h = E // 2
    TB = M // L
    GL = G * L
    n_grp = M // GL
    mmdt = wq_ref.dtype            # matmul operand dtype (bf16 or f32)

    xe = xe_ref[...]               # (M, E) f32; xe[:, :d_h] is the residual "xori"
    xe_m = xe.astype(mmdt)

    # packed 1-D params (single VMEM buffer, one row each)
    b_q = vec_ref[0:1, :]          # already pre-scaled by 1/sqrt(E) on the host
    b_k = vec_ref[1:2, :]
    b_v = vec_ref[2:3, :]
    b_out = vec_ref[3:4, :]
    alpha1 = vec_ref[4:5, :]
    bias1 = vec_ref[5:6, :]
    b1 = vec_ref[6:7, :]
    b2 = vec_ref[7:8, :d_h]
    alpha2 = vec_ref[8:9, :d_h]
    bias2 = vec_ref[9:10, :d_h]

    # ---- Q/K/V projections: torch.cat((x,e)) folded into the (E,E) weights,
    #      three separate dots so every operand sits at lane offset 0 ----
    q = jnp.dot(xe_m, wq_ref[...], preferred_element_type=jnp.float32) + b_q
    k = jnp.dot(xe_m, wk_ref[...], preferred_element_type=jnp.float32) + b_k
    v = jnp.dot(xe_m, wv_ref[...], preferred_element_type=jnp.float32) + b_v

    # ---- group-packed attention: G batch columns per dense (GL, GL) score block,
    #      block-diagonal additive mask keeps batches independent ----
    q = q.reshape(n_grp, GL, E).astype(mmdt)
    k = k.reshape(n_grp, GL, E).astype(mmdt)
    v = v.reshape(n_grp, GL, E).astype(mmdt)

    s = jnp.einsum("gle,gme->glm", q, k,
                   preferred_element_type=jnp.float32)      # (n_grp, GL, GL)
    s = s + mask_ref[...]                                   # 0 on-diag blocks, -1e30 off
    s = s - jnp.max(s, axis=-1, keepdims=True)
    p = jnp.exp(s)
    p = p * pl.reciprocal(jnp.sum(p, axis=-1, keepdims=True), approx=True)

    attn = jnp.einsum("glm,gme->gle", p.astype(mmdt), v,
                      preferred_element_type=jnp.float32)   # (n_grp, GL, E)
    attn = attn.reshape(M, E)
    attn = jnp.dot(attn.astype(mmdt), wout_ref[...],
                   preferred_element_type=jnp.float32) + b_out

    # dropout_1 -> identity (eval); norm_1
    y = _norm(attn, alpha1, bias1)

    # ---- pos_ffn: Linear(E,E) -> ReLU -> Dropout(id) -> Linear(E,d_h) -> ReLU ----
    h = jnp.maximum(jnp.dot(y.astype(mmdt), w1_ref[...],
                            preferred_element_type=jnp.float32) + b1, 0.0)
    h = jnp.maximum(jnp.dot(h.astype(mmdt), w2_ref[...],
                            preferred_element_type=jnp.float32) + b2, 0.0)

    # dropout_2 -> identity (eval); residual + norm_2
    z = _norm(xe[:, :d_h] + h, alpha2, bias2)               # (M, d_h)

    if dense_out:
        # lane-dense store: (TB, L*d_h) unmasked full-lane vst
        o_ref[...] = z.reshape(TB, L * d_h)
    else:
        o_ref[...] = z                                      # masked-store fallback


# --------------------------------- wrapper -----------------------------------
def selfattn_block_forward(x, e, params, Ns, Nt, d_h, heads, direction,
                           block_b=1024, matmul_dtype=jnp.bfloat16,
                           score_width=128):
    assert heads == 1, "reference module shapes only work for heads == 1"
    bs = x.shape[0]
    E = 2 * d_h

    # layout: (B, L, d_h) batch-major. direction 1 is a pure reshape (free);
    # direction 0 needs one transpose per input.
    if direction == 0:
        B, L = bs * Nt, Ns
        x_b = jnp.transpose(x, (0, 2, 1, 3)).reshape(B, L, d_h)
        e_b = jnp.transpose(e, (0, 2, 1, 3)).reshape(B, L, d_h)
    elif direction == 1:
        B, L = bs * Ns, Nt
        x_b = x.reshape(B, L, d_h)
        e_b = e.reshape(B, L, d_h)
    else:
        raise ValueError("direction must be 0 or 1")

    # attention group-packing factor: pack G batches into one (G*L, G*L) score block
    G = max(1, score_width // L)
    GL = G * L
    r = (G * 8) // math.gcd(G, 8)      # TB must be a multiple of G and of 8

    TB = max(1, min(block_b, B))
    TB = -(-TB // r) * r
    n_blocks = -(-B // TB)
    Bp = n_blocks * TB

    # pre-concatenate x/e once on the host (folds torch.cat into one operand)
    xe = jnp.concatenate([x_b, e_b], axis=-1)               # (B, L, E)
    if Bp != B:                                             # pad batch with zero rows
        xe = jnp.pad(xe, ((0, Bp - B), (0, 0), (0, 0)))
    xe_flat = xe.reshape(Bp * L, E)

    # pre-transpose / pre-split weights once; fold 1/sqrt(E) into the Q path
    scale = 1.0 / math.sqrt(E)
    w_in_T = params["w_in"].T.astype(jnp.float32)           # (E, 3E)
    w_q = (w_in_T[:, :E] * scale).astype(matmul_dtype)      # (E, E)
    w_k = w_in_T[:, E:2 * E].astype(matmul_dtype)
    w_v = w_in_T[:, 2 * E:].astype(matmul_dtype)
    w_out_T = params["w_out"].T.astype(matmul_dtype)        # (E, E)
    w1_T = params["w1"].T.astype(matmul_dtype)              # (E, E)
    w2_T = params["w2"].T.astype(matmul_dtype)              # (E, d_h)

    # pack all 1-D params into a single (16, E) f32 operand
    vec = jnp.zeros((16, E), jnp.float32)
    vec = vec.at[0, :].set(params["b_in"][0, :E] * scale)
    vec = vec.at[1, :].set(params["b_in"][0, E:2 * E])
    vec = vec.at[2, :].set(params["b_in"][0, 2 * E:])
    vec = vec.at[3, :].set(params["b_out"][0])
    vec = vec.at[4, :].set(params["alpha1"][0])
    vec = vec.at[5, :].set(params["bias1"][0])
    vec = vec.at[6, :].set(params["b1"][0])
    vec = vec.at[7, :d_h].set(params["b2"][0])
    vec = vec.at[8, :d_h].set(params["alpha2"][0])
    vec = vec.at[9, :d_h].set(params["bias2"][0])

    # block-diagonal additive mask for the group-packed attention
    blk = jnp.arange(GL) // L
    mask = jnp.where(blk[:, None] == blk[None, :], 0.0, _NEG_INF).astype(jnp.float32)

    M = TB * L

    def full_spec(a):
        return pl.BlockSpec(a.shape, lambda b: (0,) * a.ndim)

    in_specs = [
        pl.BlockSpec((M, E), lambda b: (b, 0)),              # xe tile
        full_spec(mask), full_spec(w_q), full_spec(w_k), full_spec(w_v),
        full_spec(w_out_T), full_spec(w1_T), full_spec(w2_T), full_spec(vec),
    ]
    operands = (xe_flat, mask, w_q, w_k, w_v, w_out_T, w1_T, w2_T, vec)

    flops_col = (3 * 2 * L * E * E       # q/k/v projections
                 + 2 * L * GL * E        # q @ k^T (group-packed, incl. redundancy)
                 + 2 * L * GL * E        # p @ v
                 + 2 * L * E * E         # out projection
                 + 2 * L * E * E         # ffn1
                 + 2 * L * E * d_h)      # ffn2
    param_bytes = sum(int(a.size) * a.dtype.itemsize
                      for a in (w_q, w_k, w_v, w_out_T, w1_T, w2_T, vec, mask))
    cost = pl.CostEstimate(
        flops=int(Bp * flops_col),
        transcendentals=int(Bp * (L * GL + 3 * L)),
        bytes_accessed=int(Bp * L * (E + d_h) * 4 + param_bytes),
    )
    cparams = pltpu.CompilerParams(
        dimension_semantics=("parallel",),
        vmem_limit_bytes=48 * 1024 * 1024,
    )

    def run(dense_out):
        if dense_out:
            out_shape = jax.ShapeDtypeStruct((Bp, L * d_h), jnp.float32)
            out_spec = pl.BlockSpec((TB, L * d_h), lambda b: (b, 0))
        else:
            out_shape = jax.ShapeDtypeStruct((Bp * L, d_h), jnp.float32)
            out_spec = pl.BlockSpec((M, d_h), lambda b: (b, 0))
        return pl.pallas_call(
            partial(selfattn_block_kernel, L, G, dense_out),
            out_shape=out_shape,
            grid_spec=pltpu.PrefetchScalarGridSpec(
                num_scalar_prefetch=0,
                grid=(n_blocks,),
                in_specs=in_specs,
                out_specs=out_spec,
            ),
            compiler_params=cparams,
            cost_estimate=cost,
        )(*operands)

    try:
        out = run(True)                       # lane-dense (TB, L*d_h) stores
        z = out[:B].reshape(B, L, d_h)
    except Exception:
        # TODO(synk): fallback to the masked (M, d_h) store path if the minor-dim
        #             reshape does not lower on this Mosaic version.
        out = run(False)
        z = out[:B * L].reshape(B, L, d_h)

    if direction == 0:
        return jnp.transpose(z.reshape(bs, Nt, Ns, d_h), (0, 2, 1, 3))
    return z.reshape(bs, Ns, Nt, d_h)


# --------------------------- params & JAX reference --------------------------
def init_params(key, d_h, heads):
    E = 2 * d_h * heads          # heads == 1 -> E = 2*d_h
    keys = jax.random.split(key, 8)
    s = 0.1
    return {
        "w_in": jax.random.normal(keys[0], (3 * E, E), jnp.float32) * s,
        "b_in": jax.random.normal(keys[1], (1, 3 * E), jnp.float32) * s,
        "w_out": jax.random.normal(keys[2], (E, E), jnp.float32) * s,
        "b_out": jax.random.normal(keys[3], (1, E), jnp.float32) * s,
        "alpha1": jnp.ones((1, E), jnp.float32),
        "bias1": jnp.zeros((1, E), jnp.float32),
        "w1": jax.random.normal(keys[4], (2 * d_h, 2 * d_h), jnp.float32) * s,
        "b1": jax.random.normal(keys[5], (1, 2 * d_h), jnp.float32) * s,
        "w2": jax.random.normal(keys[6], (d_h, 2 * d_h), jnp.float32) * s,
        "b2": jax.random.normal(keys[7], (1, d_h), jnp.float32) * s,
        "alpha2": jnp.ones((1, d_h * heads), jnp.float32),
        "bias2": jnp.zeros((1, d_h * heads), jnp.float32),
    }


def _norm_ref(v, alpha, bias, eps=EPS):
    mean = jnp.mean(v, axis=-1, keepdims=True)
    var = jnp.sum((v - mean) ** 2, axis=-1, keepdims=True) / (v.shape[-1] - 1)
    return alpha * (v - mean) / (jnp.sqrt(var) + eps) + bias


def reference_forward(x, e, params, Ns, Nt, d_h, heads, direction):
    # pure-JAX f32 reference mirroring the PyTorch forward (eval mode)
    bs = x.shape[0]
    E = 2 * d_h
    xcat = jnp.concatenate([x, e], axis=-1)
    if direction == 0:
        xs = jnp.transpose(xcat, (1, 0, 2, 3)).reshape(Ns, bs * Nt, E)
        xo = jnp.transpose(x, (1, 0, 2, 3)).reshape(Ns, bs * Nt, d_h)
    else:
        xs = jnp.transpose(xcat, (2, 0, 1, 3)).reshape(Nt, bs * Ns, E)
        xo = jnp.transpose(x, (2, 0, 1, 3)).reshape(Nt, bs * Ns, d_h)
    qkv = jnp.einsum("lbe,fe->lbf", xs, params["w_in"]) + params["b_in"][0]
    q, k, v = qkv[..., :E], qkv[..., E:2 * E], qkv[..., 2 * E:]
    s = jnp.einsum("lbe,mbe->blm", q, k) / math.sqrt(E)
    p = jax.nn.softmax(s, axis=-1)
    attn = jnp.einsum("blm,mbe->lbe", p, v)
    attn = jnp.einsum("lbe,fe->lbf", attn, params["w_out"]) + params["b_out"][0]
    y = _norm_ref(attn, params["alpha1"][0], params["bias1"][0])
    h = jax.nn.relu(jnp.einsum("lbe,fe->lbf", y, params["w1"]) + params["b1"][0])
    h = jax.nn.relu(jnp.einsum("lbe,fe->lbf", h, params["w2"]) + params["b2"][0])
    z = _norm_ref(xo + h, params["alpha2"][0], params["bias2"][0])
    if direction == 0:
        return jnp.transpose(z.reshape(Ns, bs, Nt, d_h * heads), (1, 0, 2, 3))
    return jnp.transpose(z.reshape(Nt, bs, Ns, d_h * heads), (1, 2, 0, 3))


# ------------------------------------ main ------------------------------------
if __name__ == "__main__":
    Ns, Nt, d_h, heads = 8, 8, 16, 1
    key = jax.random.PRNGKey(0)
    kx, ke, kp, kx2, ke2 = jax.random.split(key, 5)
    params = init_params(kp, d_h, heads)

    # case 1: bs=2, direction 0, f32 matmuls (single grid step, one 128-wide group)
    x1 = jax.random.normal(kx, (2, Ns, Nt, d_h), jnp.float32)
    e1 = jax.random.normal(ke, (2, Ns, Nt, d_h), jnp.float32)
    out1 = jax.block_until_ready(
        selfattn_block_forward(x1, e1, params, Ns, Nt, d_h, heads, direction=0,
                               matmul_dtype=jnp.float32))
    assert out1.shape == (2, Ns, Nt, d_h), out1.shape
    ref1 = jax.block_until_ready(reference_forward(x1, e1, params, Ns, Nt, d_h, heads, 0))
    if not bool(jnp.allclose(out1, ref1, rtol=2e-2, atol=2e-2)):
        raise SystemExit("direction-0 (f32) kernel does not match reference")

    # case 2: bs=3, direction 1, bf16, small block -> 2 grid steps + batch padding
    x2 = jax.random.normal(kx2, (3, Ns, Nt, d_h), jnp.float32)
    e2 = jax.random.normal(ke2, (3, Ns, Nt, d_h), jnp.float32)
    out2 = jax.block_until_ready(
        selfattn_block_forward(x2, e2, params, Ns, Nt, d_h, heads, direction=1,
                               block_b=16, matmul_dtype=jnp.bfloat16))
    assert out2.shape == (3, Ns, Nt, d_h), out2.shape
    ref2 = jax.block_until_ready(reference_forward(x2, e2, params, Ns, Nt, d_h, heads, 1))
    if not bool(jnp.allclose(out2, ref2, rtol=5e-2, atol=5e-2)):
        raise SystemExit("direction-1 (bf16) kernel does not match reference")

    # case 3: bs=3, direction 0, f32, default block -> 2 packed groups per step + padding
    out3 = jax.block_until_ready(
        selfattn_block_forward(x2, e2, params, Ns, Nt, d_h, heads, direction=0,
                               matmul_dtype=jnp.float32))
    ref3 = jax.block_until_ready(reference_forward(x2, e2, params, Ns, Nt, d_h, heads, 0))
    if not bool(jnp.allclose(out3, ref3, rtol=2e-2, atol=2e-2)):
        raise SystemExit("direction-0 (group-packed) kernel does not match reference")

    print("KERNEL_OK")
</pallas_src>

<mosaic_0001>
module attributes {stable_mosaic.version = 11 : i64} {
  func.func @selfattn_block_kernel(%arg0: i32, %arg1: memref<128x32xf32, #tpu.memory_space<vmem>>, %arg2: memref<128x128xf32, #tpu.memory_space<vmem>>, %arg3: memref<32x32xf32, #tpu.memory_space<vmem>>, %arg4: memref<32x32xf32, #tpu.memory_space<vmem>>, %arg5: memref<32x32xf32, #tpu.memory_space<vmem>>, %arg6: memref<32x32xf32, #tpu.memory_space<vmem>>, %arg7: memref<32x32xf32, #tpu.memory_space<vmem>>, %arg8: memref<32x16xf32, #tpu.memory_space<vmem>>, %arg9: memref<16x32xf32, #tpu.memory_space<vmem>>, %arg10: memref<16x128xf32, #tpu.memory_space<vmem>>) attributes {dimension_semantics = [#tpu.dimension_semantics<parallel>], iteration_bounds = array<i64: 1>, scalar_prefetch = 0 : i64, scratch_operands = 0 : i64, tpu.core_type = #tpu.core_type<tc>, window_params = [{transform_indices = @transform_0, window_bounds = array<i64: 128, 32>}, {pipeline_mode = #tpu.pipeline_mode<synchronous>, transform_indices = @transform_1, window_bounds = array<i64: 128, 128>}, {pipeline_mode = #tpu.pipeline_mode<synchronous>, transform_indices = @transform_2, window_bounds = array<i64: 32, 32>}, {pipeline_mode = #tpu.pipeline_mode<synchronous>, transform_indices = @transform_3, window_bounds = array<i64: 32, 32>}, {pipeline_mode = #tpu.pipeline_mode<synchronous>, transform_indices = @transform_4, window_bounds = array<i64: 32, 32>}, {pipeline_mode = #tpu.pipeline_mode<synchronous>, transform_indices = @transform_5, window_bounds = array<i64: 32, 32>}, {pipeline_mode = #tpu.pipeline_mode<synchronous>, transform_indices = @transform_6, window_bounds = array<i64: 32, 32>}, {pipeline_mode = #tpu.pipeline_mode<synchronous>, transform_indices = @transform_7, window_bounds = array<i64: 32, 16>}, {pipeline_mode = #tpu.pipeline_mode<synchronous>, transform_indices = @transform_8, window_bounds = array<i64: 16, 32>}, {transform_indices = @transform_9, window_bounds = array<i64: 16, 128>}]} {
    %c0 = arith.constant 0 : index
    %c0_0 = arith.constant 0 : index
    %0 = vector.load %arg1[%c0, %c0_0] : memref<128x32xf32, #tpu.memory_space<vmem>>, vector<128x32xf32>
    %c0_1 = arith.constant 0 : index
    %c0_2 = arith.constant 0 : index
    %1 = vector.load %arg9[%c0_1, %c0_2] : memref<16x32xf32, #tpu.memory_space<vmem>>, vector<1x32xf32>
    %c1 = arith.constant 1 : index
    %c0_3 = arith.constant 0 : index
    %2 = vector.load %arg9[%c1, %c0_3] : memref<16x32xf32, #tpu.memory_space<vmem>>, vector<1x32xf32>
    %c2 = arith.constant 2 : index
    %c0_4 = arith.constant 0 : index
    %3 = vector.load %arg9[%c2, %c0_4] : memref<16x32xf32, #tpu.memory_space<vmem>>, vector<1x32xf32>
    %c3 = arith.constant 3 : index
    %c0_5 = arith.constant 0 : index
    %4 = vector.load %arg9[%c3, %c0_5] : memref<16x32xf32, #tpu.memory_space<vmem>>, vector<1x32xf32>
    %c4 = arith.constant 4 : index
    %c0_6 = arith.constant 0 : index
    %5 = vector.load %arg9[%c4, %c0_6] : memref<16x32xf32, #tpu.memory_space<vmem>>, vector<1x32xf32>
    %c5 = arith.constant 5 : index
    %c0_7 = arith.constant 0 : index
    %6 = vector.load %arg9[%c5, %c0_7] : memref<16x32xf32, #tpu.memory_space<vmem>>, vector<1x32xf32>
    %c6 = arith.constant 6 : index
    %c0_8 = arith.constant 0 : index
    %7 = vector.load %arg9[%c6, %c0_8] : memref<16x32xf32, #tpu.memory_space<vmem>>, vector<1x32xf32>
    %c7 = arith.constant 7 : index
    %c0_9 = arith.constant 0 : index
    %8 = vector.load %arg9[%c7, %c0_9] : memref<16x32xf32, #tpu.memory_space<vmem>>, vector<1x16xf32>
    %c8 = arith.constant 8 : index
    %c0_10 = arith.constant 0 : index
    %9 = vector.load %arg9[%c8, %c0_10] : memref<16x32xf32, #tpu.memory_space<vmem>>, vector<1x16xf32>
    %c9 = arith.constant 9 : index
    %c0_11 = arith.constant 0 : index
    %10 = vector.load %arg9[%c9, %c0_11] : memref<16x32xf32, #tpu.memory_space<vmem>>, vector<1x16xf32>
    %c0_12 = arith.constant 0 : index
    %c0_13 = arith.constant 0 : index
    %11 = vector.load %arg3[%c0_12, %c0_13] : memref<32x32xf32, #tpu.memory_space<vmem>>, vector<32x32xf32>
    %cst = arith.constant dense<0.000000e+00> : vector<128x32xf32>
    %12 = tpu.matmul %0, %11, %cst {dimension_numbers = #tpu.dot_dimension_numbers<[1], [0], [0], [1], [0, 0, 1, 1], [], []>} : vector<128x32xf32>, vector<32x32xf32>, vector<128x32xf32> -> vector<128x32xf32>
    %13 = vector.broadcast %1 : vector<1x32xf32> to vector<128x32xf32>
    %14 = arith.addf %12, %13 : vector<128x32xf32>
    %c0_14 = arith.constant 0 : index
    %c0_15 = arith.constant 0 : index
    %15 = vector.load %arg4[%c0_14, %c0_15] : memref<32x32xf32, #tpu.memory_space<vmem>>, vector<32x32xf32>
    %cst_16 = arith.constant dense<0.000000e+00> : vector<128x32xf32>
    %16 = tpu.matmul %0, %15, %cst_16 {dimension_numbers = #tpu.dot_dimension_numbers<[1], [0], [0], [1], [0, 0, 1, 1], [], []>} : vector<128x32xf32>, vector<32x32xf32>, vector<128x32xf32> -> vector<128x32xf32>
    %17 = vector.broadcast %2 : vector<1x32xf32> to vector<128x32xf32>
    %18 = arith.addf %16, %17 : vector<128x32xf32>
    %c0_17 = arith.constant 0 : index
    %c0_18 = arith.constant 0 : index
    %19 = vector.load %arg5[%c0_17, %c0_18] : memref<32x32xf32, #tpu.memory_space<vmem>>, vector<32x32xf32>
    %cst_19 = arith.constant dense<0.000000e+00> : vector<128x32xf32>
    %20 = tpu.matmul %0, %19, %cst_19 {dimension_numbers = #tpu.dot_dimension_numbers<[1], [0], [0], [1], [0, 0, 1, 1], [], []>} : vector<128x32xf32>, vector<32x32xf32>, vector<128x32xf32> -> vector<128x32xf32>
    %21 = vector.broadcast %3 : vector<1x32xf32> to vector<128x32xf32>
    %22 = arith.addf %20, %21 : vector<128x32xf32>
    %23 = vector.shape_cast %14 : vector<128x32xf32> to vector<1x128x32xf32>
    %24 = vector.shape_cast %18 : vector<128x32xf32> to vector<1x128x32xf32>
    %25 = vector.shape_cast %22 : vector<128x32xf32> to vector<1x128x32xf32>
    "tpu.trace_start"() <{level = 10 : i32, message = "gle,gme->glm"}> : () -> ()
    %cst_20 = arith.constant dense<0.000000e+00> : vector<1x128x128xf32>
    %26 = tpu.matmul %23, %24, %cst_20 {dimension_numbers = #tpu.dot_dimension_numbers<[2], [2], [1], [1], [0, 0, 0, 1, 1, 1], [0], [0]>} : vector<1x128x32xf32>, vector<1x128x32xf32>, vector<1x128x128xf32> -> vector<1x128x128xf32>
    "tpu.trace_stop"() : () -> ()
    %c0_21 = arith.constant 0 : index
    %c0_22 = arith.constant 0 : index
    %27 = vector.load %arg2[%c0_21, %c0_22] : memref<128x128xf32, #tpu.memory_space<vmem>>, vector<128x128xf32>
    %28 = vector.shape_cast %27 : vector<128x128xf32> to vector<1x128x128xf32>
    %29 = arith.addf %26, %28 : vector<1x128x128xf32>
    %cst_23 = arith.constant dense<0xFF800000> : vector<1x128xf32>
    %30 = vector.multi_reduction <maximumf>, %29, %cst_23 [2] : vector<1x128x128xf32> to vector<1x128xf32>
    %31 = vector.shape_cast %30 : vector<1x128xf32> to vector<1x128x1xf32>
    %32 = vector.broadcast %31 : vector<1x128x1xf32> to vector<1x128x128xf32>
    %33 = arith.subf %29, %32 : vector<1x128x128xf32>
    %34 = math.exp %33 : vector<1x128x128xf32>
    %cst_24 = arith.constant dense<0.000000e+00> : vector<1x128xf32>
    %35 = vector.multi_reduction <add>, %34, %cst_24 [2] : vector<1x128x128xf32> to vector<1x128xf32>
    %36 = vector.shape_cast %35 : vector<1x128xf32> to vector<1x128x1xf32>
    %37 = tpu.reciprocal %36 {approx = true} : vector<1x128x1xf32> -> vector<1x128x1xf32>
    %38 = vector.broadcast %37 : vector<1x128x1xf32> to vector<1x128x128xf32>
    %39 = arith.mulf %34, %38 : vector<1x128x128xf32>
    "tpu.trace_start"() <{level = 10 : i32, message = "glm,gme->gle"}> : () -> ()
    %cst_25 = arith.constant dense<0.000000e+00> : vector<1x128x32xf32>
    %40 = tpu.matmul %39, %25, %cst_25 {dimension_numbers = #tpu.dot_dimension_numbers<[2], [1], [1], [2], [0, 0, 0, 1, 1, 2], [0], [0]>} : vector<1x128x128xf32>, vector<1x128x32xf32>, vector<1x128x32xf32> -> vector<1x128x32xf32>
    "tpu.trace_stop"() : () -> ()
    %41 = vector.shape_cast %40 : vector<1x128x32xf32> to vector<128x32xf32>
    %c0_26 = arith.constant 0 : index
    %c0_27 = arith.constant 0 : index
    %42 = vector.load %arg6[%c0_26, %c0_27] : memref<32x32xf32, #tpu.memory_space<vmem>>, vector<32x32xf32>
    %cst_28 = arith.constant dense<0.000000e+00> : vector<128x32xf32>
    %43 = tpu.matmul %41, %42, %cst_28 {dimension_numbers = #tpu.dot_dimension_numbers<[1], [0], [0], [1], [0, 0, 1, 1], [], []>} : vector<128x32xf32>, vector<32x32xf32>, vector<128x32xf32> -> vector<128x32xf32>
    %44 = vector.broadcast %4 : vector<1x32xf32> to vector<128x32xf32>
    %45 = arith.addf %43, %44 : vector<128x32xf32>
    %cst_29 = arith.constant dense<0.000000e+00> : vector<128xf32>
    %46 = vector.multi_reduction <add>, %45, %cst_29 [1] : vector<128x32xf32> to vector<128xf32>
    %47 = vector.shape_cast %46 : vector<128xf32> to vector<128x1xf32>
    %cst_30 = arith.constant 3.200000e+01 : f32
    %48 = vector.broadcast %cst_30 : f32 to vector<128x1xf32>
    %49 = arith.divf %47, %48 : vector<128x1xf32>
    %50 = vector.broadcast %49 : vector<128x1xf32> to vector<128x32xf32>
    %51 = arith.subf %45, %50 : vector<128x32xf32>
    %52 = arith.mulf %51, %51 : vector<128x32xf32>
    %cst_31 = arith.constant dense<0.000000e+00> : vector<128xf32>
    %53 = vector.multi_reduction <add>, %52, %cst_31 [1] : vector<128x32xf32> to vector<128xf32>
    %54 = vector.shape_cast %53 : vector<128xf32> to vector<128x1xf32>
    %cst_32 = arith.constant 0.0322580636 : f32
    %55 = vector.broadcast %cst_32 : f32 to vector<128x1xf32>
    %56 = arith.mulf %54, %55 : vector<128x1xf32>
    %57 = vector.broadcast %5 : vector<1x32xf32> to vector<128x32xf32>
    %58 = arith.mulf %57, %51 : vector<128x32xf32>
    %59 = math.sqrt %56 : vector<128x1xf32>
    %cst_33 = arith.constant 9.99999997E-7 : f32
    %60 = vector.broadcast %cst_33 : f32 to vector<128x1xf32>
    %61 = arith.addf %59, %60 : vector<128x1xf32>
    %62 = vector.broadcast %61 : vector<128x1xf32> to vector<128x32xf32>
    %63 = arith.divf %58, %62 : vector<128x32xf32>
    %64 = vector.broadcast %6 : vector<1x32xf32> to vector<128x32xf32>
    %65 = arith.addf %63, %64 : vector<128x32xf32>
    %c0_34 = arith.constant 0 : index
    %c0_35 = arith.constant 0 : index
    %66 = vector.load %arg7[%c0_34, %c0_35] : memref<32x32xf32, #tpu.memory_space<vmem>>, vector<32x32xf32>
    %cst_36 = arith.constant dense<0.000000e+00> : vector<128x32xf32>
    %67 = tpu.matmul %65, %66, %cst_36 {dimension_numbers = #tpu.dot_dimension_numbers<[1], [0], [0], [1], [0, 0, 1, 1], [], []>} : vector<128x32xf32>, vector<32x32xf32>, vector<128x32xf32> -> vector<128x32xf32>
    %68 = vector.broadcast %7 : vector<1x32xf32> to vector<128x32xf32>
    %69 = arith.addf %67, %68 : vector<128x32xf32>
    %cst_37 = arith.constant 0.000000e+00 : f32
    %70 = vector.broadcast %cst_37 : f32 to vector<128x32xf32>
    %71 = arith.maximumf %69, %70 : vector<128x32xf32>
    %c0_38 = arith.constant 0 : index
    %c0_39 = arith.constant 0 : index
    %72 = vector.load %arg8[%c0_38, %c0_39] : memref<32x16xf32, #tpu.memory_space<vmem>>, vector<32x16xf32>
    %cst_40 = arith.constant dense<0.000000e+00> : vector<128x16xf32>
    %73 = tpu.matmul %71, %72, %cst_40 {dimension_numbers = #tpu.dot_dimension_numbers<[1], [0], [0], [1], [0, 0, 1, 1], [], []>} : vector<128x32xf32>, vector<32x16xf32>, vector<128x16xf32> -> vector<128x16xf32>
    %74 = vector.broadcast %8 : vector<1x16xf32> to vector<128x16xf32>
    %75 = arith.addf %73, %74 : vector<128x16xf32>
    %cst_41 = arith.constant 0.000000e+00 : f32
    %76 = vector.broadcast %cst_41 : f32 to vector<128x16xf32>
    %77 = arith.maximumf %75, %76 : vector<128x16xf32>
    %78 = vector.extract_strided_slice %0 {offsets = [0, 0], sizes = [128, 16], strides = [1, 1]} : vector<128x32xf32> to vector<128x16xf32>
    %79 = arith.addf %78, %77 : vector<128x16xf32>
    %cst_42 = arith.constant dense<0.000000e+00> : vector<128xf32>
    %80 = vector.multi_reduction <add>, %79, %cst_42 [1] : vector<128x16xf32> to vector<128xf32>
    %81 = vector.shape_cast %80 : vector<128xf32> to vector<128x1xf32>
    %cst_43 = arith.constant 1.600000e+01 : f32
    %82 = vector.broadcast %cst_43 : f32 to vector<128x1xf32>
    %83 = arith.divf %81, %82 : vector<128x1xf32>
    %84 = vector.broadcast %83 : vector<128x1xf32> to vector<128x16xf32>
    %85 = arith.subf %79, %84 : vector<128x16xf32>
    %86 = arith.mulf %85, %85 : vector<128x16xf32>
    %cst_44 = arith.constant dense<0.000000e+00> : vector<128xf32>
    %87 = vector.multi_reduction <add>, %86, %cst_44 [1] : vector<128x16xf32> to vector<128xf32>
    %88 = vector.shape_cast %87 : vector<128xf32> to vector<128x1xf32>
    %cst_45 = arith.constant 0.0666666701 : f32
    %89 = vector.broadcast %cst_45 : f32 to vector<128x1xf32>
    %90 = arith.mulf %88, %89 : vector<128x1xf32>
    %91 = vector.broadcast %9 : vector<1x16xf32> to vector<128x16xf32>
    %92 = arith.mulf %91, %85 : vector<128x16xf32>
    %93 = math.sqrt %90 : vector<128x1xf32>
    %cst_46 = arith.constant 9.99999997E-7 : f32
    %94 = vector.broadcast %cst_46 : f32 to vector<128x1xf32>
    %95 = arith.addf %93, %94 : vector<128x1xf32>
    %96 = vector.broadcast %95 : vector<128x1xf32> to vector<128x16xf32>
    %97 = arith.divf %92, %96 : vector<128x16xf32>
    %98 = vector.broadcast %10 : vector<1x16xf32> to vector<128x16xf32>
    %99 = arith.addf %97, %98 : vector<128x16xf32>
    %100 = vector.shape_cast %99 : vector<128x16xf32> to vector<16x128xf32>
    %c0_47 = arith.constant 0 : index
    %c0_48 = arith.constant 0 : index
    %101 = vector.load %arg10[%c0_47, %c0_48] : memref<16x128xf32, #tpu.memory_space<vmem>>, vector<16x128xf32>
    tpu.vector_store %arg10[%c0_47, %c0_48], %100 {strides = array<i32>} : memref<16x128xf32, #tpu.memory_space<vmem>>, vector<16x128xf32>,
    return
  }
  func.func @transform_0(%arg0: i32) -> (i32, i32) {
    %c0_i32 = arith.constant 0 : i32
    %c0_i32_0 = arith.constant 0 : i32
    return %arg0, %c0_i32 : i32, i32
  }
  func.func @transform_1(%arg0: i32) -> (i32, i32) {
    %c0_i32 = arith.constant 0 : i32
    %c0_i32_0 = arith.constant 0 : i32
    %c0_i32_1 = arith.constant 0 : i32
    return %c0_i32, %c0_i32_0 : i32, i32
  }
  func.func @transform_2(%arg0: i32) -> (i32, i32) {
    %c0_i32 = arith.constant 0 : i32
    %c0_i32_0 = arith.constant 0 : i32
    %c0_i32_1 = arith.constant 0 : i32
    return %c0_i32, %c0_i32_0 : i32, i32
  }
  func.func @transform_3(%arg0: i32) -> (i32, i32) {
    %c0_i32 = arith.constant 0 : i32
    %c0_i32_0 = arith.constant 0 : i32
    %c0_i32_1 = arith.constant 0 : i32
    return %c0_i32, %c0_i32_0 : i32, i32
  }
  func.func @transform_4(%arg0: i32) -> (i32, i32) {
    %c0_i32 = arith.constant 0 : i32
    %c0_i32_0 = arith.constant 0 : i32
    %c0_i32_1 = arith.constant 0 : i32
    return %c0_i32, %c0_i32_0 : i32, i32
  }
  func.func @transform_5(%arg0: i32) -> (i32, i32) {
    %c0_i32 = arith.constant 0 : i32
    %c0_i32_0 = arith.constant 0 : i32
    %c0_i32_1 = arith.constant 0 : i32
    return %c0_i32, %c0_i32_0 : i32, i32
  }
  func.func @transform_6(%arg0: i32) -> (i32, i32) {
    %c0_i32 = arith.constant 0 : i32
    %c0_i32_0 = arith.constant 0 : i32
    %c0_i32_1 = arith.constant 0 : i32
    return %c0_i32, %c0_i32_0 : i32, i32
  }
  func.func @transform_7(%arg0: i32) -> (i32, i32) {
    %c0_i32 = arith.constant 0 : i32
    %c0_i32_0 = arith.constant 0 : i32
    %c0_i32_1 = arith.constant 0 : i32
    return %c0_i32, %c0_i32_0 : i32, i32
  }
  func.func @transform_8(%arg0: i32) -> (i32, i32) {
    %c0_i32 = arith.constant 0 : i32
    %c0_i32_0 = arith.constant 0 : i32
    %c0_i32_1 = arith.constant 0 : i32
    return %c0_i32, %c0_i32_0 : i32, i32
  }
  func.func @transform_9(%arg0: i32) -> (i32, i32) {
    %c0_i32 = arith.constant 0 : i32
    %c0_i32_0 = arith.constant 0 : i32
    return %arg0, %c0_i32 : i32, i32
  }
}

module attributes {stable_mosaic.version = 11 : i64} {
  func.func @selfattn_block_kernel(%arg0: i32, %arg1: memref<128x32xf32, #tpu.memory_space<vmem>>, %arg2: memref<128x128xf32, #tpu.memory_space<vmem>>, %arg3: memref<32x32xf32, #tpu.memory_space<vmem>>, %arg4: memref<32x32xf32, #tpu.memory_space<vmem>>, %arg5: memref<32x32xf32, #tpu.memory_space<vmem>>, %arg6: memref<32x32xf32, #tpu.memory_space<vmem>>, %arg7: memref<32x32xf32, #tpu.memory_space<vmem>>, %arg8: memref<32x16xf32, #tpu.memory_space<vmem>>, %arg9: memref<16x32xf32, #tpu.memory_space<vmem>>, %arg10: memref<128x16xf32, #tpu.memory_space<vmem>>) attributes {dimension_semantics = [#tpu.dimension_semantics<parallel>], iteration_bounds = array<i64: 1>, scalar_prefetch = 0 : i64, scratch_operands = 0 : i64, tpu.core_type = #tpu.core_type<tc>, window_params = [{transform_indices = @transform_0, window_bounds = array<i64: 128, 32>}, {pipeline_mode = #tpu.pipeline_mode<synchronous>, transform_indices = @transform_1, window_bounds = array<i64: 128, 128>}, {pipeline_mode = #tpu.pipeline_mode<synchronous>, transform_indices = @transform_2, window_bounds = array<i64: 32, 32>}, {pipeline_mode = #tpu.pipeline_mode<synchronous>, transform_indices = @transform_3, window_bounds = array<i64: 32, 32>}, {pipeline_mode = #tpu.pipeline_mode<synchronous>, transform_indices = @transform_4, window_bounds = array<i64: 32, 32>}, {pipeline_mode = #tpu.pipeline_mode<synchronous>, transform_indices = @transform_5, window_bounds = array<i64: 32, 32>}, {pipeline_mode = #tpu.pipeline_mode<synchronous>, transform_indices = @transform_6, window_bounds = array<i64: 32, 32>}, {pipeline_mode = #tpu.pipeline_mode<synchronous>, transform_indices = @transform_7, window_bounds = array<i64: 32, 16>}, {pipeline_mode = #tpu.pipeline_mode<synchronous>, transform_indices = @transform_8, window_bounds = array<i64: 16, 32>}, {transform_indices = @transform_9, window_bounds = array<i64: 128, 16>}]} {
    %c0 = arith.constant 0 : index
    %c0_0 = arith.constant 0 : index
    %0 = vector.load %arg1[%c0, %c0_0] : memref<128x32xf32, #tpu.memory_space<vmem>>, vector<128x32xf32>
    %c0_1 = arith.constant 0 : index
    %c0_2 = arith.constant 0 : index
    %1 = vector.load %arg9[%c0_1, %c0_2] : memref<16x32xf32, #tpu.memory_space<vmem>>, vector<1x32xf32>
    %c1 = arith.constant 1 : index
    %c0_3 = arith.constant 0 : index
    %2 = vector.load %arg9[%c1, %c0_3] : memref<16x32xf32, #tpu.memory_space<vmem>>, vector<1x32xf32>
    %c2 = arith.constant 2 : index
    %c0_4 = arith.constant 0 : index
    %3 = vector.load %arg9[%c2, %c0_4] : memref<16x32xf32, #tpu.memory_space<vmem>>, vector<1x32xf32>
    %c3 = arith.constant 3 : index
    %c0_5 = arith.constant 0 : index
    %4 = vector.load %arg9[%c3, %c0_5] : memref<16x32xf32, #tpu.memory_space<vmem>>, vector<1x32xf32>
    %c4 = arith.constant 4 : index
    %c0_6 = arith.constant 0 : index
    %5 = vector.load %arg9[%c4, %c0_6] : memref<16x32xf32, #tpu.memory_space<vmem>>, vector<1x32xf32>
    %c5 = arith.constant 5 : index
    %c0_7 = arith.constant 0 : index
    %6 = vector.load %arg9[%c5, %c0_7] : memref<16x32xf32, #tpu.memory_space<vmem>>, vector<1x32xf32>
    %c6 = arith.constant 6 : index
    %c0_8 = arith.constant 0 : index
    %7 = vector.load %arg9[%c6, %c0_8] : memref<16x32xf32, #tpu.memory_space<vmem>>, vector<1x32xf32>
    %c7 = arith.constant 7 : index
    %c0_9 = arith.constant 0 : index
    %8 = vector.load %arg9[%c7, %c0_9] : memref<16x32xf32, #tpu.memory_space<vmem>>, vector<1x16xf32>
    %c8 = arith.constant 8 : index
    %c0_10 = arith.constant 0 : index
    %9 = vector.load %arg9[%c8, %c0_10] : memref<16x32xf32, #tpu.memory_space<vmem>>, vector<1x16xf32>
    %c9 = arith.constant 9 : index
    %c0_11 = arith.constant 0 : index
    %10 = vector.load %arg9[%c9, %c0_11] : memref<16x32xf32, #tpu.memory_space<vmem>>, vector<1x16xf32>
    %c0_12 = arith.constant 0 : index
    %c0_13 = arith.constant 0 : index
    %11 = vector.load %arg3[%c0_12, %c0_13] : memref<32x32xf32, #tpu.memory_space<vmem>>, vector<32x32xf32>
    %cst = arith.constant dense<0.000000e+00> : vector<128x32xf32>
    %12 = tpu.matmul %0, %11, %cst {dimension_numbers = #tpu.dot_dimension_numbers<[1], [0], [0], [1], [0, 0, 1, 1], [], []>} : vector<128x32xf32>, vector<32x32xf32>, vector<128x32xf32> -> vector<128x32xf32>
    %13 = vector.broadcast %1 : vector<1x32xf32> to vector<128x32xf32>
    %14 = arith.addf %12, %13 : vector<128x32xf32>
    %c0_14 = arith.constant 0 : index
    %c0_15 = arith.constant 0 : index
    %15 = vector.load %arg4[%c0_14, %c0_15] : memref<32x32xf32, #tpu.memory_space<vmem>>, vector<32x32xf32>
    %cst_16 = arith.constant dense<0.000000e+00> : vector<128x32xf32>
    %16 = tpu.matmul %0, %15, %cst_16 {dimension_numbers = #tpu.dot_dimension_numbers<[1], [0], [0], [1], [0, 0, 1, 1], [], []>} : vector<128x32xf32>, vector<32x32xf32>, vector<128x32xf32> -> vector<128x32xf32>
    %17 = vector.broadcast %2 : vector<1x32xf32> to vector<128x32xf32>
    %18 = arith.addf %16, %17 : vector<128x32xf32>
    %c0_17 = arith.constant 0 : index
    %c0_18 = arith.constant 0 : index
    %19 = vector.load %arg5[%c0_17, %c0_18] : memref<32x32xf32, #tpu.memory_space<vmem>>, vector<32x32xf32>
    %cst_19 = arith.constant dense<0.000000e+00> : vector<128x32xf32>
    %20 = tpu.matmul %0, %19, %cst_19 {dimension_numbers = #tpu.dot_dimension_numbers<[1], [0], [0], [1], [0, 0, 1, 1], [], []>} : vector<128x32xf32>, vector<32x32xf32>, vector<128x32xf32> -> vector<128x32xf32>
    %21 = vector.broadcast %3 : vector<1x32xf32> to vector<128x32xf32>
    %22 = arith.addf %20, %21 : vector<128x32xf32>
    %23 = vector.shape_cast %14 : vector<128x32xf32> to vector<1x128x32xf32>
    %24 = vector.shape_cast %18 : vector<128x32xf32> to vector<1x128x32xf32>
    %25 = vector.shape_cast %22 : vector<128x32xf32> to vector<1x128x32xf32>
    "tpu.trace_start"() <{level = 10 : i32, message = "gle,gme->glm"}> : () -> ()
    %cst_20 = arith.constant dense<0.000000e+00> : vector<1x128x128xf32>
    %26 = tpu.matmul %23, %24, %cst_20 {dimension_numbers = #tpu.dot_dimension_numbers<[2], [2], [1], [1], [0, 0, 0, 1, 1, 1], [0], [0]>} : vector<1x128x32xf32>, vector<1x128x32xf32>, vector<1x128x128xf32> -> vector<1x128x128xf32>
    "tpu.trace_stop"() : () -> ()
    %c0_21 = arith.constant 0 : index
    %c0_22 = arith.constant 0 : index
    %27 = vector.load %arg2[%c0_21, %c0_22] : memref<128x128xf32, #tpu.memory_space<vmem>>, vector<128x128xf32>
    %28 = vector.shape_cast %27 : vector<128x128xf32> to vector<1x128x128xf32>
    %29 = arith.addf %26, %28 : vector<1x128x128xf32>
    %cst_23 = arith.constant dense<0xFF800000> : vector<1x128xf32>
    %30 = vector.multi_reduction <maximumf>, %29, %cst_23 [2] : vector<1x128x128xf32> to vector<1x128xf32>
    %31 = vector.shape_cast %30 : vector<1x128xf32> to vector<1x128x1xf32>
    %32 = vector.broadcast %31 : vector<1x128x1xf32> to vector<1x128x128xf32>
    %33 = arith.subf %29, %32 : vector<1x128x128xf32>
    %34 = math.exp %33 : vector<1x128x128xf32>
    %cst_24 = arith.constant dense<0.000000e+00> : vector<1x128xf32>
    %35 = vector.multi_reduction <add>, %34, %cst_24 [2] : vector<1x128x128xf32> to vector<1x128xf32>
    %36 = vector.shape_cast %35 : vector<1x128xf32> to vector<1x128x1xf32>
    %37 = tpu.reciprocal %36 {approx = true} : vector<1x128x1xf32> -> vector<1x128x1xf32>
    %38 = vector.broadcast %37 : vector<1x128x1xf32> to vector<1x128x128xf32>
    %39 = arith.mulf %34, %38 : vector<1x128x128xf32>
    "tpu.trace_start"() <{level = 10 : i32, message = "glm,gme->gle"}> : () -> ()
    %cst_25 = arith.constant dense<0.000000e+00> : vector<1x128x32xf32>
    %40 = tpu.matmul %39, %25, %cst_25 {dimension_numbers = #tpu.dot_dimension_numbers<[2], [1], [1], [2], [0, 0, 0, 1, 1, 2], [0], [0]>} : vector<1x128x128xf32>, vector<1x128x32xf32>, vector<1x128x32xf32> -> vector<1x128x32xf32>
    "tpu.trace_stop"() : () -> ()
    %41 = vector.shape_cast %40 : vector<1x128x32xf32> to vector<128x32xf32>
    %c0_26 = arith.constant 0 : index
    %c0_27 = arith.constant 0 : index
    %42 = vector.load %arg6[%c0_26, %c0_27] : memref<32x32xf32, #tpu.memory_space<vmem>>, vector<32x32xf32>
    %cst_28 = arith.constant dense<0.000000e+00> : vector<128x32xf32>
    %43 = tpu.matmul %41, %42, %cst_28 {dimension_numbers = #tpu.dot_dimension_numbers<[1], [0], [0], [1], [0, 0, 1, 1], [], []>} : vector<128x32xf32>, vector<32x32xf32>, vector<128x32xf32> -> vector<128x32xf32>
    %44 = vector.broadcast %4 : vector<1x32xf32> to vector<128x32xf32>
    %45 = arith.addf %43, %44 : vector<128x32xf32>
    %cst_29 = arith.constant dense<0.000000e+00> : vector<128xf32>
    %46 = vector.multi_reduction <add>, %45, %cst_29 [1] : vector<128x32xf32> to vector<128xf32>
    %47 = vector.shape_cast %46 : vector<128xf32> to vector<128x1xf32>
    %cst_30 = arith.constant 3.200000e+01 : f32
    %48 = vector.broadcast %cst_30 : f32 to vector<128x1xf32>
    %49 = arith.divf %47, %48 : vector<128x1xf32>
    %50 = vector.broadcast %49 : vector<128x1xf32> to vector<128x32xf32>
    %51 = arith.subf %45, %50 : vector<128x32xf32>
    %52 = arith.mulf %51, %51 : vector<128x32xf32>
    %cst_31 = arith.constant dense<0.000000e+00> : vector<128xf32>
    %53 = vector.multi_reduction <add>, %52, %cst_31 [1] : vector<128x32xf32> to vector<128xf32>
    %54 = vector.shape_cast %53 : vector<128xf32> to vector<128x1xf32>
    %cst_32 = arith.constant 0.0322580636 : f32
    %55 = vector.broadcast %cst_32 : f32 to vector<128x1xf32>
    %56 = arith.mulf %54, %55 : vector<128x1xf32>
    %57 = vector.broadcast %5 : vector<1x32xf32> to vector<128x32xf32>
    %58 = arith.mulf %57, %51 : vector<128x32xf32>
    %59 = math.sqrt %56 : vector<128x1xf32>
    %cst_33 = arith.constant 9.99999997E-7 : f32
    %60 = vector.broadcast %cst_33 : f32 to vector<128x1xf32>
    %61 = arith.addf %59, %60 : vector<128x1xf32>
    %62 = vector.broadcast %61 : vector<128x1xf32> to vector<128x32xf32>
    %63 = arith.divf %58, %62 : vector<128x32xf32>
    %64 = vector.broadcast %6 : vector<1x32xf32> to vector<128x32xf32>
    %65 = arith.addf %63, %64 : vector<128x32xf32>
    %c0_34 = arith.constant 0 : index
    %c0_35 = arith.constant 0 : index
    %66 = vector.load %arg7[%c0_34, %c0_35] : memref<32x32xf32, #tpu.memory_space<vmem>>, vector<32x32xf32>
    %cst_36 = arith.constant dense<0.000000e+00> : vector<128x32xf32>
    %67 = tpu.matmul %65, %66, %cst_36 {dimension_numbers = #tpu.dot_dimension_numbers<[1], [0], [0], [1], [0, 0, 1, 1], [], []>} : vector<128x32xf32>, vector<32x32xf32>, vector<128x32xf32> -> vector<128x32xf32>
    %68 = vector.broadcast %7 : vector<1x32xf32> to vector<128x32xf32>
    %69 = arith.addf %67, %68 : vector<128x32xf32>
    %cst_37 = arith.constant 0.000000e+00 : f32
    %70 = vector.broadcast %cst_37 : f32 to vector<128x32xf32>
    %71 = arith.maximumf %69, %70 : vector<128x32xf32>
    %c0_38 = arith.constant 0 : index
    %c0_39 = arith.constant 0 : index
    %72 = vector.load %arg8[%c0_38, %c0_39] : memref<32x16xf32, #tpu.memory_space<vmem>>, vector<32x16xf32>
    %cst_40 = arith.constant dense<0.000000e+00> : vector<128x16xf32>
    %73 = tpu.matmul %71, %72, %cst_40 {dimension_numbers = #tpu.dot_dimension_numbers<[1], [0], [0], [1], [0, 0, 1, 1], [], []>} : vector<128x32xf32>, vector<32x16xf32>, vector<128x16xf32> -> vector<128x16xf32>
    %74 = vector.broadcast %8 : vector<1x16xf32> to vector<128x16xf32>
    %75 = arith.addf %73, %74 : vector<128x16xf32>
    %cst_41 = arith.constant 0.000000e+00 : f32
    %76 = vector.broadcast %cst_41 : f32 to vector<128x16xf32>
    %77 = arith.maximumf %75, %76 : vector<128x16xf32>
    %78 = vector.extract_strided_slice %0 {offsets = [0, 0], sizes = [128, 16], strides = [1, 1]} : vector<128x32xf32> to vector<128x16xf32>
    %79 = arith.addf %78, %77 : vector<128x16xf32>
    %cst_42 = arith.constant dense<0.000000e+00> : vector<128xf32>
    %80 = vector.multi_reduction <add>, %79, %cst_42 [1] : vector<128x16xf32> to vector<128xf32>
    %81 = vector.shape_cast %80 : vector<128xf32> to vector<128x1xf32>
    %cst_43 = arith.constant 1.600000e+01 : f32
    %82 = vector.broadcast %cst_43 : f32 to vector<128x1xf32>
    %83 = arith.divf %81, %82 : vector<128x1xf32>
    %84 = vector.broadcast %83 : vector<128x1xf32> to vector<128x16xf32>
    %85 = arith.subf %79, %84 : vector<128x16xf32>
    %86 = arith.mulf %85, %85 : vector<128x16xf32>
    %cst_44 = arith.constant dense<0.000000e+00> : vector<128xf32>
    %87 = vector.multi_reduction <add>, %86, %cst_44 [1] : vector<128x16xf32> to vector<128xf32>
    %88 = vector.shape_cast %87 : vector<128xf32> to vector<128x1xf32>
    %cst_45 = arith.constant 0.0666666701 : f32
    %89 = vector.broadcast %cst_45 : f32 to vector<128x1xf32>
    %90 = arith.mulf %88, %89 : vector<128x1xf32>
    %91 = vector.broadcast %9 : vector<1x16xf32> to vector<128x16xf32>
    %92 = arith.mulf %91, %85 : vector<128x16xf32>
    %93 = math.sqrt %90 : vector<128x1xf32>
    %cst_46 = arith.constant 9.99999997E-7 : f32
    %94 = vector.broadcast %cst_46 : f32 to vector<128x1xf32>
    %95 = arith.addf %93, %94 : vector<128x1xf32>
    %96 = vector.broadcast %95 : vector<128x1xf32> to vector<128x16xf32>
    %97 = arith.divf %92, %96 : vector<128x16xf32>
    %98 = vector.broadcast %10 : vector<1x16xf32> to vector<128x16xf32>
    %99 = arith.addf %97, %98 : vector<128x16xf32>
    %c0_47 = arith.constant 0 : index
    %c0_48 = arith.constant 0 : index
    %100 = vector.load %arg10[%c0_47, %c0_48] : memref<128x16xf32, #tpu.memory_space<vmem>>, vector<128x16xf32>
    tpu.vector_store %arg10[%c0_47, %c0_48], %99 {strides = array<i32>} : memref<128x16xf32, #tpu.memory_space<vmem>>, vector<128x16xf32>,
    return
  }
  func.func @transform_0(%arg0: i32) -> (i32, i32) {
    %c0_i32 = arith.constant 0 : i32
    %c0_i32_0 = arith.constant 0 : i32
    return %arg0, %c0_i32 : i32, i32
  }
  func.func @transform_1(%arg0: i32) -> (i32, i32) {
    %c0_i32 = arith.constant 0 : i32
    %c0_i32_0 = arith.constant 0 : i32
    %c0_i32_1 = arith.constant 0 : i32
    return %c0_i32, %c0_i32_0 : i32, i32
  }
  func.func @transform_2(%arg0: i32) -> (i32, i32) {
    %c0_i32 = arith.constant 0 : i32
    %c0_i32_0 = arith.constant 0 : i32
    %c0_i32_1 = arith.constant 0 : i32
    return %c0_i32, %c0_i32_0 : i32, i32
  }
  func.func @transform_3(%arg0: i32) -> (i32, i32) {
    %c0_i32 = arith.constant 0 : i32
    %c0_i32_0 = arith.constant 0 : i32
    %c0_i32_1 = arith.constant 0 : i32
    return %c0_i32, %c0_i32_0 : i32, i32
  }
  func.func @transform_4(%arg0: i32) -> (i32, i32) {
    %c0_i32 = arith.constant 0 : i32
    %c0_i32_0 = arith.constant 0 : i32
    %c0_i32_1 = arith.constant 0 : i32
    return %c0_i32, %c0_i32_0 : i32, i32
  }
  func.func @transform_5(%arg0: i32) -> (i32, i32) {
    %c0_i32 = arith.constant 0 : i32
    %c0_i32_0 = arith.constant 0 : i32
    %c0_i32_1 = arith.constant 0 : i32
    return %c0_i32, %c0_i32_0 : i32, i32
  }
  func.func @transform_6(%arg0: i32) -> (i32, i32) {
    %c0_i32 = arith.constant 0 : i32
    %c0_i32_0 = arith.constant 0 : i32
    %c0_i32_1 = arith.constant 0 : i32
    return %c0_i32, %c0_i32_0 : i32, i32
  }
  func.func @transform_7(%arg0: i32) -> (i32, i32) {
    %c0_i32 = arith.constant 0 : i32
    %c0_i32_0 = arith.constant 0 : i32
    %c0_i32_1 = arith.constant 0 : i32
    return %c0_i32, %c0_i32_0 : i32, i32
  }
  func.func @transform_8(%arg0: i32) -> (i32, i32) {
    %c0_i32 = arith.constant 0 : i32
    %c0_i32_0 = arith.constant 0 : i32
    %c0_i32_1 = arith.constant 0 : i32
    return %c0_i32, %c0_i32_0 : i32, i32
  }
  func.func @transform_9(%arg0: i32) -> (i32, i32) {
    %c0_i32 = arith.constant 0 : i32
    %c0_i32_0 = arith.constant 0 : i32
    return %arg0, %c0_i32 : i32, i32
  }
}

</mosaic_0001>

<llo_original>
// kernel: tpu_custom_call.1
$region0: #{tpu_custom_call.1}
  #allocation0 [shape = 'u32[]', space=smem, size = 0x4, offset = 0x4, fixed_abs, tag = 'smem constant byte address 0x4 - core index']
  #allocation1 [shape = 'u32[144,128]{1,0:T(1,128)}', space=vmem, size = 0x12000, scoped, tag = 'internal scratch']
  %s0 = inlined_call_operand.vmem [shape: f32[128,32], index: 0, kind: input, shape index: {}]
  %s1 = inlined_call_operand.vmem [shape: f32[128,128], index: 1, kind: input, shape index: {}]
  %s2 = inlined_call_operand.vmem [shape: f32[32,32], index: 2, kind: input, shape index: {}]
  %s3 = inlined_call_operand.vmem [shape: f32[32,32], index: 3, kind: input, shape index: {}]
  %s4 = inlined_call_operand.hbm [shape: f32[32,32], index: 4, kind: input, shape index: {}]
  %s5 = inlined_call_operand.vmem [shape: f32[32,32], index: 5, kind: input, shape index: {}]
  %s6 = inlined_call_operand.hbm [shape: f32[32,32], index: 6, kind: input, shape index: {}]
  %s7 = inlined_call_operand.vmem [shape: f32[32,16], index: 7, kind: input, shape index: {}]
  %s8 = inlined_call_operand.hbm [shape: f32[16,32], index: 8, kind: input, shape index: {}]
  %s9 = inlined_call_operand.vmem [shape: f32[128,16], index: 9, kind: output, shape index: {}]
  %s10 = sld [smem:[#allocation0]]
  $region58: #{tpu_custom_call.1} parent=0
    _
  %s12 = ssub.s32 1, %s10
  %s13 = scalar_select 0, %s12, %s10
  $region1: #{tpu_custom_call.1} parent=0
    #allocation2 [shape = 'u8[16384]{0}', space=vmem, size = 0x4000, scoped, tag = 'input window, operand 4, single buffered']
    #allocation3 [shape = 's32[1]{0}', space=sflag, size = 0x4, scoped, tag = 'scoped memory for tpu_custom_call.1']
    #allocation4 [shape = 'u8[16384]{0}', space=vmem, size = 0x4000, scoped, tag = 'input window, operand 6, single buffered']
    #allocation5 [shape = 's32[1]{0}', space=sflag, size = 0x4, scoped, tag = 'scoped memory for tpu_custom_call.1']
    #allocation6 [shape = 'u8[8192]{0}', space=vmem, size = 0x2000, scoped, tag = 'input window, operand 8, single buffered']
    %14 = vsyncpa [#allocation3], 0
    %15 = vsyncpa [#allocation5], 0
    // Predicated region
    $region2: #{tpu_custom_call.1} parent=1 // pred_check
      _
    $region3: #{tpu_custom_call.1} parent=1 // pred_check_branch
      %17 = sbr.rel (0) target = $region5
    $region4: #{tpu_custom_call.1} parent=1 // pred_region
      _
    $region5: #{tpu_custom_call.1} parent=1 // pred_fallthru
      _
    // Predicated region
    $region6: #{tpu_custom_call.1} parent=1 // pred_check
      _
    $region7: #{tpu_custom_call.1} parent=1 // pred_check_branch
      %19 = sbr.rel (0) target = $region9
    $region8: #{tpu_custom_call.1} parent=1 // pred_region
      _
    $region9: #{tpu_custom_call.1} parent=1 // pred_fallthru
      _
    // Predicated region
    $region10: #{tpu_custom_call.1} parent=1 // pred_check
      _
    $region11: #{tpu_custom_call.1} parent=1 // pred_check_branch
      %21 = sbr.rel (0) target = $region13
    $region12: #{tpu_custom_call.1} parent=1 // pred_region
      _
    $region13: #{tpu_custom_call.1} parent=1 // pred_fallthru
      _
    // Predicated region
    $region14: #{tpu_custom_call.1} parent=1 // pred_check
      _
    $region15: #{tpu_custom_call.1} parent=1 // pred_check_branch
      %23 = sbr.rel (0) target = $region17
    $region16: #{tpu_custom_call.1} parent=1 // pred_region
      _
    $region17: #{tpu_custom_call.1} parent=1 // pred_fallthru
      _
    // Predicated region
    $region18: #{tpu_custom_call.1} parent=1 // pred_check
      _
    $region19: #{tpu_custom_call.1} parent=1 // pred_check_branch
      %25 = sbr.rel (0) target = $region21
    $region20: #{tpu_custom_call.1} parent=1 // pred_region
      %s27 = ssub.s32 512, 512
      %28 = vsyncadd [#allocation3], %s27
      %s29 = sshll.u32 [#allocation2], 4
      %s30 = int_to_ptr.vmem [resolvable:$true] %s29
      %35 = dma.hbm_to_vmem [thread:$0]  %s4, 512, %s30, [#allocation3], 128, 128, 8
    $region21: #{tpu_custom_call.1} parent=1 // pred_fallthru
      _
    // Predicated region
    $region22: #{tpu_custom_call.1} parent=1 // pred_check
      _
    $region23: #{tpu_custom_call.1} parent=1 // pred_check_branch
      %37 = sbr.rel (0) target = $region25
    $region24: #{tpu_custom_call.1} parent=1 // pred_region
      _
    $region25: #{tpu_custom_call.1} parent=1 // pred_fallthru
      _
    // Predicated region
    $region26: #{tpu_custom_call.1} parent=1 // pred_check
      _
    $region27: #{tpu_custom_call.1} parent=1 // pred_check_branch
      %39 = sbr.rel (0) target = $region29
    $region28: #{tpu_custom_call.1} parent=1 // pred_region
      %s41 = ssub.s32 512, 512
      %42 = vsyncadd [#allocation5], %s41
      %s43 = sshll.u32 [#allocation4], 4
      %s44 = int_to_ptr.vmem [resolvable:$true] %s43
      %49 = dma.hbm_to_vmem [thread:$0]  %s6, 512, %s44, [#allocation5], 128, 128, 8
    $region29: #{tpu_custom_call.1} parent=1 // pred_fallthru
      _
    // Predicated region
    $region30: #{tpu_custom_call.1} parent=1 // pred_check
      _
    $region31: #{tpu_custom_call.1} parent=1 // pred_check_branch
      %51 = sbr.rel (0) target = $region33
    $region32: #{tpu_custom_call.1} parent=1 // pred_region
      _
    $region33: #{tpu_custom_call.1} parent=1 // pred_fallthru
      _
    // Predicated region
    $region34: #{tpu_custom_call.1} parent=1 // pred_check
      _
    $region35: #{tpu_custom_call.1} parent=1 // pred_check_branch
      %53 = sbr.rel (0) target = $region37
    $region36: #{tpu_custom_call.1} parent=1 // pred_region
      %s55 = ssub.s32 256, 256
      %56 = vsyncadd [#allocation5], %s55
      %s57 = sshll.u32 [#allocation6], 4
      %s58 = int_to_ptr.vmem [resolvable:$true] %s57
      %63 = dma.hbm_to_vmem [thread:$0]  %s8, 256, %s58, [#allocation5], 128, 128, 8
    $region37: #{tpu_custom_call.1} parent=1 // pred_fallthru
      _
    // Predicated region
    $region38: #{tpu_custom_call.1} parent=1 // pred_check
      _
    $region39: #{tpu_custom_call.1} parent=1 // pred_check_branch
      %65 = sbr.rel (0) target = $region41
    $region40: #{tpu_custom_call.1} parent=1 // pred_region
      %66 = dma.done [#allocation3], 512
    $region41: #{tpu_custom_call.1} parent=1 // pred_fallthru
      _
    // Predicated region
    $region42: #{tpu_custom_call.1} parent=1 // pred_check
      _
    $region43: #{tpu_custom_call.1} parent=1 // pred_check_branch
      %68 = sbr.rel (0) target = $region45
    $region44: #{tpu_custom_call.1} parent=1 // pred_region
      %69 = dma.done [#allocation5], 512
    $region45: #{tpu_custom_call.1} parent=1 // pred_fallthru
      _
    // Predicated region
    $region46: #{tpu_custom_call.1} parent=1 // pred_check
      _
    $region47: #{tpu_custom_call.1} parent=1 // pred_check_branch
      %71 = sbr.rel (0) target = $region49
    $region48: #{tpu_custom_call.1} parent=1 // pred_region
      %72 = dma.done [#allocation5], 256
    $region49: #{tpu_custom_call.1} parent=1 // pred_fallthru
      _
    %v73 = vld [vmem:[%s0] sm:$0xff]
    %v74 = vld [vmem:[%s0 + $0x8] sm:$0xff]
    %v75 = vld [vmem:[%s0 + $0x10] sm:$0xff]
    %v76 = vld [vmem:[%s0 + $0x18] sm:$0xff]
    %v77 = vld [vmem:[%s0 + $0x20] sm:$0xff]
    %v78 = vld [vmem:[%s0 + $0x28] sm:$0xff]
    %v79 = vld [vmem:[%s0 + $0x30] sm:$0xff]
    %v80 = vld [vmem:[%s0 + $0x38] sm:$0xff]
    %v81 = vld [vmem:[%s0 + $0x40] sm:$0xff]
    %v82 = vld [vmem:[%s0 + $0x48] sm:$0xff]
    %v83 = vld [vmem:[%s0 + $0x50] sm:$0xff]
    %v84 = vld [vmem:[%s0 + $0x58] sm:$0xff]
    %v85 = vld [vmem:[%s0 + $0x60] sm:$0xff]
    %v86 = vld [vmem:[%s0 + $0x68] sm:$0xff]
    %v87 = vld [vmem:[%s0 + $0x70] sm:$0xff]
    %v88 = vld [vmem:[%s0 + $0x78] sm:$0xff]
    %v89 = vld [vmem:[#allocation6] sm:$0x1]
    %v90 = vld [vmem:[#allocation6 + $0x1] sm:$0x1]
    %v91 = vld [vmem:[#allocation6 + $0x2] sm:$0x1]
    %v92 = vld [vmem:[#allocation6 + $0x3] sm:$0x1]
    %v93 = vld [vmem:[#allocation6 + $0x4] sm:$0x1]
    %v94 = vld [vmem:[#allocation6 + $0x5] sm:$0x1]
    %v95 = vld [vmem:[#allocation6 + $0x6] sm:$0x1]
    %v96 = vld [vmem:[#allocation6 + $0x7] sm:$0x1]
    %v97 = vld [vmem:[#allocation6 + $0x8] sm:$0x1]
    %v98 = vld [vmem:[#allocation6 + $0x9] sm:$0x1]
    %v99 = vld [vmem:[%s2] sm:$0xff]
    %v100 = vld [vmem:[%s2 + $0x8] sm:$0xff]
    %v101 = vld [vmem:[%s2 + $0x10] sm:$0xff]
    %v102 = vld [vmem:[%s2 + $0x18] sm:$0xff]
    %v103 = vlaneseq
    %v104 = vshrl.u32 %v103, 7
    %v105 = vsub.s32 0, %v104
    %v106 = vrot.slane %v89, %v105
    %vm107 = vcmask 261120
    %v109 = vsel %vm107, %v73, 0
    %v112 = vsel %vm107, %v74, 0
    %v115 = vsel %vm107, %v75, 0
    %v118 = vsel %vm107, %v76, 0
    %v121 = vsel %vm107, %v77, 0
    %v124 = vsel %vm107, %v78, 0
    %v127 = vsel %vm107, %v79, 0
    %v130 = vsel %vm107, %v80, 0
    %v133 = vsel %vm107, %v81, 0
    %v136 = vsel %vm107, %v82, 0
    %v139 = vsel %vm107, %v83, 0
    %v142 = vsel %vm107, %v84, 0
    %v145 = vsel %vm107, %v85, 0
    %v148 = vsel %vm107, %v86, 0
    %v151 = vsel %vm107, %v87, 0
    %v154 = vsel %vm107, %v88, 0
    %156 = vmatprep.subr.mxu0 0.0
    %157 = vmatpush1.msra.mxu0 %v99
    %158 = vmatprep.subr.mxu0 0.0
    %159 = vmatpush1.msra.mxu0 %v100
    %160 = vmatprep.subr.mxu0 0.0
    %161 = vmatpush1.msra.mxu0 %v101
    %162 = vmatprep.subr.mxu0 0.0
    %163 = vmatpush1.msra.mxu0 %v102
    %164 = vmatprep.subr.mxu0 0.0
    %165 = vmatpush1.msra.mxu0 0.0
    %166 = vmatprep.subr.mxu0 0.0
    %167 = vmatpush1.msra.mxu0 0.0
    %168 = vmatprep.subr.mxu0 0.0
    %169 = vmatpush1.msra.mxu0 0.0
    %170 = vmatprep.subr.mxu0 0.0
    %171 = vmatpush1.msra.mxu0 0.0
    %172 = vmatprep.subr.mxu0 0.0
    %173 = vmatpush1.msra.mxu0 0.0
    %174 = vmatprep.subr.mxu0 0.0
    %175 = vmatpush1.msra.mxu0 0.0
    %176 = vmatprep.subr.mxu0 0.0
    %177 = vmatpush1.msra.mxu0 0.0
    %178 = vmatprep.subr.mxu0 0.0
    %179 = vmatpush1.msra.mxu0 0.0
    %180 = vmatprep.subr.mxu0 0.0
    %181 = vmatpush1.msra.mxu0 0.0
    %182 = vmatprep.subr.mxu0 0.0
    %183 = vmatpush1.msra.mxu0 0.0
    %184 = vmatprep.subr.mxu0 0.0
    %185 = vmatpush1.msra.mxu0 0.0
    %186 = vmatprep.subr.mxu0 0.0
    %187 = vmatpush1.msra.mxu0 0.0
    %188 = vmatprep.subr.mxu0 0.0
    %189 = vmatpush1.msra.mxu0 0.0
    %190 = vmatprep.subr.mxu0 0.0
    %191 = vmatpush1.msra.mxu0 0.0
    %192 = vmatprep.subr.mxu0 0.0
    %193 = vmatpush1.msra.mxu0 0.0
    %194 = vmatprep.subr.mxu0 0.0
    %195 = vmatpush1.msra.mxu0 0.0
    %196 = vmatprep.subr.mxu0 0.0
    %197 = vmatpush1.msra.mxu0 0.0
    %198 = vmatprep.subr.mxu0 0.0
    %199 = vmatpush1.msra.mxu0 0.0
    %200 = vmatprep.subr.mxu0 0.0
    %201 = vmatpush1.msra.mxu0 0.0
    %202 = vmatprep.subr.mxu0 0.0
    %203 = vmatpush1.msra.mxu0 0.0
    %204 = vmatprep.subr.mxu0 0.0
    %205 = vmatpush1.msra.mxu0 0.0
    %206 = vmatprep.subr.mxu0 0.0
    %207 = vmatpush1.msra.mxu0 0.0
    %208 = vmatprep.subr.mxu0 0.0
    %209 = vmatpush1.msra.mxu0 0.0
    %210 = vmatprep.subr.mxu0 0.0
    %211 = vmatpush1.msra.mxu0 0.0
    %212 = vmatprep.subr.mxu0 0.0
    %213 = vmatpush1.msra.mxu0 0.0
    %214 = vmatprep.subr.mxu0 0.0
    %215 = vmatpush1.msra.mxu0 0.0
    %216 = vmatprep.subr.mxu0 0.0
    %217 = vmatpush1.msra.mxu0 0.0
    %218 = vmatprep.subr.mxu0 0.0
    %219 = vmatpush1.msra.mxu0 0.0
    %220 = vmatprep.mubr.f32.mxu0 0.0
    %221 = vmatmul.mubr.f32.gmra.mrb[0].mxu0 %v109
    %v222 = vpop.f32.mrb[0].mxu0
    %v223 = vadd.f32 %v106, %v222
    %v224 = vpop.f32.mrb[0].mxu0
    %225 = vmatprep.mubr.f32.mxu0 0.0
    %226 = vmatmul.mubr.f32.gmra.mrb[0].mxu0 %v112
    %v227 = vpop.f32.mrb[0].mxu0
    %v228 = vadd.f32 %v106, %v227
    %v229 = vpop.f32.mrb[0].mxu0
    %230 = vmatprep.mubr.f32.mxu0 0.0
    %231 = vmatmul.mubr.f32.gmra.mrb[0].mxu0 %v115
    %v232 = vpop.f32.mrb[0].mxu0
    %v233 = vadd.f32 %v106, %v232
    %v234 = vpop.f32.mrb[0].mxu0
    %235 = vmatprep.mubr.f32.mxu0 0.0
    %236 = vmatmul.mubr.f32.gmra.mrb[0].mxu0 %v118
    %v237 = vpop.f32.mrb[0].mxu0
    %v238 = vadd.f32 %v106, %v237
    %v239 = vpop.f32.mrb[0].mxu0
    %240 = vmatprep.mubr.f32.mxu0 0.0
    %241 = vmatmul.mubr.f32.gmra.mrb[0].mxu0 %v121
    %v242 = vpop.f32.mrb[0].mxu0
    %v243 = vadd.f32 %v106, %v242
    %v244 = vpop.f32.mrb[0].mxu0
    %245 = vmatprep.mubr.f32.mxu0 0.0
    %246 = vmatmul.mubr.f32.gmra.mrb[0].mxu0 %v124
    %v247 = vpop.f32.mrb[0].mxu0
    %v248 = vadd.f32 %v106, %v247
    %v249 = vpop.f32.mrb[0].mxu0
    %250 = vmatprep.mubr.f32.mxu0 0.0
    %251 = vmatmul.mubr.f32.gmra.mrb[0].mxu0 %v127
    %v252 = vpop.f32.mrb[0].mxu0
    %v253 = vadd.f32 %v106, %v252
    %v254 = vpop.f32.mrb[0].mxu0
    %255 = vmatprep.mubr.f32.mxu0 0.0
    %256 = vmatmul.mubr.f32.gmra.mrb[0].mxu0 %v130
    %v257 = vpop.f32.mrb[0].mxu0
    %v258 = vadd.f32 %v106, %v257
    %v259 = vpop.f32.mrb[0].mxu0
    %260 = vmatprep.mubr.f32.mxu0 0.0
    %261 = vmatmul.mubr.f32.gmra.mrb[0].mxu0 %v133
    %v262 = vpop.f32.mrb[0].mxu0
    %v263 = vadd.f32 %v106, %v262
    %v264 = vpop.f32.mrb[0].mxu0
    %265 = vmatprep.mubr.f32.mxu0 0.0
    %266 = vmatmul.mubr.f32.gmra.mrb[0].mxu0 %v136
    %v267 = vpop.f32.mrb[0].mxu0
    %v268 = vadd.f32 %v106, %v267
    %v269 = vpop.f32.mrb[0].mxu0
    %270 = vmatprep.mubr.f32.mxu0 0.0
    %271 = vmatmul.mubr.f32.gmra.mrb[0].mxu0 %v139
    %v272 = vpop.f32.mrb[0].mxu0
    %v273 = vadd.f32 %v106, %v272
    %v274 = vpop.f32.mrb[0].mxu0
    %275 = vmatprep.mubr.f32.mxu0 0.0
    %276 = vmatmul.mubr.f32.gmra.mrb[0].mxu0 %v142
    %v277 = vpop.f32.mrb[0].mxu0
    %v278 = vadd.f32 %v106, %v277
    %v279 = vpop.f32.mrb[0].mxu0
    %280 = vmatprep.mubr.f32.mxu0 0.0
    %281 = vmatmul.mubr.f32.gmra.mrb[0].mxu0 %v145
    %v282 = vpop.f32.mrb[0].mxu0
    %v283 = vadd.f32 %v106, %v282
    %v284 = vpop.f32.mrb[0].mxu0
    %285 = vmatprep.mubr.f32.mxu0 0.0
    %286 = vmatmul.mubr.f32.gmra.mrb[0].mxu0 %v148
    %v287 = vpop.f32.mrb[0].mxu0
    %v288 = vadd.f32 %v106, %v287
    %v289 = vpop.f32.mrb[0].mxu0
    %290 = vmatprep.mubr.f32.mxu0 0.0
    %291 = vmatmul.mubr.f32.gmra.mrb[0].mxu0 %v151
    %v292 = vpop.f32.mrb[0].mxu0
    %v293 = vadd.f32 %v106, %v292
    %v294 = vpop.f32.mrb[0].mxu0
    %295 = vmatprep.mubr.f32.mxu0 0.0
    %296 = vmatmul.mubr.f32.gmra.mrb[0].mxu0 %v154
    %v297 = vpop.f32.mrb[0].mxu0
    %v298 = vadd.f32 %v106, %v297
    %v299 = vpop.f32.mrb[0].mxu0
    %300 = vdwg.mxu0
    %v301 = vld [vmem:[%s3] sm:$0xff]
    %v302 = vld [vmem:[%s3 + $0x8] sm:$0xff]
    %v303 = vld [vmem:[%s3 + $0x10] sm:$0xff]
    %v304 = vld [vmem:[%s3 + $0x18] sm:$0xff]
    %v305 = vlaneseq
    %v306 = vshrl.u32 %v305, 7
    %v307 = vsub.s32 0, %v306
    %v308 = vrot.slane %v90, %v307
    %309 = vmatprep.subr.mxu0 0.0
    %310 = vmatpush1.msra.mxu0 %v301
    %311 = vmatprep.subr.mxu0 0.0
    %312 = vmatpush1.msra.mxu0 %v302
    %313 = vmatprep.subr.mxu0 0.0
    %314 = vmatpush1.msra.mxu0 %v303
    %315 = vmatprep.subr.mxu0 0.0
    %316 = vmatpush1.msra.mxu0 %v304
    %317 = vmatprep.subr.mxu0 0.0
    %318 = vmatpush1.msra.mxu0 0.0
    %319 = vmatprep.subr.mxu0 0.0
    %320 = vmatpush1.msra.mxu0 0.0
    %321 = vmatprep.subr.mxu0 0.0
    %322 = vmatpush1.msra.mxu0 0.0
    %323 = vmatprep.subr.mxu0 0.0
    %324 = vmatpush1.msra.mxu0 0.0
    %325 = vmatprep.subr.mxu0 0.0
    %326 = vmatpush1.msra.mxu0 0.0
    %327 = vmatprep.subr.mxu0 0.0
    %328 = vmatpush1.msra.mxu0 0.0
    %329 = vmatprep.subr.mxu0 0.0
    %330 = vmatpush1.msra.mxu0 0.0
    %331 = vmatprep.subr.mxu0 0.0
    %332 = vmatpush1.msra.mxu0 0.0
    %333 = vmatprep.subr.mxu0 0.0
    %334 = vmatpush1.msra.mxu0 0.0
    %335 = vmatprep.subr.mxu0 0.0
    %336 = vmatpush1.msra.mxu0 0.0
    %337 = vmatprep.subr.mxu0 0.0
    %338 = vmatpush1.msra.mxu0 0.0
    %339 = vmatprep.subr.mxu0 0.0
    %340 = vmatpush1.msra.mxu0 0.0
    %341 = vmatprep.subr.mxu0 0.0
    %342 = vmatpush1.msra.mxu0 0.0
    %343 = vmatprep.subr.mxu0 0.0
    %344 = vmatpush1.msra.mxu0 0.0
    %345 = vmatprep.subr.mxu0 0.0
    %346 = vmatpush1.msra.mxu0 0.0
    %347 = vmatprep.subr.mxu0 0.0
    %348 = vmatpush1.msra.mxu0 0.0
    %349 = vmatprep.subr.mxu0 0.0
    %350 = vmatpush1.msra.mxu0 0.0
    %351 = vmatprep.subr.mxu0 0.0
    %352 = vmatpush1.msra.mxu0 0.0
    %353 = vmatprep.subr.mxu0 0.0
    %354 = vmatpush1.msra.mxu0 0.0
    %355 = vmatprep.subr.mxu0 0.0
    %356 = vmatpush1.msra.mxu0 0.0
    %357 = vmatprep.subr.mxu0 0.0
    %358 = vmatpush1.msra.mxu0 0.0
    %359 = vmatprep.subr.mxu0 0.0
    %360 = vmatpush1.msra.mxu0 0.0
    %361 = vmatprep.subr.mxu0 0.0
    %362 = vmatpush1.msra.mxu0 0.0
    %363 = vmatprep.subr.mxu0 0.0
    %364 = vmatpush1.msra.mxu0 0.0
    %365 = vmatprep.subr.mxu0 0.0
    %366 = vmatpush1.msra.mxu0 0.0
    %367 = vmatprep.subr.mxu0 0.0
    %368 = vmatpush1.msra.mxu0 0.0
    %369 = vmatprep.subr.mxu0 0.0
    %370 = vmatpush1.msra.mxu0 0.0
    %371 = vmatprep.subr.mxu0 0.0
    %372 = vmatpush1.msra.mxu0 0.0
    %373 = vmatprep.mubr.f32.mxu0 0.0
    %374 = vmatmul.mubr.f32.gmra.mrb[0].mxu0 %v109
    %v375 = vpop.f32.mrb[0].mxu0
    %v376 = vadd.f32 %v308, %v375
    %v377 = vpop.f32.mrb[0].mxu0
    %378 = vmatprep.mubr.f32.mxu0 0.0
    %379 = vmatmul.mubr.f32.gmra.mrb[0].mxu0 %v112
    %v380 = vpop.f32.mrb[0].mxu0
    %v381 = vadd.f32 %v308, %v380
    %v382 = vpop.f32.mrb[0].mxu0
    %383 = vmatprep.mubr.f32.mxu0 0.0
    %384 = vmatmul.mubr.f32.gmra.mrb[0].mxu0 %v115
    %v385 = vpop.f32.mrb[0].mxu0
    %v386 = vadd.f32 %v308, %v385
    %v387 = vpop.f32.mrb[0].mxu0
    %388 = vmatprep.mubr.f32.mxu0 0.0
    %389 = vmatmul.mubr.f32.gmra.mrb[0].mxu0 %v118
    %v390 = vpop.f32.mrb[0].mxu0
    %v391 = vadd.f32 %v308, %v390
    %v392 = vpop.f32.mrb[0].mxu0
    %393 = vmatprep.mubr.f32.mxu0 0.0
    %394 = vmatmul.mubr.f32.gmra.mrb[0].mxu0 %v121
    %v395 = vpop.f32.mrb[0].mxu0
    %v396 = vadd.f32 %v308, %v395
    %v397 = vpop.f32.mrb[0].mxu0
    %398 = vmatprep.mubr.f32.mxu0 0.0
    %399 = vmatmul.mubr.f32.gmra.mrb[0].mxu0 %v124
    %v400 = vpop.f32.mrb[0].mxu0
    %v401 = vadd.f32 %v308, %v400
    %v402 = vpop.f32.mrb[0].mxu0
    %403 = vmatprep.mubr.f32.mxu0 0.0
    %404 = vmatmul.mubr.f32.gmra.mrb[0].mxu0 %v127
    %v405 = vpop.f32.mrb[0].mxu0
    %v406 = vadd.f32 %v308, %v405
    %v407 = vpop.f32.mrb[0].mxu0
    %408 = vmatprep.mubr.f32.mxu0 0.0
    %409 = vmatmul.mubr.f32.gmra.mrb[0].mxu0 %v130
    %v410 = vpop.f32.mrb[0].mxu0
    %v411 = vadd.f32 %v308, %v410
    %v412 = vpop.f32.mrb[0].mxu0
    %413 = vmatprep.mubr.f32.mxu0 0.0
    %414 = vmatmul.mubr.f32.gmra.mrb[0].mxu0 %v133
    %v415 = vpop.f32.mrb[0].mxu0
    %v416 = vadd.f32 %v308, %v415
    %v417 = vpop.f32.mrb[0].mxu0
    %418 = vmatprep.mubr.f32.mxu0 0.0
    %419 = vmatmul.mubr.f32.gmra.mrb[0].mxu0 %v136
    %v420 = vpop.f32.mrb[0].mxu0
    %v421 = vadd.f32 %v308, %v420
    %v422 = vpop.f32.mrb[0].mxu0
    %423 = vmatprep.mubr.f32.mxu0 0.0
    %424 = vmatmul.mubr.f32.gmra.mrb[0].mxu0 %v139
    %v425 = vpop.f32.mrb[0].mxu0
    %v426 = vadd.f32 %v308, %v425
    %v427 = vpop.f32.mrb[0].mxu0
    %428 = vmatprep.mubr.f32.mxu0 0.0
    %429 = vmatmul.mubr.f32.gmra.mrb[0].mxu0 %v142
    %v430 = vpop.f32.mrb[0].mxu0
    %v431 = vadd.f32 %v308, %v430
    %v432 = vpop.f32.mrb[0].mxu0
    %433 = vmatprep.mubr.f32.mxu0 0.0
    %434 = vmatmul.mubr.f32.gmra.mrb[0].mxu0 %v145
    %v435 = vpop.f32.mrb[0].mxu0
    %v436 = vadd.f32 %v308, %v435
    %v437 = vpop.f32.mrb[0].mxu0
    %438 = vmatprep.mubr.f32.mxu0 0.0
    %439 = vmatmul.mubr.f32.gmra.mrb[0].mxu0 %v148
    %v440 = vpop.f32.mrb[0].mxu0
    %v441 = vadd.f32 %v308, %v440
    %v442 = vpop.f32.mrb[0].mxu0
    %443 = vmatprep.mubr.f32.mxu0 0.0
    %444 = vmatmul.mubr.f32.gmra.mrb[0].mxu0 %v151
    %v445 = vpop.f32.mrb[0].mxu0
    %v446 = vadd.f32 %v308, %v445
    %v447 = vpop.f32.mrb[0].mxu0
    %448 = vmatprep.mubr.f32.mxu0 0.0
    %449 = vmatmul.mubr.f32.gmra.mrb[0].mxu0 %v154
    %v450 = vpop.f32.mrb[0].mxu0
    %v451 = vadd.f32 %v308, %v450
    %v452 = vpop.f32.mrb[0].mxu0
    %453 = vdwg.mxu0
    %v454 = vld [vmem:[#allocation2] sm:$0xff]
    %v455 = vld [vmem:[#allocation2 + $0x8] sm:$0xff]
    %v456 = vld [vmem:[#allocation2 + $0x10] sm:$0xff]
    %v457 = vld [vmem:[#allocation2 + $0x18] sm:$0xff]
    %v458 = vlaneseq
    %v459 = vshrl.u32 %v458, 7
    %v460 = vsub.s32 0, %v459
    %v461 = vrot.slane %v91, %v460
    %462 = vmatprep.subr.mxu0 0.0
    %463 = vmatpush1.msra.mxu0 %v454
    %464 = vmatprep.subr.mxu0 0.0
    %465 = vmatpush1.msra.mxu0 %v455
    %466 = vmatprep.subr.mxu0 0.0
    %467 = vmatpush1.msra.mxu0 %v456
    %468 = vmatprep.subr.mxu0 0.0
    %469 = vmatpush1.msra.mxu0 %v457
    %470 = vmatprep.subr.mxu0 0.0
    %471 = vmatpush1.msra.mxu0 0.0
    %472 = vmatprep.subr.mxu0 0.0
    %473 = vmatpush1.msra.mxu0 0.0
    %474 = vmatprep.subr.mxu0 0.0
    %475 = vmatpush1.msra.mxu0 0.0
    %476 = vmatprep.subr.mxu0 0.0
    %477 = vmatpush1.msra.mxu0 0.0
    %478 = vmatprep.subr.mxu0 0.0
    %479 = vmatpush1.msra.mxu0 0.0
    %480 = vmatprep.subr.mxu0 0.0
    %481 = vmatpush1.msra.mxu0 0.0
    %482 = vmatprep.subr.mxu0 0.0
    %483 = vmatpush1.msra.mxu0 0.0
    %484 = vmatprep.subr.mxu0 0.0
    %485 = vmatpush1.msra.mxu0 0.0
    %486 = vmatprep.subr.mxu0 0.0
    %487 = vmatpush1.msra.mxu0 0.0
    %488 = vmatprep.subr.mxu0 0.0
    %489 = vmatpush1.msra.mxu0 0.0
    %490 = vmatprep.subr.mxu0 0.0
    %491 = vmatpush1.msra.mxu0 0.0
    %492 = vmatprep.subr.mxu0 0.0
    %493 = vmatpush1.msra.mxu0 0.0
    %494 = vmatprep.subr.mxu0 0.0
    %495 = vmatpush1.msra.mxu0 0.0
    %496 = vmatprep.subr.mxu0 0.0
    %497 = vmatpush1.msra.mxu0 0.0
    %498 = vmatprep.subr.mxu0 0.0
    %499 = vmatpush1.msra.mxu0 0.0
    %500 = vmatprep.subr.mxu0 0.0
    %501 = vmatpush1.msra.mxu0 0.0
    %502 = vmatprep.subr.mxu0 0.0
    %503 = vmatpush1.msra.mxu0 0.0
    %504 = vmatprep.subr.mxu0 0.0
    %505 = vmatpush1.msra.mxu0 0.0
    %506 = vmatprep.subr.mxu0 0.0
    %507 = vmatpush1.msra.mxu0 0.0
    %508 = vmatprep.subr.mxu0 0.0
    %509 = vmatpush1.msra.mxu0 0.0
    %510 = vmatprep.subr.mxu0 0.0
    %511 = vmatpush1.msra.mxu0 0.0
    %512 = vmatprep.subr.mxu0 0.0
    %513 = vmatpush1.msra.mxu0 0.0
    %514 = vmatprep.subr.mxu0 0.0
    %515 = vmatpush1.msra.mxu0 0.0
    %516 = vmatprep.subr.mxu0 0.0
    %517 = vmatpush1.msra.mxu0 0.0
    %518 = vmatprep.subr.mxu0 0.0
    %519 = vmatpush1.msra.mxu0 0.0
    %520 = vmatprep.subr.mxu0 0.0
    %521 = vmatpush1.msra.mxu0 0.0
    %522 = vmatprep.subr.mxu0 0.0
    %523 = vmatpush1.msra.mxu0 0.0
    %524 = vmatprep.subr.mxu0 0.0
    %525 = vmatpush1.msra.mxu0 0.0
    %526 = vmatprep.mubr.f32.mxu0 0.0
    %527 = vmatmul.mubr.f32.gmra.mrb[0].mxu0 %v109
    %v528 = vpop.f32.mrb[0].mxu0
    %v529 = vadd.f32 %v461, %v528
    %v530 = vpop.f32.mrb[0].mxu0
    %531 = vmatprep.mubr.f32.mxu0 0.0
    %532 = vmatmul.mubr.f32.gmra.mrb[0].mxu0 %v112
    %v533 = vpop.f32.mrb[0].mxu0
    %v534 = vadd.f32 %v461, %v533
    %v535 = vpop.f32.mrb[0].mxu0
    %536 = vmatprep.mubr.f32.mxu0 0.0
    %537 = vmatmul.mubr.f32.gmra.mrb[0].mxu0 %v115
    %v538 = vpop.f32.mrb[0].mxu0
    %v539 = vadd.f32 %v461, %v538
    %v540 = vpop.f32.mrb[0].mxu0
    %541 = vmatprep.mubr.f32.mxu0 0.0
    %542 = vmatmul.mubr.f32.gmra.mrb[0].mxu0 %v118
    %v543 = vpop.f32.mrb[0].mxu0
    %v544 = vadd.f32 %v461, %v543
    %v545 = vpop.f32.mrb[0].mxu0
    %546 = vmatprep.mubr.f32.mxu0 0.0
    %547 = vmatmul.mubr.f32.gmra.mrb[0].mxu0 %v121
    %v548 = vpop.f32.mrb[0].mxu0
    %v549 = vadd.f32 %v461, %v548
    %v550 = vpop.f32.mrb[0].mxu0
    %551 = vmatprep.mubr.f32.mxu0 0.0
    %552 = vmatmul.mubr.f32.gmra.mrb[0].mxu0 %v124
    %v553 = vpop.f32.mrb[0].mxu0
    %v554 = vadd.f32 %v461, %v553
    %v555 = vpop.f32.mrb[0].mxu0
    %556 = vmatprep.mubr.f32.mxu0 0.0
    %557 = vmatmul.mubr.f32.gmra.mrb[0].mxu0 %v127
    %v558 = vpop.f32.mrb[0].mxu0
    %v559 = vadd.f32 %v461, %v558
    %v560 = vpop.f32.mrb[0].mxu0
    %561 = vmatprep.mubr.f32.mxu0 0.0
    %562 = vmatmul.mubr.f32.gmra.mrb[0].mxu0 %v130
    %v563 = vpop.f32.mrb[0].mxu0
    %v564 = vadd.f32 %v461, %v563
    %v565 = vpop.f32.mrb[0].mxu0
    %566 = vmatprep.mubr.f32.mxu0 0.0
    %567 = vmatmul.mubr.f32.gmra.mrb[0].mxu0 %v133
    %v568 = vpop.f32.mrb[0].mxu0
    %v569 = vadd.f32 %v461, %v568
    %v570 = vpop.f32.mrb[0].mxu0
    %571 = vmatprep.mubr.f32.mxu0 0.0
    %572 = vmatmul.mubr.f32.gmra.mrb[0].mxu0 %v136
    %v573 = vpop.f32.mrb[0].mxu0
    %v574 = vadd.f32 %v461, %v573
    %v575 = vpop.f32.mrb[0].mxu0
    %576 = vmatprep.mubr.f32.mxu0 0.0
    %577 = vmatmul.mubr.f32.gmra.mrb[0].mxu0 %v139
    %v578 = vpop.f32.mrb[0].mxu0
    %v579 = vadd.f32 %v461, %v578
    %v580 = vpop.f32.mrb[0].mxu0
    %581 = vmatprep.mubr.f32.mxu0 0.0
    %582 = vmatmul.mubr.f32.gmra.mrb[0].mxu0 %v142
    %v583 = vpop.f32.mrb[0].mxu0
    %v584 = vadd.f32 %v461, %v583
    %v585 = vpop.f32.mrb[0].mxu0
    %586 = vmatprep.mubr.f32.mxu0 0.0
    %587 = vmatmul.mubr.f32.gmra.mrb[0].mxu0 %v145
    %v588 = vpop.f32.mrb[0].mxu0
    %v589 = vadd.f32 %v461, %v588
    %v590 = vpop.f32.mrb[0].mxu0
    %591 = vmatprep.mubr.f32.mxu0 0.0
    %592 = vmatmul.mubr.f32.gmra.mrb[0].mxu0 %v148
    %v593 = vpop.f32.mrb[0].mxu0
    %v594 = vadd.f32 %v461, %v593
    %v595 = vpop.f32.mrb[0].mxu0
    %596 = vmatprep.mubr.f32.mxu0 0.0
    %597 = vmatmul.mubr.f32.gmra.mrb[0].mxu0 %v151
    %v598 = vpop.f32.mrb[0].mxu0
    %v599 = vadd.f32 %v461, %v598
    %v600 = vpop.f32.mrb[0].mxu0
    %601 = vmatprep.mubr.f32.mxu0 0.0
    %602 = vmatmul.mubr.f32.gmra.mrb[0].mxu0 %v154
    %v603 = vpop.f32.mrb[0].mxu0
    %v604 = vadd.f32 %v461, %v603
    %v605 = vpop.f32.mrb[0].mxu0
    %606 = vdwg.mxu0
    %v607 = vld [vmem:[%s1] sm:$0xff]
    %v608 = vld [vmem:[%s1 + $0x8] sm:$0xff]
    %v609 = vld [vmem:[%s1 + $0x10] sm:$0xff]
    %v610 = vld [vmem:[%s1 + $0x18] sm:$0xff]
    %v611 = vld [vmem:[%s1 + $0x20] sm:$0xff]
    %v612 = vld [vmem:[%s1 + $0x28] sm:$0xff]
    %v613 = vld [vmem:[%s1 + $0x30] sm:$0xff]
    %v614 = vld [vmem:[%s1 + $0x38] sm:$0xff]
    %v615 = vld [vmem:[%s1 + $0x40] sm:$0xff]
    %v616 = vld [vmem:[%s1 + $0x48] sm:$0xff]
    %v617 = vld [vmem:[%s1 + $0x50] sm:$0xff]
    %v618 = vld [vmem:[%s1 + $0x58] sm:$0xff]
    %v619 = vld [vmem:[%s1 + $0x60] sm:$0xff]
    %v620 = vld [vmem:[%s1 + $0x68] sm:$0xff]
    %v621 = vld [vmem:[%s1 + $0x70] sm:$0xff]
    %v622 = vld [vmem:[%s1 + $0x78] sm:$0xff]
    %v624 = vsel %vm107, %v223, 0
    %v627 = vsel %vm107, %v228, 0
    %v630 = vsel %vm107, %v233, 0
    %v633 = vsel %vm107, %v238, 0
    %v636 = vsel %vm107, %v243, 0
    %v639 = vsel %vm107, %v248, 0
    %v642 = vsel %vm107, %v253, 0
    %v645 = vsel %vm107, %v258, 0
    %v648 = vsel %vm107, %v263, 0
    %v651 = vsel %vm107, %v268, 0
    %v654 = vsel %vm107, %v273, 0
    %v657 = vsel %vm107, %v278, 0
    %v660 = vsel %vm107, %v283, 0
    %v663 = vsel %vm107, %v288, 0
    %v666 = vsel %vm107, %v293, 0
    %v669 = vsel %vm107, %v298, 0
    %v672 = vsel %vm107, %v376, 0
    %v675 = vsel %vm107, %v381, 0
    %v678 = vsel %vm107, %v386, 0
    %v681 = vsel %vm107, %v391, 0
    %v684 = vsel %vm107, %v396, 0
    %v687 = vsel %vm107, %v401, 0
    %v690 = vsel %vm107, %v406, 0
    %v693 = vsel %vm107, %v411, 0
    %v696 = vsel %vm107, %v416, 0
    %v699 = vsel %vm107, %v421, 0
    %v702 = vsel %vm107, %v426, 0
    %v705 = vsel %vm107, %v431, 0
    %v708 = vsel %vm107, %v436, 0
    %v711 = vsel %vm107, %v441, 0
    %v714 = vsel %vm107, %v446, 0
    %v717 = vsel %vm107, %v451, 0
    %719 = vmatprep.subr.mxu0 0.0
    %720 = vmatpush1.xpose.msra.mxu0 %v672
    %721 = vmatprep.subr.mxu0 0.0
    %722 = vmatpush1.xpose.msra.mxu0 %v675
    %723 = vmatprep.subr.mxu0 0.0
    %724 = vmatpush1.xpose.msra.mxu0 %v678
    %725 = vmatprep.subr.mxu0 0.0
    %726 = vmatpush1.xpose.msra.mxu0 %v681
    %727 = vmatprep.subr.mxu0 0.0
    %728 = vmatpush1.xpose.msra.mxu0 %v684
    %729 = vmatprep.subr.mxu0 0.0
    %730 = vmatpush1.xpose.msra.mxu0 %v687
    %731 = vmatprep.subr.mxu0 0.0
    %732 = vmatpush1.xpose.msra.mxu0 %v690
    %733 = vmatprep.subr.mxu0 0.0
    %734 = vmatpush1.xpose.msra.mxu0 %v693
    %735 = vmatprep.subr.mxu0 0.0
    %736 = vmatpush1.xpose.msra.mxu0 %v696
    %737 = vmatprep.subr.mxu0 0.0
    %738 = vmatpush1.xpose.msra.mxu0 %v699
    %739 = vmatprep.subr.mxu0 0.0
    %740 = vmatpush1.xpose.msra.mxu0 %v702
    %741 = vmatprep.subr.mxu0 0.0
    %742 = vmatpush1.xpose.msra.mxu0 %v705
    %743 = vmatprep.subr.mxu0 0.0
    %744 = vmatpush1.xpose.msra.mxu0 %v708
    %745 = vmatprep.subr.mxu0 0.0
    %746 = vmatpush1.xpose.msra.mxu0 %v711
    %747 = vmatprep.subr.mxu0 0.0
    %748 = vmatpush1.xpose.msra.mxu0 %v714
    %749 = vmatprep.subr.mxu0 0.0
    %750 = vmatpush1.xpose.msra.mxu0 %v717
    %751 = vmatprep.subr.mxu0 0.0
    %752 = vmatpush1.xpose.msra.mxu0 0.0
    %753 = vmatprep.subr.mxu0 0.0
    %754 = vmatpush1.xpose.msra.mxu0 0.0
    %755 = vmatprep.subr.mxu0 0.0
    %756 = vmatpush1.xpose.msra.mxu0 0.0
    %757 = vmatprep.subr.mxu0 0.0
    %758 = vmatpush1.xpose.msra.mxu0 0.0
    %759 = vmatprep.subr.mxu0 0.0
    %760 = vmatpush1.xpose.msra.mxu0 0.0
    %761 = vmatprep.subr.mxu0 0.0
    %762 = vmatpush1.xpose.msra.mxu0 0.0
    %763 = vmatprep.subr.mxu0 0.0
    %764 = vmatpush1.xpose.msra.mxu0 0.0
    %765 = vmatprep.subr.mxu0 0.0
    %766 = vmatpush1.xpose.msra.mxu0 0.0
    %767 = vmatprep.subr.mxu0 0.0
    %768 = vmatpush1.xpose.msra.mxu0 0.0
    %769 = vmatprep.subr.mxu0 0.0
    %770 = vmatpush1.xpose.msra.mxu0 0.0
    %771 = vmatprep.subr.mxu0 0.0
    %772 = vmatpush1.xpose.msra.mxu0 0.0
    %773 = vmatprep.subr.mxu0 0.0
    %774 = vmatpush1.xpose.msra.mxu0 0.0
    %775 = vmatprep.subr.mxu0 0.0
    %776 = vmatpush1.xpose.msra.mxu0 0.0
    %777 = vmatprep.subr.mxu0 0.0
    %778 = vmatpush1.xpose.msra.mxu0 0.0
    %779 = vmatprep.subr.mxu0 0.0
    %780 = vmatpush1.xpose.msra.mxu0 0.0
    %781 = vmatprep.subr.mxu0 0.0
    %782 = vmatpush1.xpose.msra.mxu0 0.0
    %783 = vmatprep.mubr.f32.mxu0 0.0
    %784 = vmatmul.mubr.f32.gmra.mrb[0].mxu0 %v624
    %v785 = vpop.f32.mrb[0].mxu0
    %v786 = vadd.f32 %v607, %v785
    %v787 = vpop.f32.mrb[0].mxu0
    %788 = vmatprep.mubr.f32.mxu0 0.0
    %789 = vmatmul.mubr.f32.gmra.mrb[0].mxu0 %v627
    %v790 = vpop.f32.mrb[0].mxu0
    %v791 = vadd.f32 %v608, %v790
    %v792 = vpop.f32.mrb[0].mxu0
    %793 = vmatprep.mubr.f32.mxu0 0.0
    %794 = vmatmul.mubr.f32.gmra.mrb[0].mxu0 %v630
    %v795 = vpop.f32.mrb[0].mxu0
    %v796 = vadd.f32 %v609, %v795
    %v797 = vpop.f32.mrb[0].mxu0
    %798 = vmatprep.mubr.f32.mxu0 0.0
    %799 = vmatmul.mubr.f32.gmra.mrb[0].mxu0 %v633
    %v800 = vpop.f32.mrb[0].mxu0
    %v801 = vadd.f32 %v610, %v800
    %v802 = vpop.f32.mrb[0].mxu0
    %803 = vmatprep.mubr.f32.mxu0 0.0
    %804 = vmatmul.mubr.f32.gmra.mrb[0].mxu0 %v636
    %v805 = vpop.f32.mrb[0].mxu0
    %v806 = vadd.f32 %v611, %v805
    %v807 = vpop.f32.mrb[0].mxu0
    %808 = vmatprep.mubr.f32.mxu0 0.0
    %809 = vmatmul.mubr.f32.gmra.mrb[0].mxu0 %v639
    %v810 = vpop.f32.mrb[0].mxu0
    %v811 = vadd.f32 %v612, %v810
    %v812 = vpop.f32.mrb[0].mxu0
    %813 = vmatprep.mubr.f32.mxu0 0.0
    %814 = vmatmul.mubr.f32.gmra.mrb[0].mxu0 %v642
    %v815 = vpop.f32.mrb[0].mxu0
    %v816 = vadd.f32 %v613, %v815
    %v817 = vpop.f32.mrb[0].mxu0
    %818 = vmatprep.mubr.f32.mxu0 0.0
    %819 = vmatmul.mubr.f32.gmra.mrb[0].mxu0 %v645
    %v820 = vpop.f32.mrb[0].mxu0
    %v821 = vadd.f32 %v614, %v820
    %v822 = vpop.f32.mrb[0].mxu0
    %823 = vmatprep.mubr.f32.mxu0 0.0
    %824 = vmatmul.mubr.f32.gmra.mrb[0].mxu0 %v648
    %v825 = vpop.f32.mrb[0].mxu0
    %v826 = vadd.f32 %v615, %v825
    %v827 = vpop.f32.mrb[0].mxu0
    %828 = vmatprep.mubr.f32.mxu0 0.0
    %829 = vmatmul.mubr.f32.gmra.mrb[0].mxu0 %v651
    %v830 = vpop.f32.mrb[0].mxu0
    %v831 = vadd.f32 %v616, %v830
    %v832 = vpop.f32.mrb[0].mxu0
    %833 = vmatprep.mubr.f32.mxu0 0.0
    %834 = vmatmul.mubr.f32.gmra.mrb[0].mxu0 %v654
    %v835 = vpop.f32.mrb[0].mxu0
    %v836 = vadd.f32 %v617, %v835
    %v837 = vpop.f32.mrb[0].mxu0
    %838 = vmatprep.mubr.f32.mxu0 0.0
    %839 = vmatmul.mubr.f32.gmra.mrb[0].mxu0 %v657
    %v840 = vpop.f32.mrb[0].mxu0
    %v841 = vadd.f32 %v618, %v840
    %v842 = vpop.f32.mrb[0].mxu0
    %843 = vmatprep.mubr.f32.mxu0 0.0
    %844 = vmatmul.mubr.f32.gmra.mrb[0].mxu0 %v660
    %v845 = vpop.f32.mrb[0].mxu0
    %v846 = vadd.f32 %v619, %v845
    %v847 = vpop.f32.mrb[0].mxu0
    %848 = vmatprep.mubr.f32.mxu0 0.0
    %849 = vmatmul.mubr.f32.gmra.mrb[0].mxu0 %v663
    %v850 = vpop.f32.mrb[0].mxu0
    %v851 = vadd.f32 %v620, %v850
    %v852 = vpop.f32.mrb[0].mxu0
    %853 = vmatprep.mubr.f32.mxu0 0.0
    %854 = vmatmul.mubr.f32.gmra.mrb[0].mxu0 %v666
    %v855 = vpop.f32.mrb[0].mxu0
    %v856 = vadd.f32 %v621, %v855
    %v857 = vpop.f32.mrb[0].mxu0
    %858 = vmatprep.mubr.f32.mxu0 0.0
    %859 = vmatmul.mubr.f32.gmra.mrb[0].mxu0 %v669
    %v860 = vpop.f32.mrb[0].mxu0
    %v861 = vadd.f32 %v622, %v860
    %v862 = vpop.f32.mrb[0].mxu0
    %863 = vdwg.mxu0
    %864 = vmax.xlane.f32.xlu0 %v786
    %v865 = vpop.xlane.xlu0 %864
    %866 = vmax.xlane.f32.xlu0 %v791
    %v867 = vpop.xlane.xlu0 %866
    %868 = vmax.xlane.f32.xlu0 %v796
    %v869 = vpop.xlane.xlu0 %868
    %870 = vmax.xlane.f32.xlu0 %v801
    %v871 = vpop.xlane.xlu0 %870
    %872 = vmax.xlane.f32.xlu0 %v806
    %v873 = vpop.xlane.xlu0 %872
    %874 = vmax.xlane.f32.xlu0 %v811
    %v875 = vpop.xlane.xlu0 %874
    %876 = vmax.xlane.f32.xlu0 %v816
    %v877 = vpop.xlane.xlu0 %876
    %878 = vmax.xlane.f32.xlu0 %v821
    %v879 = vpop.xlane.xlu0 %878
    %880 = vmax.xlane.f32.xlu0 %v826
    %v881 = vpop.xlane.xlu0 %880
    %882 = vmax.xlane.f32.xlu0 %v831
    %v883 = vpop.xlane.xlu0 %882
    %884 = vmax.xlane.f32.xlu0 %v836
    %v885 = vpop.xlane.xlu0 %884
    %886 = vmax.xlane.f32.xlu0 %v841
    %v887 = vpop.xlane.xlu0 %886
    %888 = vmax.xlane.f32.xlu0 %v846
    %v889 = vpop.xlane.xlu0 %888
    %890 = vmax.xlane.f32.xlu0 %v851
    %v891 = vpop.xlane.xlu0 %890
    %892 = vmax.xlane.f32.xlu0 %v856
    %v893 = vpop.xlane.xlu0 %892
    %894 = vmax.xlane.f32.xlu0 %v861
    %v895 = vpop.xlane.xlu0 %894
    %v896 = vsub.f32 %v786, %v865
    %v897 = vsub.f32 %v791, %v867
    %v898 = vsub.f32 %v796, %v869
    %v899 = vsub.f32 %v801, %v871
    %v900 = vsub.f32 %v806, %v873
    %v901 = vsub.f32 %v811, %v875
    %v902 = vsub.f32 %v816, %v877
    %v903 = vsub.f32 %v821, %v879
    %v904 = vsub.f32 %v826, %v881
    %v905 = vsub.f32 %v831, %v883
    %v906 = vsub.f32 %v836, %v885
    %v907 = vsub.f32 %v841, %v887
    %v908 = vsub.f32 %v846, %v889
    %v909 = vsub.f32 %v851, %v891
    %v910 = vsub.f32 %v856, %v893
    %v911 = vsub.f32 %v861, %v895
    %v912 = vmul.f32 %v896, 1.442695
    %v913 = vpow.pop %v912
    %v914 = vmul.f32 %v897, 1.442695
    %v915 = vpow.pop %v914
    %v916 = vmul.f32 %v898, 1.442695
    %v917 = vpow.pop %v916
    %v918 = vmul.f32 %v899, 1.442695
    %v919 = vpow.pop %v918
    %v920 = vmul.f32 %v900, 1.442695
    %v921 = vpow.pop %v920
    %v922 = vmul.f32 %v901, 1.442695
    %v923 = vpow.pop %v922
    %v924 = vmul.f32 %v902, 1.442695
    %v925 = vpow.pop %v924
    %v926 = vmul.f32 %v903, 1.442695
    %v927 = vpow.pop %v926
    %v928 = vmul.f32 %v904, 1.442695
    %v929 = vpow.pop %v928
    %v930 = vmul.f32 %v905, 1.442695
    %v931 = vpow.pop %v930
    %v932 = vmul.f32 %v906, 1.442695
    %v933 = vpow.pop %v932
    %v934 = vmul.f32 %v907, 1.442695
    %v935 = vpow.pop %v934
    %v936 = vmul.f32 %v908, 1.442695
    %v937 = vpow.pop %v936
    %v938 = vmul.f32 %v909, 1.442695
    %v939 = vpow.pop %v938
    %v940 = vmul.f32 %v910, 1.442695
    %v941 = vpow.pop %v940
    %v942 = vmul.f32 %v911, 1.442695
    %v943 = vpow.pop %v942
    %944 = vadd.xlane.f32.xlu0 %v913
    %v945 = vpop.xlane.xlu0 %944
    %946 = vadd.xlane.f32.xlu0 %v915
    %v947 = vpop.xlane.xlu0 %946
    %948 = vadd.xlane.f32.xlu0 %v917
    %v949 = vpop.xlane.xlu0 %948
    %950 = vadd.xlane.f32.xlu0 %v919
    %v951 = vpop.xlane.xlu0 %950
    %952 = vadd.xlane.f32.xlu0 %v921
    %v953 = vpop.xlane.xlu0 %952
    %954 = vadd.xlane.f32.xlu0 %v923
    %v955 = vpop.xlane.xlu0 %954
    %956 = vadd.xlane.f32.xlu0 %v925
    %v957 = vpop.xlane.xlu0 %956
    %958 = vadd.xlane.f32.xlu0 %v927
    %v959 = vpop.xlane.xlu0 %958
    %960 = vadd.xlane.f32.xlu0 %v929
    %v961 = vpop.xlane.xlu0 %960
    %962 = vadd.xlane.f32.xlu0 %v931
    %v963 = vpop.xlane.xlu0 %962
    %964 = vadd.xlane.f32.xlu0 %v933
    %v965 = vpop.xlane.xlu0 %964
    %966 = vadd.xlane.f32.xlu0 %v935
    %v967 = vpop.xlane.xlu0 %966
    %968 = vadd.xlane.f32.xlu0 %v937
    %v969 = vpop.xlane.xlu0 %968
    %970 = vadd.xlane.f32.xlu0 %v939
    %v971 = vpop.xlane.xlu0 %970
    %972 = vadd.xlane.f32.xlu0 %v941
    %v973 = vpop.xlane.xlu0 %972
    %974 = vadd.xlane.f32.xlu0 %v943
    %v975 = vpop.xlane.xlu0 %974
    %v976 = vrcp.pop %v945
    %v977 = vrcp.pop %v947
    %v978 = vrcp.pop %v949
    %v979 = vrcp.pop %v951
    %v980 = vrcp.pop %v953
    %v981 = vrcp.pop %v955
    %v982 = vrcp.pop %v957
    %v983 = vrcp.pop %v959
    %v984 = vrcp.pop %v961
    %v985 = vrcp.pop %v963
    %v986 = vrcp.pop %v965
    %v987 = vrcp.pop %v967
    %v988 = vrcp.pop %v969
    %v989 = vrcp.pop %v971
    %v990 = vrcp.pop %v973
    %v991 = vrcp.pop %v975
    %v992 = vmul.f32 %v913, %v976
    %v993 = vmul.f32 %v915, %v977
    %v994 = vmul.f32 %v917, %v978
    %v995 = vmul.f32 %v919, %v979
    %v996 = vmul.f32 %v921, %v980
    %v997 = vmul.f32 %v923, %v981
    %v998 = vmul.f32 %v925, %v982
    %v999 = vmul.f32 %v927, %v983
    %v1000 = vmul.f32 %v929, %v984
    %v1001 = vmul.f32 %v931, %v985
    %v1002 = vmul.f32 %v933, %v986
    %v1003 = vmul.f32 %v935, %v987
    %v1004 = vmul.f32 %v937, %v988
    %v1005 = vmul.f32 %v939, %v989
    %v1006 = vmul.f32 %v941, %v990
    %v1007 = vmul.f32 %v943, %v991
    %1008 = vmatprep.subr.mxu0 0.0
    %1009 = vmatpush1.msra.mxu0 %v529
    %1010 = vmatprep.subr.mxu0 0.0
    %1011 = vmatpush1.msra.mxu0 %v534
    %1012 = vmatprep.subr.mxu0 0.0
    %1013 = vmatpush1.msra.mxu0 %v539
    %1014 = vmatprep.subr.mxu0 0.0
    %1015 = vmatpush1.msra.mxu0 %v544
    %1016 = vmatprep.subr.mxu0 0.0
    %1017 = vmatpush1.msra.mxu0 %v549
    %1018 = vmatprep.subr.mxu0 0.0
    %1019 = vmatpush1.msra.mxu0 %v554
    %1020 = vmatprep.subr.mxu0 0.0
    %1021 = vmatpush1.msra.mxu0 %v559
    %1022 = vmatprep.subr.mxu0 0.0
    %1023 = vmatpush1.msra.mxu0 %v564
    %1024 = vmatprep.subr.mxu0 0.0
    %1025 = vmatpush1.msra.mxu0 %v569
    %1026 = vmatprep.subr.mxu0 0.0
    %1027 = vmatpush1.msra.mxu0 %v574
    %1028 = vmatprep.subr.mxu0 0.0
    %1029 = vmatpush1.msra.mxu0 %v579
    %1030 = vmatprep.subr.mxu0 0.0
    %1031 = vmatpush1.msra.mxu0 %v584
    %1032 = vmatprep.subr.mxu0 0.0
    %1033 = vmatpush1.msra.mxu0 %v589
    %1034 = vmatprep.subr.mxu0 0.0
    %1035 = vmatpush1.msra.mxu0 %v594
    %1036 = vmatprep.subr.mxu0 0.0
    %1037 = vmatpush1.msra.mxu0 %v599
    %1038 = vmatprep.subr.mxu0 0.0
    %1039 = vmatpush1.msra.mxu0 %v604
    %1040 = vmatprep.subr.mxu0 0.0
    %1041 = vmatpush1.msra.mxu0 0.0
    %1042 = vmatprep.subr.mxu0 0.0
    %1043 = vmatpush1.msra.mxu0 0.0
    %1044 = vmatprep.subr.mxu0 0.0
    %1045 = vmatpush1.msra.mxu0 0.0
    %1046 = vmatprep.subr.mxu0 0.0
    %1047 = vmatpush1.msra.mxu0 0.0
    %1048 = vmatprep.subr.mxu0 0.0
    %1049 = vmatpush1.msra.mxu0 0.0
    %1050 = vmatprep.subr.mxu0 0.0
    %1051 = vmatpush1.msra.mxu0 0.0
    %1052 = vmatprep.subr.mxu0 0.0
    %1053 = vmatpush1.msra.mxu0 0.0
    %1054 = vmatprep.subr.mxu0 0.0
    %1055 = vmatpush1.msra.mxu0 0.0
    %1056 = vmatprep.subr.mxu0 0.0
    %1057 = vmatpush1.msra.mxu0 0.0
    %1058 = vmatprep.subr.mxu0 0.0
    %1059 = vmatpush1.msra.mxu0 0.0
    %1060 = vmatprep.subr.mxu0 0.0
    %1061 = vmatpush1.msra.mxu0 0.0
    %1062 = vmatprep.subr.mxu0 0.0
    %1063 = vmatpush1.msra.mxu0 0.0
    %1064 = vmatprep.subr.mxu0 0.0
    %1065 = vmatpush1.msra.mxu0 0.0
    %1066 = vmatprep.subr.mxu0 0.0
    %1067 = vmatpush1.msra.mxu0 0.0
    %1068 = vmatprep.subr.mxu0 0.0
    %1069 = vmatpush1.msra.mxu0 0.0
    %1070 = vmatprep.subr.mxu0 0.0
    %1071 = vmatpush1.msra.mxu0 0.0
    %1072 = vmatprep.mubr.f32.mxu0 0.0
    %1073 = vmatmul.mubr.f32.gmra.mrb[0].mxu0 %v992
    %v1074 = vpop.f32.mrb[0].mxu0
    %v1075 = vadd.f32 0.0, %v1074
    %v1076 = vpop.f32.mrb[0].mxu0
    %1077 = vmatprep.mubr.f32.mxu0 0.0
    %1078 = vmatmul.mubr.f32.gmra.mrb[0].mxu0 %v993
    %v1079 = vpop.f32.mrb[0].mxu0
    %v1080 = vadd.f32 0.0, %v1079
    %v1081 = vpop.f32.mrb[0].mxu0
    %1082 = vmatprep.mubr.f32.mxu0 0.0
    %1083 = vmatmul.mubr.f32.gmra.mrb[0].mxu0 %v994
    %v1084 = vpop.f32.mrb[0].mxu0
    %v1085 = vadd.f32 0.0, %v1084
    %v1086 = vpop.f32.mrb[0].mxu0
    %1087 = vmatprep.mubr.f32.mxu0 0.0
    %1088 = vmatmul.mubr.f32.gmra.mrb[0].mxu0 %v995
    %v1089 = vpop.f32.mrb[0].mxu0
    %v1090 = vadd.f32 0.0, %v1089
    %v1091 = vpop.f32.mrb[0].mxu0
    %1092 = vmatprep.mubr.f32.mxu0 0.0
    %1093 = vmatmul.mubr.f32.gmra.mrb[0].mxu0 %v996
    %v1094 = vpop.f32.mrb[0].mxu0
    %v1095 = vadd.f32 0.0, %v1094
    %v1096 = vpop.f32.mrb[0].mxu0
    %1097 = vmatprep.mubr.f32.mxu0 0.0
    %1098 = vmatmul.mubr.f32.gmra.mrb[0].mxu0 %v997
    %v1099 = vpop.f32.mrb[0].mxu0
    %v1100 = vadd.f32 0.0, %v1099
    %v1101 = vpop.f32.mrb[0].mxu0
    %1102 = vmatprep.mubr.f32.mxu0 0.0
    %1103 = vmatmul.mubr.f32.gmra.mrb[0].mxu0 %v998
    %v1104 = vpop.f32.mrb[0].mxu0
    %v1105 = vadd.f32 0.0, %v1104
    %v1106 = vpop.f32.mrb[0].mxu0
    %1107 = vmatprep.mubr.f32.mxu0 0.0
    %1108 = vmatmul.mubr.f32.gmra.mrb[0].mxu0 %v999
    %v1109 = vpop.f32.mrb[0].mxu0
    %v1110 = vadd.f32 0.0, %v1109
    %v1111 = vpop.f32.mrb[0].mxu0
    %1112 = vmatprep.mubr.f32.mxu0 0.0
    %1113 = vmatmul.mubr.f32.gmra.mrb[0].mxu0 %v1000
    %v1114 = vpop.f32.mrb[0].mxu0
    %v1115 = vadd.f32 0.0, %v1114
    %v1116 = vpop.f32.mrb[0].mxu0
    %1117 = vmatprep.mubr.f32.mxu0 0.0
    %1118 = vmatmul.mubr.f32.gmra.mrb[0].mxu0 %v1001
    %v1119 = vpop.f32.mrb[0].mxu0
    %v1120 = vadd.f32 0.0, %v1119
    %v1121 = vpop.f32.mrb[0].mxu0
    %1122 = vmatprep.mubr.f32.mxu0 0.0
    %1123 = vmatmul.mubr.f32.gmra.mrb[0].mxu0 %v1002
    %v1124 = vpop.f32.mrb[0].mxu0
    %v1125 = vadd.f32 0.0, %v1124
    %v1126 = vpop.f32.mrb[0].mxu0
    %1127 = vmatprep.mubr.f32.mxu0 0.0
    %1128 = vmatmul.mubr.f32.gmra.mrb[0].mxu0 %v1003
    %v1129 = vpop.f32.mrb[0].mxu0
    %v1130 = vadd.f32 0.0, %v1129
    %v1131 = vpop.f32.mrb[0].mxu0
    %1132 = vmatprep.mubr.f32.mxu0 0.0
    %1133 = vmatmul.mubr.f32.gmra.mrb[0].mxu0 %v1004
    %v1134 = vpop.f32.mrb[0].mxu0
    %v1135 = vadd.f32 0.0, %v1134
    %v1136 = vpop.f32.mrb[0].mxu0
    %1137 = vmatprep.mubr.f32.mxu0 0.0
    %1138 = vmatmul.mubr.f32.gmra.mrb[0].mxu0 %v1005
    %v1139 = vpop.f32.mrb[0].mxu0
    %v1140 = vadd.f32 0.0, %v1139
    %v1141 = vpop.f32.mrb[0].mxu0
    %1142 = vmatprep.mubr.f32.mxu0 0.0
    %1143 = vmatmul.mubr.f32.gmra.mrb[0].mxu0 %v1006
    %v1144 = vpop.f32.mrb[0].mxu0
    %v1145 = vadd.f32 0.0, %v1144
    %v1146 = vpop.f32.mrb[0].mxu0
    %1147 = vmatprep.mubr.f32.mxu0 0.0
    %1148 = vmatmul.mubr.f32.gmra.mrb[0].mxu0 %v1007
    %v1149 = vpop.f32.mrb[0].mxu0
    %v1150 = vadd.f32 0.0, %v1149
    %v1151 = vpop.f32.mrb[0].mxu0
    %1152 = vdwg.mxu0
    %v1153 = vld [vmem:[%s5] sm:$0xff]
    %v1154 = vld [vmem:[%s5 + $0x8] sm:$0xff]
    %v1155 = vld [vmem:[%s5 + $0x10] sm:$0xff]
    %v1156 = vld [vmem:[%s5 + $0x18] sm:$0xff]
    %v1157 = vlaneseq
    %v1158 = vshrl.u32 %v1157, 7
    %v1159 = vsub.s32 0, %v1158
    %v1160 = vrot.slane %v92, %v1159
    %v1162 = vsel %vm107, %v1075, 0
    %v1165 = vsel %vm107, %v1080, 0
    %v1168 = vsel %vm107, %v1085, 0
    %v1171 = vsel %vm107, %v1090, 0
    %v1174 = vsel %vm107, %v1095, 0
    %v1177 = vsel %vm107, %v1100, 0
    %v1180 = vsel %vm107, %v1105, 0
    %v1183 = vsel %vm107, %v1110, 0
    %v1186 = vsel %vm107, %v1115, 0
    %v1189 = vsel %vm107, %v1120, 0
    %v1192 = vsel %vm107, %v1125, 0
    %v1195 = vsel %vm107, %v1130, 0
    %v1198 = vsel %vm107, %v1135, 0
    %v1201 = vsel %vm107, %v1140, 0
    %v1204 = vsel %vm107, %v1145, 0
    %v1207 = vsel %vm107, %v1150, 0
    %1209 = vmatprep.subr.mxu0 0.0
    %1210 = vmatpush1.msra.mxu0 %v1153
    %1211 = vmatprep.subr.mxu0 0.0
    %1212 = vmatpush1.msra.mxu0 %v1154
    %1213 = vmatprep.subr.mxu0 0.0
    %1214 = vmatpush1.msra.mxu0 %v1155
    %1215 = vmatprep.subr.mxu0 0.0
    %1216 = vmatpush1.msra.mxu0 %v1156
    %1217 = vmatprep.subr.mxu0 0.0
    %1218 = vmatpush1.msra.mxu0 0.0
    %1219 = vmatprep.subr.mxu0 0.0
    %1220 = vmatpush1.msra.mxu0 0.0
    %1221 = vmatprep.subr.mxu0 0.0
    %1222 = vmatpush1.msra.mxu0 0.0
    %1223 = vmatprep.subr.mxu0 0.0
    %1224 = vmatpush1.msra.mxu0 0.0
    %1225 = vmatprep.subr.mxu0 0.0
    %1226 = vmatpush1.msra.mxu0 0.0
    %1227 = vmatprep.subr.mxu0 0.0
    %1228 = vmatpush1.msra.mxu0 0.0
    %1229 = vmatprep.subr.mxu0 0.0
    %1230 = vmatpush1.msra.mxu0 0.0
    %1231 = vmatprep.subr.mxu0 0.0
    %1232 = vmatpush1.msra.mxu0 0.0
    %1233 = vmatprep.subr.mxu0 0.0
    %1234 = vmatpush1.msra.mxu0 0.0
    %1235 = vmatprep.subr.mxu0 0.0
    %1236 = vmatpush1.msra.mxu0 0.0
    %1237 = vmatprep.subr.mxu0 0.0
    %1238 = vmatpush1.msra.mxu0 0.0
    %1239 = vmatprep.subr.mxu0 0.0
    %1240 = vmatpush1.msra.mxu0 0.0
    %1241 = vmatprep.subr.mxu0 0.0
    %1242 = vmatpush1.msra.mxu0 0.0
    %1243 = vmatprep.subr.mxu0 0.0
    %1244 = vmatpush1.msra.mxu0 0.0
    %1245 = vmatprep.subr.mxu0 0.0
    %1246 = vmatpush1.msra.mxu0 0.0
    %1247 = vmatprep.subr.mxu0 0.0
    %1248 = vmatpush1.msra.mxu0 0.0
    %1249 = vmatprep.subr.mxu0 0.0
    %1250 = vmatpush1.msra.mxu0 0.0
    %1251 = vmatprep.subr.mxu0 0.0
    %1252 = vmatpush1.msra.mxu0 0.0
    %1253 = vmatprep.subr.mxu0 0.0
    %1254 = vmatpush1.msra.mxu0 0.0
    %1255 = vmatprep.subr.mxu0 0.0
    %1256 = vmatpush1.msra.mxu0 0.0
    %1257 = vmatprep.subr.mxu0 0.0
    %1258 = vmatpush1.msra.mxu0 0.0
    %1259 = vmatprep.subr.mxu0 0.0
    %1260 = vmatpush1.msra.mxu0 0.0
    %1261 = vmatprep.subr.mxu0 0.0
    %1262 = vmatpush1.msra.mxu0 0.0
    %1263 = vmatprep.subr.mxu0 0.0
    %1264 = vmatpush1.msra.mxu0 0.0
    %1265 = vmatprep.subr.mxu0 0.0
    %1266 = vmatpush1.msra.mxu0 0.0
    %1267 = vmatprep.subr.mxu0 0.0
    %1268 = vmatpush1.msra.mxu0 0.0
    %1269 = vmatprep.subr.mxu0 0.0
    %1270 = vmatpush1.msra.mxu0 0.0
    %1271 = vmatprep.subr.mxu0 0.0
    %1272 = vmatpush1.msra.mxu0 0.0
    %1273 = vmatprep.mubr.f32.mxu0 0.0
    %1274 = vmatmul.mubr.f32.gmra.mrb[0].mxu0 %v1162
    %v1275 = vpop.f32.mrb[0].mxu0
    %v1276 = vadd.f32 %v1160, %v1275
    %v1277 = vpop.f32.mrb[0].mxu0
    %1278 = vmatprep.mubr.f32.mxu0 0.0
    %1279 = vmatmul.mubr.f32.gmra.mrb[0].mxu0 %v1165
    %v1280 = vpop.f32.mrb[0].mxu0
    %v1281 = vadd.f32 %v1160, %v1280
    %v1282 = vpop.f32.mrb[0].mxu0
    %1283 = vmatprep.mubr.f32.mxu0 0.0
    %1284 = vmatmul.mubr.f32.gmra.mrb[0].mxu0 %v1168
    %v1285 = vpop.f32.mrb[0].mxu0
    %v1286 = vadd.f32 %v1160, %v1285
    %v1287 = vpop.f32.mrb[0].mxu0
    %1288 = vmatprep.mubr.f32.mxu0 0.0
    %1289 = vmatmul.mubr.f32.gmra.mrb[0].mxu0 %v1171
    %v1290 = vpop.f32.mrb[0].mxu0
    %v1291 = vadd.f32 %v1160, %v1290
    %v1292 = vpop.f32.mrb[0].mxu0
    %1293 = vmatprep.mubr.f32.mxu0 0.0
    %1294 = vmatmul.mubr.f32.gmra.mrb[0].mxu0 %v1174
    %v1295 = vpop.f32.mrb[0].mxu0
    %v1296 = vadd.f32 %v1160, %v1295
    %v1297 = vpop.f32.mrb[0].mxu0
    %1298 = vmatprep.mubr.f32.mxu0 0.0
    %1299 = vmatmul.mubr.f32.gmra.mrb[0].mxu0 %v1177
    %v1300 = vpop.f32.mrb[0].mxu0
    %v1301 = vadd.f32 %v1160, %v1300
    %v1302 = vpop.f32.mrb[0].mxu0
    %1303 = vmatprep.mubr.f32.mxu0 0.0
    %1304 = vmatmul.mubr.f32.gmra.mrb[0].mxu0 %v1180
    %v1305 = vpop.f32.mrb[0].mxu0
    %v1306 = vadd.f32 %v1160, %v1305
    %v1307 = vpop.f32.mrb[0].mxu0
    %1308 = vmatprep.mubr.f32.mxu0 0.0
    %1309 = vmatmul.mubr.f32.gmra.mrb[0].mxu0 %v1183
    %v1310 = vpop.f32.mrb[0].mxu0
    %v1311 = vadd.f32 %v1160, %v1310
    %v1312 = vpop.f32.mrb[0].mxu0
    %1313 = vmatprep.mubr.f32.mxu0 0.0
    %1314 = vmatmul.mubr.f32.gmra.mrb[0].mxu0 %v1186
    %v1315 = vpop.f32.mrb[0].mxu0
    %v1316 = vadd.f32 %v1160, %v1315
    %v1317 = vpop.f32.mrb[0].mxu0
    %1318 = vmatprep.mubr.f32.mxu0 0.0
    %1319 = vmatmul.mubr.f32.gmra.mrb[0].mxu0 %v1189
    %v1320 = vpop.f32.mrb[0].mxu0
    %v1321 = vadd.f32 %v1160, %v1320
    %v1322 = vpop.f32.mrb[0].mxu0
    %1323 = vmatprep.mubr.f32.mxu0 0.0
    %1324 = vmatmul.mubr.f32.gmra.mrb[0].mxu0 %v1192
    %v1325 = vpop.f32.mrb[0].mxu0
    %v1326 = vadd.f32 %v1160, %v1325
    %v1327 = vpop.f32.mrb[0].mxu0
    %1328 = vmatprep.mubr.f32.mxu0 0.0
    %1329 = vmatmul.mubr.f32.gmra.mrb[0].mxu0 %v1195
    %v1330 = vpop.f32.mrb[0].mxu0
    %v1331 = vadd.f32 %v1160, %v1330
    %v1332 = vpop.f32.mrb[0].mxu0
    %1333 = vmatprep.mubr.f32.mxu0 0.0
    %1334 = vmatmul.mubr.f32.gmra.mrb[0].mxu0 %v1198
    %v1335 = vpop.f32.mrb[0].mxu0
    %v1336 = vadd.f32 %v1160, %v1335
    %v1337 = vpop.f32.mrb[0].mxu0
    %1338 = vmatprep.mubr.f32.mxu0 0.0
    %1339 = vmatmul.mubr.f32.gmra.mrb[0].mxu0 %v1201
    %v1340 = vpop.f32.mrb[0].mxu0
    %v1341 = vadd.f32 %v1160, %v1340
    %v1342 = vpop.f32.mrb[0].mxu0
    %1343 = vmatprep.mubr.f32.mxu0 0.0
    %1344 = vmatmul.mubr.f32.gmra.mrb[0].mxu0 %v1204
    %v1345 = vpop.f32.mrb[0].mxu0
    %v1346 = vadd.f32 %v1160, %v1345
    %v1347 = vpop.f32.mrb[0].mxu0
    %1348 = vmatprep.mubr.f32.mxu0 0.0
    %1349 = vmatmul.mubr.f32.gmra.mrb[0].mxu0 %v1207
    %v1350 = vpop.f32.mrb[0].mxu0
    %v1351 = vadd.f32 %v1160, %v1350
    %v1352 = vpop.f32.mrb[0].mxu0
    %1353 = vdwg.mxu0
    %v1354 = vsel %vm107, %v1276, 0.0
    %1355 = vadd.xlane.f32.xlu0 %v1354
    %v1356 = vpop.xlane.xlu0 %1355
    %v1357 = vsel %vm107, %v1281, 0.0
    %1358 = vadd.xlane.f32.xlu0 %v1357
    %v1359 = vpop.xlane.xlu0 %1358
    %v1360 = vsel %vm107, %v1286, 0.0
    %1361 = vadd.xlane.f32.xlu0 %v1360
    %v1362 = vpop.xlane.xlu0 %1361
    %v1363 = vsel %vm107, %v1291, 0.0
    %1364 = vadd.xlane.f32.xlu0 %v1363
    %v1365 = vpop.xlane.xlu0 %1364
    %v1366 = vsel %vm107, %v1296, 0.0
    %1367 = vadd.xlane.f32.xlu0 %v1366
    %v1368 = vpop.xlane.xlu0 %1367
    %v1369 = vsel %vm107, %v1301, 0.0
    %1370 = vadd.xlane.f32.xlu0 %v1369
    %v1371 = vpop.xlane.xlu0 %1370
    %v1372 = vsel %vm107, %v1306, 0.0
    %1373 = vadd.xlane.f32.xlu0 %v1372
    %v1374 = vpop.xlane.xlu0 %1373
    %v1375 = vsel %vm107, %v1311, 0.0
    %1376 = vadd.xlane.f32.xlu0 %v1375
    %v1377 = vpop.xlane.xlu0 %1376
    %v1378 = vsel %vm107, %v1316, 0.0
    %1379 = vadd.xlane.f32.xlu0 %v1378
    %v1380 = vpop.xlane.xlu0 %1379
    %v1381 = vsel %vm107, %v1321, 0.0
    %1382 = vadd.xlane.f32.xlu0 %v1381
    %v1383 = vpop.xlane.xlu0 %1382
    %v1384 = vsel %vm107, %v1326, 0.0
    %1385 = vadd.xlane.f32.xlu0 %v1384
    %v1386 = vpop.xlane.xlu0 %1385
    %v1387 = vsel %vm107, %v1331, 0.0
    %1388 = vadd.xlane.f32.xlu0 %v1387
    %v1389 = vpop.xlane.xlu0 %1388
    %v1390 = vsel %vm107, %v1336, 0.0
    %1391 = vadd.xlane.f32.xlu0 %v1390
    %v1392 = vpop.xlane.xlu0 %1391
    %v1393 = vsel %vm107, %v1341, 0.0
    %1394 = vadd.xlane.f32.xlu0 %v1393
    %v1395 = vpop.xlane.xlu0 %1394
    %v1396 = vsel %vm107, %v1346, 0.0
    %1397 = vadd.xlane.f32.xlu0 %v1396
    %v1398 = vpop.xlane.xlu0 %1397
    %v1399 = vsel %vm107, %v1351, 0.0
    %1400 = vadd.xlane.f32.xlu0 %v1399
    %v1401 = vpop.xlane.xlu0 %1400
    %v1402 = vrcp.pop 32.0
    %v1403 = vmul.f32 %v1356, %v1402
    %v1404 = vmul.f32 %v1359, %v1402
    %v1405 = vmul.f32 %v1362, %v1402
    %v1406 = vmul.f32 %v1365, %v1402
    %v1407 = vmul.f32 %v1368, %v1402
    %v1408 = vmul.f32 %v1371, %v1402
    %v1409 = vmul.f32 %v1374, %v1402
    %v1410 = vmul.f32 %v1377, %v1402
    %v1411 = vmul.f32 %v1380, %v1402
    %v1412 = vmul.f32 %v1383, %v1402
    %v1413 = vmul.f32 %v1386, %v1402
    %v1414 = vmul.f32 %v1389, %v1402
    %v1415 = vmul.f32 %v1392, %v1402
    %v1416 = vmul.f32 %v1395, %v1402
    %v1417 = vmul.f32 %v1398, %v1402
    %v1418 = vmul.f32 %v1401, %v1402
    %v1419 = vsub.f32 %v1276, %v1403
    %v1420 = vsub.f32 %v1281, %v1404
    %v1421 = vsub.f32 %v1286, %v1405
    %v1422 = vsub.f32 %v1291, %v1406
    %v1423 = vsub.f32 %v1296, %v1407
    %v1424 = vsub.f32 %v1301, %v1408
    %v1425 = vsub.f32 %v1306, %v1409
    %v1426 = vsub.f32 %v1311, %v1410
    %v1427 = vsub.f32 %v1316, %v1411
    %v1428 = vsub.f32 %v1321, %v1412
    %v1429 = vsub.f32 %v1326, %v1413
    %v1430 = vsub.f32 %v1331, %v1414
    %v1431 = vsub.f32 %v1336, %v1415
    %v1432 = vsub.f32 %v1341, %v1416
    %v1433 = vsub.f32 %v1346, %v1417
    %v1434 = vsub.f32 %v1351, %v1418
    %v1435 = vmul.f32 %v1419, %v1419
    %v1436 = vmul.f32 %v1420, %v1420
    %v1437 = vmul.f32 %v1421, %v1421
    %v1438 = vmul.f32 %v1422, %v1422
    %v1439 = vmul.f32 %v1423, %v1423
    %v1440 = vmul.f32 %v1424, %v1424
    %v1441 = vmul.f32 %v1425, %v1425
    %v1442 = vmul.f32 %v1426, %v1426
    %v1443 = vmul.f32 %v1427, %v1427
    %v1444 = vmul.f32 %v1428, %v1428
    %v1445 = vmul.f32 %v1429, %v1429
    %v1446 = vmul.f32 %v1430, %v1430
    %v1447 = vmul.f32 %v1431, %v1431
    %v1448 = vmul.f32 %v1432, %v1432
    %v1449 = vmul.f32 %v1433, %v1433
    %v1450 = vmul.f32 %v1434, %v1434
    %v1451 = vsel %vm107, %v1435, 0.0
    %1452 = vadd.xlane.f32.xlu0 %v1451
    %v1453 = vpop.xlane.xlu0 %1452
    %v1454 = vsel %vm107, %v1436, 0.0
    %1455 = vadd.xlane.f32.xlu0 %v1454
    %v1456 = vpop.xlane.xlu0 %1455
    %v1457 = vsel %vm107, %v1437, 0.0
    %1458 = vadd.xlane.f32.xlu0 %v1457
    %v1459 = vpop.xlane.xlu0 %1458
    %v1460 = vsel %vm107, %v1438, 0.0
    %1461 = vadd.xlane.f32.xlu0 %v1460
    %v1462 = vpop.xlane.xlu0 %1461
    %v1463 = vsel %vm107, %v1439, 0.0
    %1464 = vadd.xlane.f32.xlu0 %v1463
    %v1465 = vpop.xlane.xlu0 %1464
    %v1466 = vsel %vm107, %v1440, 0.0
    %1467 = vadd.xlane.f32.xlu0 %v1466
    %v1468 = vpop.xlane.xlu0 %1467
    %v1469 = vsel %vm107, %v1441, 0.0
    %1470 = vadd.xlane.f32.xlu0 %v1469
    %v1471 = vpop.xlane.xlu0 %1470
    %v1472 = vsel %vm107, %v1442, 0.0
    %1473 = vadd.xlane.f32.xlu0 %v1472
    %v1474 = vpop.xlane.xlu0 %1473
    %v1475 = vsel %vm107, %v1443, 0.0
    %1476 = vadd.xlane.f32.xlu0 %v1475
    %v1477 = vpop.xlane.xlu0 %1476
    %v1478 = vsel %vm107, %v1444, 0.0
    %1479 = vadd.xlane.f32.xlu0 %v1478
    %v1480 = vpop.xlane.xlu0 %1479
    %v1481 = vsel %vm107, %v1445, 0.0
    %1482 = vadd.xlane.f32.xlu0 %v1481
    %v1483 = vpop.xlane.xlu0 %1482
    %v1484 = vsel %vm107, %v1446, 0.0
    %1485 = vadd.xlane.f32.xlu0 %v1484
    %v1486 = vpop.xlane.xlu0 %1485
    %v1487 = vsel %vm107, %v1447, 0.0
    %1488 = vadd.xlane.f32.xlu0 %v1487
    %v1489 = vpop.xlane.xlu0 %1488
    %v1490 = vsel %vm107, %v1448, 0.0
    %1491 = vadd.xlane.f32.xlu0 %v1490
    %v1492 = vpop.xlane.xlu0 %1491
    %v1493 = vsel %vm107, %v1449, 0.0
    %1494 = vadd.xlane.f32.xlu0 %v1493
    %v1495 = vpop.xlane.xlu0 %1494
    %v1496 = vsel %vm107, %v1450, 0.0
    %1497 = vadd.xlane.f32.xlu0 %v1496
    %v1498 = vpop.xlane.xlu0 %1497
    %v1499 = vmul.f32 %v1453, 0.032258064
    %v1500 = vmul.f32 %v1456, 0.032258064
    %v1501 = vmul.f32 %v1459, 0.032258064
    %v1502 = vmul.f32 %v1462, 0.032258064
    %v1503 = vmul.f32 %v1465, 0.032258064
    %v1504 = vmul.f32 %v1468, 0.032258064
    %v1505 = vmul.f32 %v1471, 0.032258064
    %v1506 = vmul.f32 %v1474, 0.032258064
    %v1507 = vmul.f32 %v1477, 0.032258064
    %v1508 = vmul.f32 %v1480, 0.032258064
    %v1509 = vmul.f32 %v1483, 0.032258064
    %v1510 = vmul.f32 %v1486, 0.032258064
    %v1511 = vmul.f32 %v1489, 0.032258064
    %v1512 = vmul.f32 %v1492, 0.032258064
    %v1513 = vmul.f32 %v1495, 0.032258064
    %v1514 = vmul.f32 %v1498, 0.032258064
    %v1515 = vlaneseq
    %v1516 = vshrl.u32 %v1515, 7
    %v1517 = vsub.s32 0, %v1516
    %v1518 = vrot.slane %v93, %v1517
    %v1519 = vmul.f32 %v1518, %v1419
    %v1520 = vmul.f32 %v1518, %v1420
    %v1521 = vmul.f32 %v1518, %v1421
    %v1522 = vmul.f32 %v1518, %v1422
    %v1523 = vmul.f32 %v1518, %v1423
    %v1524 = vmul.f32 %v1518, %v1424
    %v1525 = vmul.f32 %v1518, %v1425
    %v1526 = vmul.f32 %v1518, %v1426
    %v1527 = vmul.f32 %v1518, %v1427
    %v1528 = vmul.f32 %v1518, %v1428
    %v1529 = vmul.f32 %v1518, %v1429
    %v1530 = vmul.f32 %v1518, %v1430
    %v1531 = vmul.f32 %v1518, %v1431
    %v1532 = vmul.f32 %v1518, %v1432
    %v1533 = vmul.f32 %v1518, %v1433
    %v1534 = vmul.f32 %v1518, %v1434
    %v1535 = vrsqrt.pop %v1499
    %v1536 = vmul.f32 %v1499, %v1535
    %vm1537 = vcmp.eq.f32.partialorder %v1499, inf
    %v1538 = vsel %vm1537, %v1499, %v1536
    %vm1539 = vcmp.eq.f32.partialorder %v1499, 0.0
    %v1540 = vand.u32 %v1499, 2147483648
    %v1541 = vsel %vm1539, %v1540, %v1538
    %v1542 = vrsqrt.pop %v1500
    %v1543 = vmul.f32 %v1500, %v1542
    %vm1544 = vcmp.eq.f32.partialorder %v1500, inf
    %v1545 = vsel %vm1544, %v1500, %v1543
    %vm1546 = vcmp.eq.f32.partialorder %v1500, 0.0
    %v1547 = vand.u32 %v1500, 2147483648
    %v1548 = vsel %vm1546, %v1547, %v1545
    %v1549 = vrsqrt.pop %v1501
    %v1550 = vmul.f32 %v1501, %v1549
    %vm1551 = vcmp.eq.f32.partialorder %v1501, inf
    %v1552 = vsel %vm1551, %v1501, %v1550
    %vm1553 = vcmp.eq.f32.partialorder %v1501, 0.0
    %v1554 = vand.u32 %v1501, 2147483648
    %v1555 = vsel %vm1553, %v1554, %v1552
    %v1556 = vrsqrt.pop %v1502
    %v1557 = vmul.f32 %v1502, %v1556
    %vm1558 = vcmp.eq.f32.partialorder %v1502, inf
    %v1559 = vsel %vm1558, %v1502, %v1557
    %vm1560 = vcmp.eq.f32.partialorder %v1502, 0.0
    %v1561 = vand.u32 %v1502, 2147483648
    %v1562 = vsel %vm1560, %v1561, %v1559
    %v1563 = vrsqrt.pop %v1503
    %v1564 = vmul.f32 %v1503, %v1563
    %vm1565 = vcmp.eq.f32.partialorder %v1503, inf
    %v1566 = vsel %vm1565, %v1503, %v1564
    %vm1567 = vcmp.eq.f32.partialorder %v1503, 0.0
    %v1568 = vand.u32 %v1503, 2147483648
    %v1569 = vsel %vm1567, %v1568, %v1566
    %v1570 = vrsqrt.pop %v1504
    %v1571 = vmul.f32 %v1504, %v1570
    %vm1572 = vcmp.eq.f32.partialorder %v1504, inf
    %v1573 = vsel %vm1572, %v1504, %v1571
    %vm1574 = vcmp.eq.f32.partialorder %v1504, 0.0
    %v1575 = vand.u32 %v1504, 2147483648
    %v1576 = vsel %vm1574, %v1575, %v1573
    %v1577 = vrsqrt.pop %v1505
    %v1578 = vmul.f32 %v1505, %v1577
    %vm1579 = vcmp.eq.f32.partialorder %v1505, inf
    %v1580 = vsel %vm1579, %v1505, %v1578
    %vm1581 = vcmp.eq.f32.partialorder %v1505, 0.0
    %v1582 = vand.u32 %v1505, 2147483648
    %v1583 = vsel %vm1581, %v1582, %v1580
    %v1584 = vrsqrt.pop %v1506
    %v1585 = vmul.f32 %v1506, %v1584
    %vm1586 = vcmp.eq.f32.partialorder %v1506, inf
    %v1587 = vsel %vm1586, %v1506, %v1585
    %vm1588 = vcmp.eq.f32.partialorder %v1506, 0.0
    %v1589 = vand.u32 %v1506, 2147483648
    %v1590 = vsel %vm1588, %v1589, %v1587
    %v1591 = vrsqrt.pop %v1507
    %v1592 = vmul.f32 %v1507, %v1591
    %vm1593 = vcmp.eq.f32.partialorder %v1507, inf
    %v1594 = vsel %vm1593, %v1507, %v1592
    %vm1595 = vcmp.eq.f32.partialorder %v1507, 0.0
    %v1596 = vand.u32 %v1507, 2147483648
    %v1597 = vsel %vm1595, %v1596, %v1594
    %v1598 = vrsqrt.pop %v1508
    %v1599 = vmul.f32 %v1508, %v1598
    %vm1600 = vcmp.eq.f32.partialorder %v1508, inf
    %v1601 = vsel %vm1600, %v1508, %v1599
    %vm1602 = vcmp.eq.f32.partialorder %v1508, 0.0
    %v1603 = vand.u32 %v1508, 2147483648
    %v1604 = vsel %vm1602, %v1603, %v1601
    %v1605 = vrsqrt.pop %v1509
    %v1606 = vmul.f32 %v1509, %v1605
    %vm1607 = vcmp.eq.f32.partialorder %v1509, inf
    %v1608 = vsel %vm1607, %v1509, %v1606
    %vm1609 = vcmp.eq.f32.partialorder %v1509, 0.0
    %v1610 = vand.u32 %v1509, 2147483648
    %v1611 = vsel %vm1609, %v1610, %v1608
    %v1612 = vrsqrt.pop %v1510
    %v1613 = vmul.f32 %v1510, %v1612
    %vm1614 = vcmp.eq.f32.partialorder %v1510, inf
    %v1615 = vsel %vm1614, %v1510, %v1613
    %vm1616 = vcmp.eq.f32.partialorder %v1510, 0.0
    %v1617 = vand.u32 %v1510, 2147483648
    %v1618 = vsel %vm1616, %v1617, %v1615
    %v1619 = vrsqrt.pop %v1511
    %v1620 = vmul.f32 %v1511, %v1619
    %vm1621 = vcmp.eq.f32.partialorder %v1511, inf
    %v1622 = vsel %vm1621, %v1511, %v1620
    %vm1623 = vcmp.eq.f32.partialorder %v1511, 0.0
    %v1624 = vand.u32 %v1511, 2147483648
    %v1625 = vsel %vm1623, %v1624, %v1622
    %v1626 = vrsqrt.pop %v1512
    %v1627 = vmul.f32 %v1512, %v1626
    %vm1628 = vcmp.eq.f32.partialorder %v1512, inf
    %v1629 = vsel %vm1628, %v1512, %v1627
    %vm1630 = vcmp.eq.f32.partialorder %v1512, 0.0
    %v1631 = vand.u32 %v1512, 2147483648
    %v1632 = vsel %vm1630, %v1631, %v1629
    %v1633 = vrsqrt.pop %v1513
    %v1634 = vmul.f32 %v1513, %v1633
    %vm1635 = vcmp.eq.f32.partialorder %v1513, inf
    %v1636 = vsel %vm1635, %v1513, %v1634
    %vm1637 = vcmp.eq.f32.partialorder %v1513, 0.0
    %v1638 = vand.u32 %v1513, 2147483648
    %v1639 = vsel %vm1637, %v1638, %v1636
    %v1640 = vrsqrt.pop %v1514
    %v1641 = vmul.f32 %v1514, %v1640
    %vm1642 = vcmp.eq.f32.partialorder %v1514, inf
    %v1643 = vsel %vm1642, %v1514, %v1641
    %vm1644 = vcmp.eq.f32.partialorder %v1514, 0.0
    %v1645 = vand.u32 %v1514, 2147483648
    %v1646 = vsel %vm1644, %v1645, %v1643
    %v1647 = vadd.f32 %v1541, 1e-06
    %v1648 = vadd.f32 %v1548, 1e-06
    %v1649 = vadd.f32 %v1555, 1e-06
    %v1650 = vadd.f32 %v1562, 1e-06
    %v1651 = vadd.f32 %v1569, 1e-06
    %v1652 = vadd.f32 %v1576, 1e-06
    %v1653 = vadd.f32 %v1583, 1e-06
    %v1654 = vadd.f32 %v1590, 1e-06
    %v1655 = vadd.f32 %v1597, 1e-06
    %v1656 = vadd.f32 %v1604, 1e-06
    %v1657 = vadd.f32 %v1611, 1e-06
    %v1658 = vadd.f32 %v1618, 1e-06
    %v1659 = vadd.f32 %v1625, 1e-06
    %v1660 = vadd.f32 %v1632, 1e-06
    %v1661 = vadd.f32 %v1639, 1e-06
    %v1662 = vadd.f32 %v1646, 1e-06
    %v1663 = vrcp.pop %v1647
    %v1664 = vmul.f32 %v1519, %v1663
    %v1665 = vrcp.pop %v1648
    %v1666 = vmul.f32 %v1520, %v1665
    %v1667 = vrcp.pop %v1649
    %v1668 = vmul.f32 %v1521, %v1667
    %v1669 = vrcp.pop %v1650
    %v1670 = vmul.f32 %v1522, %v1669
    %v1671 = vrcp.pop %v1651
    %v1672 = vmul.f32 %v1523, %v1671
    %v1673 = vrcp.pop %v1652
    %v1674 = vmul.f32 %v1524, %v1673
    %v1675 = vrcp.pop %v1653
    %v1676 = vmul.f32 %v1525, %v1675
    %v1677 = vrcp.pop %v1654
    %v1678 = vmul.f32 %v1526, %v1677
    %v1679 = vrcp.pop %v1655
    %v1680 = vmul.f32 %v1527, %v1679
    %v1681 = vrcp.pop %v1656
    %v1682 = vmul.f32 %v1528, %v1681
    %v1683 = vrcp.pop %v1657
    %v1684 = vmul.f32 %v1529, %v1683
    %v1685 = vrcp.pop %v1658
    %v1686 = vmul.f32 %v1530, %v1685
    %v1687 = vrcp.pop %v1659
    %v1688 = vmul.f32 %v1531, %v1687
    %v1689 = vrcp.pop %v1660
    %v1690 = vmul.f32 %v1532, %v1689
    %v1691 = vrcp.pop %v1661
    %v1692 = vmul.f32 %v1533, %v1691
    %v1693 = vrcp.pop %v1662
    %v1694 = vmul.f32 %v1534, %v1693
    %v1695 = vlaneseq
    %v1696 = vshrl.u32 %v1695, 7
    %v1697 = vsub.s32 0, %v1696
    %v1698 = vrot.slane %v94, %v1697
    %v1699 = vadd.f32 %v1664, %v1698
    %v1700 = vadd.f32 %v1666, %v1698
    %v1701 = vadd.f32 %v1668, %v1698
    %v1702 = vadd.f32 %v1670, %v1698
    %v1703 = vadd.f32 %v1672, %v1698
    %v1704 = vadd.f32 %v1674, %v1698
    %v1705 = vadd.f32 %v1676, %v1698
    %v1706 = vadd.f32 %v1678, %v1698
    %v1707 = vadd.f32 %v1680, %v1698
    %v1708 = vadd.f32 %v1682, %v1698
    %v1709 = vadd.f32 %v1684, %v1698
    %v1710 = vadd.f32 %v1686, %v1698
    %v1711 = vadd.f32 %v1688, %v1698
    %v1712 = vadd.f32 %v1690, %v1698
    %v1713 = vadd.f32 %v1692, %v1698
    %v1714 = vadd.f32 %v1694, %v1698
    %v1715 = vld [vmem:[#allocation4] sm:$0xff]
    %v1716 = vld [vmem:[#allocation4 + $0x8] sm:$0xff]
    %v1717 = vld [vmem:[#allocation4 + $0x10] sm:$0xff]
    %v1718 = vld [vmem:[#allocation4 + $0x18] sm:$0xff]
    %v1719 = vlaneseq
    %v1720 = vshrl.u32 %v1719, 7
    %v1721 = vsub.s32 0, %v1720
    %v1722 = vrot.slane %v95, %v1721
    %v1724 = vsel %vm107, %v1699, 0
    %v1727 = vsel %vm107, %v1700, 0
    %v1730 = vsel %vm107, %v1701, 0
    %v1733 = vsel %vm107, %v1702, 0
    %v1736 = vsel %vm107, %v1703, 0
    %v1739 = vsel %vm107, %v1704, 0
    %v1742 = vsel %vm107, %v1705, 0
    %v1745 = vsel %vm107, %v1706, 0
    %v1748 = vsel %vm107, %v1707, 0
    %v1751 = vsel %vm107, %v1708, 0
    %v1754 = vsel %vm107, %v1709, 0
    %v1757 = vsel %vm107, %v1710, 0
    %v1760 = vsel %vm107, %v1711, 0
    %v1763 = vsel %vm107, %v1712, 0
    %v1766 = vsel %vm107, %v1713, 0
    %v1769 = vsel %vm107, %v1714, 0
    %1771 = vmatprep.subr.mxu0 0.0
    %1772 = vmatpush1.msra.mxu0 %v1715
    %1773 = vmatprep.subr.mxu0 0.0
    %1774 = vmatpush1.msra.mxu0 %v1716
    %1775 = vmatprep.subr.mxu0 0.0
    %1776 = vmatpush1.msra.mxu0 %v1717
    %1777 = vmatprep.subr.mxu0 0.0
    %1778 = vmatpush1.msra.mxu0 %v1718
    %1779 = vmatprep.subr.mxu0 0.0
    %1780 = vmatpush1.msra.mxu0 0.0
    %1781 = vmatprep.subr.mxu0 0.0
    %1782 = vmatpush1.msra.mxu0 0.0
    %1783 = vmatprep.subr.mxu0 0.0
    %1784 = vmatpush1.msra.mxu0 0.0
    %1785 = vmatprep.subr.mxu0 0.0
    %1786 = vmatpush1.msra.mxu0 0.0
    %1787 = vmatprep.subr.mxu0 0.0
    %1788 = vmatpush1.msra.mxu0 0.0
    %1789 = vmatprep.subr.mxu0 0.0
    %1790 = vmatpush1.msra.mxu0 0.0
    %1791 = vmatprep.subr.mxu0 0.0
    %1792 = vmatpush1.msra.mxu0 0.0
    %1793 = vmatprep.subr.mxu0 0.0
    %1794 = vmatpush1.msra.mxu0 0.0
    %1795 = vmatprep.subr.mxu0 0.0
    %1796 = vmatpush1.msra.mxu0 0.0
    %1797 = vmatprep.subr.mxu0 0.0
    %1798 = vmatpush1.msra.mxu0 0.0
    %1799 = vmatprep.subr.mxu0 0.0
    %1800 = vmatpush1.msra.mxu0 0.0
    %1801 = vmatprep.subr.mxu0 0.0
    %1802 = vmatpush1.msra.mxu0 0.0
    %1803 = vmatprep.subr.mxu0 0.0
    %1804 = vmatpush1.msra.mxu0 0.0
    %1805 = vmatprep.subr.mxu0 0.0
    %1806 = vmatpush1.msra.mxu0 0.0
    %1807 = vmatprep.subr.mxu0 0.0
    %1808 = vmatpush1.msra.mxu0 0.0
    %1809 = vmatprep.subr.mxu0 0.0
    %1810 = vmatpush1.msra.mxu0 0.0
    %1811 = vmatprep.subr.mxu0 0.0
    %1812 = vmatpush1.msra.mxu0 0.0
    %1813 = vmatprep.subr.mxu0 0.0
    %1814 = vmatpush1.msra.mxu0 0.0
    %1815 = vmatprep.subr.mxu0 0.0
    %1816 = vmatpush1.msra.mxu0 0.0
    %1817 = vmatprep.subr.mxu0 0.0
    %1818 = vmatpush1.msra.mxu0 0.0
    %1819 = vmatprep.subr.mxu0 0.0
    %1820 = vmatpush1.msra.mxu0 0.0
    %1821 = vmatprep.subr.mxu0 0.0
    %1822 = vmatpush1.msra.mxu0 0.0
    %1823 = vmatprep.subr.mxu0 0.0
    %1824 = vmatpush1.msra.mxu0 0.0
    %1825 = vmatprep.subr.mxu0 0.0
    %1826 = vmatpush1.msra.mxu0 0.0
    %1827 = vmatprep.subr.mxu0 0.0
    %1828 = vmatpush1.msra.mxu0 0.0
    %1829 = vmatprep.subr.mxu0 0.0
    %1830 = vmatpush1.msra.mxu0 0.0
    %1831 = vmatprep.subr.mxu0 0.0
    %1832 = vmatpush1.msra.mxu0 0.0
    %1833 = vmatprep.subr.mxu0 0.0
    %1834 = vmatpush1.msra.mxu0 0.0
    %1835 = vmatprep.mubr.f32.mxu0 0.0
    %1836 = vmatmul.mubr.f32.gmra.mrb[0].mxu0 %v1724
    %v1837 = vpop.f32.mrb[0].mxu0
    %v1838 = vadd.f32 %v1722, %v1837
    %v1839 = vpop.f32.mrb[0].mxu0
    %1840 = vmatprep.mubr.f32.mxu0 0.0
    %1841 = vmatmul.mubr.f32.gmra.mrb[0].mxu0 %v1727
    %v1842 = vpop.f32.mrb[0].mxu0
    %v1843 = vadd.f32 %v1722, %v1842
    %v1844 = vpop.f32.mrb[0].mxu0
    %1845 = vmatprep.mubr.f32.mxu0 0.0
    %1846 = vmatmul.mubr.f32.gmra.mrb[0].mxu0 %v1730
    %v1847 = vpop.f32.mrb[0].mxu0
    %v1848 = vadd.f32 %v1722, %v1847
    %v1849 = vpop.f32.mrb[0].mxu0
    %1850 = vmatprep.mubr.f32.mxu0 0.0
    %1851 = vmatmul.mubr.f32.gmra.mrb[0].mxu0 %v1733
    %v1852 = vpop.f32.mrb[0].mxu0
    %v1853 = vadd.f32 %v1722, %v1852
    %v1854 = vpop.f32.mrb[0].mxu0
    %1855 = vmatprep.mubr.f32.mxu0 0.0
    %1856 = vmatmul.mubr.f32.gmra.mrb[0].mxu0 %v1736
    %v1857 = vpop.f32.mrb[0].mxu0
    %v1858 = vadd.f32 %v1722, %v1857
    %v1859 = vpop.f32.mrb[0].mxu0
    %1860 = vmatprep.mubr.f32.mxu0 0.0
    %1861 = vmatmul.mubr.f32.gmra.mrb[0].mxu0 %v1739
    %v1862 = vpop.f32.mrb[0].mxu0
    %v1863 = vadd.f32 %v1722, %v1862
    %v1864 = vpop.f32.mrb[0].mxu0
    %1865 = vmatprep.mubr.f32.mxu0 0.0
    %1866 = vmatmul.mubr.f32.gmra.mrb[0].mxu0 %v1742
    %v1867 = vpop.f32.mrb[0].mxu0
    %v1868 = vadd.f32 %v1722, %v1867
    %v1869 = vpop.f32.mrb[0].mxu0
    %1870 = vmatprep.mubr.f32.mxu0 0.0
    %1871 = vmatmul.mubr.f32.gmra.mrb[0].mxu0 %v1745
    %v1872 = vpop.f32.mrb[0].mxu0
    %v1873 = vadd.f32 %v1722, %v1872
    %v1874 = vpop.f32.mrb[0].mxu0
    %1875 = vmatprep.mubr.f32.mxu0 0.0
    %1876 = vmatmul.mubr.f32.gmra.mrb[0].mxu0 %v1748
    %v1877 = vpop.f32.mrb[0].mxu0
    %v1878 = vadd.f32 %v1722, %v1877
    %v1879 = vpop.f32.mrb[0].mxu0
    %1880 = vmatprep.mubr.f32.mxu0 0.0
    %1881 = vmatmul.mubr.f32.gmra.mrb[0].mxu0 %v1751
    %v1882 = vpop.f32.mrb[0].mxu0
    %v1883 = vadd.f32 %v1722, %v1882
    %v1884 = vpop.f32.mrb[0].mxu0
    %1885 = vmatprep.mubr.f32.mxu0 0.0
    %1886 = vmatmul.mubr.f32.gmra.mrb[0].mxu0 %v1754
    %v1887 = vpop.f32.mrb[0].mxu0
    %v1888 = vadd.f32 %v1722, %v1887
    %v1889 = vpop.f32.mrb[0].mxu0
    %1890 = vmatprep.mubr.f32.mxu0 0.0
    %1891 = vmatmul.mubr.f32.gmra.mrb[0].mxu0 %v1757
    %v1892 = vpop.f32.mrb[0].mxu0
    %v1893 = vadd.f32 %v1722, %v1892
    %v1894 = vpop.f32.mrb[0].mxu0
    %1895 = vmatprep.mubr.f32.mxu0 0.0
    %1896 = vmatmul.mubr.f32.gmra.mrb[0].mxu0 %v1760
    %v1897 = vpop.f32.mrb[0].mxu0
    %v1898 = vadd.f32 %v1722, %v1897
    %v1899 = vpop.f32.mrb[0].mxu0
    %1900 = vmatprep.mubr.f32.mxu0 0.0
    %1901 = vmatmul.mubr.f32.gmra.mrb[0].mxu0 %v1763
    %v1902 = vpop.f32.mrb[0].mxu0
    %v1903 = vadd.f32 %v1722, %v1902
    %v1904 = vpop.f32.mrb[0].mxu0
    %1905 = vmatprep.mubr.f32.mxu0 0.0
    %1906 = vmatmul.mubr.f32.gmra.mrb[0].mxu0 %v1766
    %v1907 = vpop.f32.mrb[0].mxu0
    %v1908 = vadd.f32 %v1722, %v1907
    %v1909 = vpop.f32.mrb[0].mxu0
    %1910 = vmatprep.mubr.f32.mxu0 0.0
    %1911 = vmatmul.mubr.f32.gmra.mrb[0].mxu0 %v1769
    %v1912 = vpop.f32.mrb[0].mxu0
    %v1913 = vadd.f32 %v1722, %v1912
    %v1914 = vpop.f32.mrb[0].mxu0
    %1915 = vdwg.mxu0
    %v1916 = vmax.f32 %v1838, 0.0
    %v1917 = vmax.f32 %v1843, 0.0
    %v1918 = vmax.f32 %v1848, 0.0
    %v1919 = vmax.f32 %v1853, 0.0
    %v1920 = vmax.f32 %v1858, 0.0
    %v1921 = vmax.f32 %v1863, 0.0
    %v1922 = vmax.f32 %v1868, 0.0
    %v1923 = vmax.f32 %v1873, 0.0
    %v1924 = vmax.f32 %v1878, 0.0
    %v1925 = vmax.f32 %v1883, 0.0
    %v1926 = vmax.f32 %v1888, 0.0
    %v1927 = vmax.f32 %v1893, 0.0
    %v1928 = vmax.f32 %v1898, 0.0
    %v1929 = vmax.f32 %v1903, 0.0
    %v1930 = vmax.f32 %v1908, 0.0
    %v1931 = vmax.f32 %v1913, 0.0
    %v1932 = vld [vmem:[%s7] sm:$0xff]
    %v1933 = vld [vmem:[%s7 + $0x8] sm:$0xff]
    %v1934 = vld [vmem:[%s7 + $0x10] sm:$0xff]
    %v1935 = vld [vmem:[%s7 + $0x18] sm:$0xff]
    %v1936 = vlaneseq
    %v1937 = vshrl.u32 %v1936, 7
    %v1938 = vsub.s32 0, %v1937
    %v1939 = vrot.slane %v96, %v1938
    %v1941 = vsel %vm107, %v1916, 0
    %v1944 = vsel %vm107, %v1917, 0
    %v1947 = vsel %vm107, %v1918, 0
    %v1950 = vsel %vm107, %v1919, 0
    %v1953 = vsel %vm107, %v1920, 0
    %v1956 = vsel %vm107, %v1921, 0
    %v1959 = vsel %vm107, %v1922, 0
    %v1962 = vsel %vm107, %v1923, 0
    %v1965 = vsel %vm107, %v1924, 0
    %v1968 = vsel %vm107, %v1925, 0
    %v1971 = vsel %vm107, %v1926, 0
    %v1974 = vsel %vm107, %v1927, 0
    %v1977 = vsel %vm107, %v1928, 0
    %v1980 = vsel %vm107, %v1929, 0
    %v1983 = vsel %vm107, %v1930, 0
    %v1986 = vsel %vm107, %v1931, 0
    %1988 = vmatprep.subr.mxu0 0.0
    %1989 = vmatpush1.msra.mxu0 %v1932
    %1990 = vmatprep.subr.mxu0 0.0
    %1991 = vmatpush1.msra.mxu0 %v1933
    %1992 = vmatprep.subr.mxu0 0.0
    %1993 = vmatpush1.msra.mxu0 %v1934
    %1994 = vmatprep.subr.mxu0 0.0
    %1995 = vmatpush1.msra.mxu0 %v1935
    %1996 = vmatprep.subr.mxu0 0.0
    %1997 = vmatpush1.msra.mxu0 0.0
    %1998 = vmatprep.subr.mxu0 0.0
    %1999 = vmatpush1.msra.mxu0 0.0
    %2000 = vmatprep.subr.mxu0 0.0
    %2001 = vmatpush1.msra.mxu0 0.0
    %2002 = vmatprep.subr.mxu0 0.0
    %2003 = vmatpush1.msra.mxu0 0.0
    %2004 = vmatprep.subr.mxu0 0.0
    %2005 = vmatpush1.msra.mxu0 0.0
    %2006 = vmatprep.subr.mxu0 0.0
    %2007 = vmatpush1.msra.mxu0 0.0
    %2008 = vmatprep.subr.mxu0 0.0
    %2009 = vmatpush1.msra.mxu0 0.0
    %2010 = vmatprep.subr.mxu0 0.0
    %2011 = vmatpush1.msra.mxu0 0.0
    %2012 = vmatprep.subr.mxu0 0.0
    %2013 = vmatpush1.msra.mxu0 0.0
    %2014 = vmatprep.subr.mxu0 0.0
    %2015 = vmatpush1.msra.mxu0 0.0
    %2016 = vmatprep.subr.mxu0 0.0
    %2017 = vmatpush1.msra.mxu0 0.0
    %2018 = vmatprep.subr.mxu0 0.0
    %2019 = vmatpush1.msra.mxu0 0.0
    %2020 = vmatprep.subr.mxu0 0.0
    %2021 = vmatpush1.msra.mxu0 0.0
    %2022 = vmatprep.subr.mxu0 0.0
    %2023 = vmatpush1.msra.mxu0 0.0
    %2024 = vmatprep.subr.mxu0 0.0
    %2025 = vmatpush1.msra.mxu0 0.0
    %2026 = vmatprep.subr.mxu0 0.0
    %2027 = vmatpush1.msra.mxu0 0.0
    %2028 = vmatprep.subr.mxu0 0.0
    %2029 = vmatpush1.msra.mxu0 0.0
    %2030 = vmatprep.subr.mxu0 0.0
    %2031 = vmatpush1.msra.mxu0 0.0
    %2032 = vmatprep.subr.mxu0 0.0
    %2033 = vmatpush1.msra.mxu0 0.0
    %2034 = vmatprep.subr.mxu0 0.0
    %2035 = vmatpush1.msra.mxu0 0.0
    %2036 = vmatprep.subr.mxu0 0.0
    %2037 = vmatpush1.msra.mxu0 0.0
    %2038 = vmatprep.subr.mxu0 0.0
    %2039 = vmatpush1.msra.mxu0 0.0
    %2040 = vmatprep.subr.mxu0 0.0
    %2041 = vmatpush1.msra.mxu0 0.0
    %2042 = vmatprep.subr.mxu0 0.0
    %2043 = vmatpush1.msra.mxu0 0.0
    %2044 = vmatprep.subr.mxu0 0.0
    %2045 = vmatpush1.msra.mxu0 0.0
    %2046 = vmatprep.subr.mxu0 0.0
    %2047 = vmatpush1.msra.mxu0 0.0
    %2048 = vmatprep.subr.mxu0 0.0
    %2049 = vmatpush1.msra.mxu0 0.0
    %2050 = vmatprep.subr.mxu0 0.0
    %2051 = vmatpush1.msra.mxu0 0.0
    %2052 = vmatprep.mubr.f32.mxu0 0.0
    %2053 = vmatmul.mubr.f32.gmra.mrb[0].mxu0 %v1941
    %v2054 = vpop.f32.mrb[0].mxu0
    %v2055 = vadd.f32 %v1939, %v2054
    %v2056 = vpop.f32.mrb[0].mxu0
    %2057 = vmatprep.mubr.f32.mxu0 0.0
    %2058 = vmatmul.mubr.f32.gmra.mrb[0].mxu0 %v1944
    %v2059 = vpop.f32.mrb[0].mxu0
    %v2060 = vadd.f32 %v1939, %v2059
    %v2061 = vpop.f32.mrb[0].mxu0
    %2062 = vmatprep.mubr.f32.mxu0 0.0
    %2063 = vmatmul.mubr.f32.gmra.mrb[0].mxu0 %v1947
    %v2064 = vpop.f32.mrb[0].mxu0
    %v2065 = vadd.f32 %v1939, %v2064
    %v2066 = vpop.f32.mrb[0].mxu0
    %2067 = vmatprep.mubr.f32.mxu0 0.0
    %2068 = vmatmul.mubr.f32.gmra.mrb[0].mxu0 %v1950
    %v2069 = vpop.f32.mrb[0].mxu0
    %v2070 = vadd.f32 %v1939, %v2069
    %v2071 = vpop.f32.mrb[0].mxu0
    %2072 = vmatprep.mubr.f32.mxu0 0.0
    %2073 = vmatmul.mubr.f32.gmra.mrb[0].mxu0 %v1953
    %v2074 = vpop.f32.mrb[0].mxu0
    %v2075 = vadd.f32 %v1939, %v2074
    %v2076 = vpop.f32.mrb[0].mxu0
    %2077 = vmatprep.mubr.f32.mxu0 0.0
    %2078 = vmatmul.mubr.f32.gmra.mrb[0].mxu0 %v1956
    %v2079 = vpop.f32.mrb[0].mxu0
    %v2080 = vadd.f32 %v1939, %v2079
    %v2081 = vpop.f32.mrb[0].mxu0
    %2082 = vmatprep.mubr.f32.mxu0 0.0
    %2083 = vmatmul.mubr.f32.gmra.mrb[0].mxu0 %v1959
    %v2084 = vpop.f32.mrb[0].mxu0
    %v2085 = vadd.f32 %v1939, %v2084
    %v2086 = vpop.f32.mrb[0].mxu0
    %2087 = vmatprep.mubr.f32.mxu0 0.0
    %2088 = vmatmul.mubr.f32.gmra.mrb[0].mxu0 %v1962
    %v2089 = vpop.f32.mrb[0].mxu0
    %v2090 = vadd.f32 %v1939, %v2089
    %v2091 = vpop.f32.mrb[0].mxu0
    %2092 = vmatprep.mubr.f32.mxu0 0.0
    %2093 = vmatmul.mubr.f32.gmra.mrb[0].mxu0 %v1965
    %v2094 = vpop.f32.mrb[0].mxu0
    %v2095 = vadd.f32 %v1939, %v2094
    %v2096 = vpop.f32.mrb[0].mxu0
    %2097 = vmatprep.mubr.f32.mxu0 0.0
    %2098 = vmatmul.mubr.f32.gmra.mrb[0].mxu0 %v1968
    %v2099 = vpop.f32.mrb[0].mxu0
    %v2100 = vadd.f32 %v1939, %v2099
    %v2101 = vpop.f32.mrb[0].mxu0
    %2102 = vmatprep.mubr.f32.mxu0 0.0
    %2103 = vmatmul.mubr.f32.gmra.mrb[0].mxu0 %v1971
    %v2104 = vpop.f32.mrb[0].mxu0
    %v2105 = vadd.f32 %v1939, %v2104
    %v2106 = vpop.f32.mrb[0].mxu0
    %2107 = vmatprep.mubr.f32.mxu0 0.0
    %2108 = vmatmul.mubr.f32.gmra.mrb[0].mxu0 %v1974
    %v2109 = vpop.f32.mrb[0].mxu0
    %v2110 = vadd.f32 %v1939, %v2109
    %v2111 = vpop.f32.mrb[0].mxu0
    %2112 = vmatprep.mubr.f32.mxu0 0.0
    %2113 = vmatmul.mubr.f32.gmra.mrb[0].mxu0 %v1977
    %v2114 = vpop.f32.mrb[0].mxu0
    %v2115 = vadd.f32 %v1939, %v2114
    %v2116 = vpop.f32.mrb[0].mxu0
    %2117 = vmatprep.mubr.f32.mxu0 0.0
    %2118 = vmatmul.mubr.f32.gmra.mrb[0].mxu0 %v1980
    %v2119 = vpop.f32.mrb[0].mxu0
    %v2120 = vadd.f32 %v1939, %v2119
    %v2121 = vpop.f32.mrb[0].mxu0
    %2122 = vmatprep.mubr.f32.mxu0 0.0
    %2123 = vmatmul.mubr.f32.gmra.mrb[0].mxu0 %v1983
    %v2124 = vpop.f32.mrb[0].mxu0
    %v2125 = vadd.f32 %v1939, %v2124
    %v2126 = vpop.f32.mrb[0].mxu0
    %2127 = vmatprep.mubr.f32.mxu0 0.0
    %2128 = vmatmul.mubr.f32.gmra.mrb[0].mxu0 %v1986
    %v2129 = vpop.f32.mrb[0].mxu0
    %v2130 = vadd.f32 %v1939, %v2129
    %v2131 = vpop.f32.mrb[0].mxu0
    %2132 = vdwg.mxu0
    %v2133 = vmax.f32 %v2055, 0.0
    %v2134 = vmax.f32 %v2060, 0.0
    %v2135 = vmax.f32 %v2065, 0.0
    %v2136 = vmax.f32 %v2070, 0.0
    %v2137 = vmax.f32 %v2075, 0.0
    %v2138 = vmax.f32 %v2080, 0.0
    %v2139 = vmax.f32 %v2085, 0.0
    %v2140 = vmax.f32 %v2090, 0.0
    %v2141 = vmax.f32 %v2095, 0.0
    %v2142 = vmax.f32 %v2100, 0.0
    %v2143 = vmax.f32 %v2105, 0.0
    %v2144 = vmax.f32 %v2110, 0.0
    %v2145 = vmax.f32 %v2115, 0.0
    %v2146 = vmax.f32 %v2120, 0.0
    %v2147 = vmax.f32 %v2125, 0.0
    %v2148 = vmax.f32 %v2130, 0.0
    %v2149 = vadd.f32 %v73, %v2133
    %v2150 = vadd.f32 %v74, %v2134
    %v2151 = vadd.f32 %v75, %v2135
    %v2152 = vadd.f32 %v76, %v2136
    %v2153 = vadd.f32 %v77, %v2137
    %v2154 = vadd.f32 %v78, %v2138
    %v2155 = vadd.f32 %v79, %v2139
    %v2156 = vadd.f32 %v80, %v2140
    %v2157 = vadd.f32 %v81, %v2141
    %v2158 = vadd.f32 %v82, %v2142
    %v2159 = vadd.f32 %v83, %v2143
    %v2160 = vadd.f32 %v84, %v2144
    %v2161 = vadd.f32 %v85, %v2145
    %v2162 = vadd.f32 %v86, %v2146
    %v2163 = vadd.f32 %v87, %v2147
    %v2164 = vadd.f32 %v88, %v2148
    %vm2165 = vcmask 130048
    %v2166 = vsel %vm2165, %v2149, 0.0
    %2167 = vadd.xlane.f32.xlu0 %v2166
    %v2168 = vpop.xlane.xlu0 %2167
    %v2169 = vsel %vm2165, %v2150, 0.0
    %2170 = vadd.xlane.f32.xlu0 %v2169
    %v2171 = vpop.xlane.xlu0 %2170
    %v2172 = vsel %vm2165, %v2151, 0.0
    %2173 = vadd.xlane.f32.xlu0 %v2172
    %v2174 = vpop.xlane.xlu0 %2173
    %v2175 = vsel %vm2165, %v2152, 0.0
    %2176 = vadd.xlane.f32.xlu0 %v2175
    %v2177 = vpop.xlane.xlu0 %2176
    %v2178 = vsel %vm2165, %v2153, 0.0
    %2179 = vadd.xlane.f32.xlu0 %v2178
    %v2180 = vpop.xlane.xlu0 %2179
    %v2181 = vsel %vm2165, %v2154, 0.0
    %2182 = vadd.xlane.f32.xlu0 %v2181
    %v2183 = vpop.xlane.xlu0 %2182
    %v2184 = vsel %vm2165, %v2155, 0.0
    %2185 = vadd.xlane.f32.xlu0 %v2184
    %v2186 = vpop.xlane.xlu0 %2185
    %v2187 = vsel %vm2165, %v2156, 0.0
    %2188 = vadd.xlane.f32.xlu0 %v2187
    %v2189 = vpop.xlane.xlu0 %2188
    %v2190 = vsel %vm2165, %v2157, 0.0
    %2191 = vadd.xlane.f32.xlu0 %v2190
    %v2192 = vpop.xlane.xlu0 %2191
    %v2193 = vsel %vm2165, %v2158, 0.0
    %2194 = vadd.xlane.f32.xlu0 %v2193
    %v2195 = vpop.xlane.xlu0 %2194
    %v2196 = vsel %vm2165, %v2159, 0.0
    %2197 = vadd.xlane.f32.xlu0 %v2196
    %v2198 = vpop.xlane.xlu0 %2197
    %v2199 = vsel %vm2165, %v2160, 0.0
    %2200 = vadd.xlane.f32.xlu0 %v2199
    %v2201 = vpop.xlane.xlu0 %2200
    %v2202 = vsel %vm2165, %v2161, 0.0
    %2203 = vadd.xlane.f32.xlu0 %v2202
    %v2204 = vpop.xlane.xlu0 %2203
    %v2205 = vsel %vm2165, %v2162, 0.0
    %2206 = vadd.xlane.f32.xlu0 %v2205
    %v2207 = vpop.xlane.xlu0 %2206
    %v2208 = vsel %vm2165, %v2163, 0.0
    %2209 = vadd.xlane.f32.xlu0 %v2208
    %v2210 = vpop.xlane.xlu0 %2209
    %v2211 = vsel %vm2165, %v2164, 0.0
    %2212 = vadd.xlane.f32.xlu0 %v2211
    %v2213 = vpop.xlane.xlu0 %2212
    %v2214 = vrcp.pop 16.0
    %v2215 = vmul.f32 %v2168, %v2214
    %v2216 = vmul.f32 %v2171, %v2214
    %v2217 = vmul.f32 %v2174, %v2214
    %v2218 = vmul.f32 %v2177, %v2214
    %v2219 = vmul.f32 %v2180, %v2214
    %v2220 = vmul.f32 %v2183, %v2214
    %v2221 = vmul.f32 %v2186, %v2214
    %v2222 = vmul.f32 %v2189, %v2214
    %v2223 = vmul.f32 %v2192, %v2214
    %v2224 = vmul.f32 %v2195, %v2214
    %v2225 = vmul.f32 %v2198, %v2214
    %v2226 = vmul.f32 %v2201, %v2214
    %v2227 = vmul.f32 %v2204, %v2214
    %v2228 = vmul.f32 %v2207, %v2214
    %v2229 = vmul.f32 %v2210, %v2214
    %v2230 = vmul.f32 %v2213, %v2214
    %v2231 = vsub.f32 %v2149, %v2215
    %v2232 = vsub.f32 %v2150, %v2216
    %v2233 = vsub.f32 %v2151, %v2217
    %v2234 = vsub.f32 %v2152, %v2218
    %v2235 = vsub.f32 %v2153, %v2219
    %v2236 = vsub.f32 %v2154, %v2220
    %v2237 = vsub.f32 %v2155, %v2221
    %v2238 = vsub.f32 %v2156, %v2222
    %v2239 = vsub.f32 %v2157, %v2223
    %v2240 = vsub.f32 %v2158, %v2224
    %v2241 = vsub.f32 %v2159, %v2225
    %v2242 = vsub.f32 %v2160, %v2226
    %v2243 = vsub.f32 %v2161, %v2227
    %v2244 = vsub.f32 %v2162, %v2228
    %v2245 = vsub.f32 %v2163, %v2229
    %v2246 = vsub.f32 %v2164, %v2230
    %v2247 = vmul.f32 %v2231, %v2231
    %v2248 = vmul.f32 %v2232, %v2232
    %v2249 = vmul.f32 %v2233, %v2233
    %v2250 = vmul.f32 %v2234, %v2234
    %v2251 = vmul.f32 %v2235, %v2235
    %v2252 = vmul.f32 %v2236, %v2236
    %v2253 = vmul.f32 %v2237, %v2237
    %v2254 = vmul.f32 %v2238, %v2238
    %v2255 = vmul.f32 %v2239, %v2239
    %v2256 = vmul.f32 %v2240, %v2240
    %v2257 = vmul.f32 %v2241, %v2241
    %v2258 = vmul.f32 %v2242, %v2242
    %v2259 = vmul.f32 %v2243, %v2243
    %v2260 = vmul.f32 %v2244, %v2244
    %v2261 = vmul.f32 %v2245, %v2245
    %v2262 = vmul.f32 %v2246, %v2246
    %v2263 = vsel %vm2165, %v2247, 0.0
    %2264 = vadd.xlane.f32.xlu0 %v2263
    %v2265 = vpop.xlane.xlu0 %2264
    %v2266 = vsel %vm2165, %v2248, 0.0
    %2267 = vadd.xlane.f32.xlu0 %v2266
    %v2268 = vpop.xlane.xlu0 %2267
    %v2269 = vsel %vm2165, %v2249, 0.0
    %2270 = vadd.xlane.f32.xlu0 %v2269
    %v2271 = vpop.xlane.xlu0 %2270
    %v2272 = vsel %vm2165, %v2250, 0.0
    %2273 = vadd.xlane.f32.xlu0 %v2272
    %v2274 = vpop.xlane.xlu0 %2273
    %v2275 = vsel %vm2165, %v2251, 0.0
    %2276 = vadd.xlane.f32.xlu0 %v2275
    %v2277 = vpop.xlane.xlu0 %2276
    %v2278 = vsel %vm2165, %v2252, 0.0
    %2279 = vadd.xlane.f32.xlu0 %v2278
    %v2280 = vpop.xlane.xlu0 %2279
    %v2281 = vsel %vm2165, %v2253, 0.0
    %2282 = vadd.xlane.f32.xlu0 %v2281
    %v2283 = vpop.xlane.xlu0 %2282
    %v2284 = vsel %vm2165, %v2254, 0.0
    %2285 = vadd.xlane.f32.xlu0 %v2284
    %v2286 = vpop.xlane.xlu0 %2285
    %v2287 = vsel %vm2165, %v2255, 0.0
    %2288 = vadd.xlane.f32.xlu0 %v2287
    %v2289 = vpop.xlane.xlu0 %2288
    %v2290 = vsel %vm2165, %v2256, 0.0
    %2291 = vadd.xlane.f32.xlu0 %v2290
    %v2292 = vpop.xlane.xlu0 %2291
    %v2293 = vsel %vm2165, %v2257, 0.0
    %2294 = vadd.xlane.f32.xlu0 %v2293
    %v2295 = vpop.xlane.xlu0 %2294
    %v2296 = vsel %vm2165, %v2258, 0.0
    %2297 = vadd.xlane.f32.xlu0 %v2296
    %v2298 = vpop.xlane.xlu0 %2297
    %v2299 = vsel %vm2165, %v2259, 0.0
    %2300 = vadd.xlane.f32.xlu0 %v2299
    %v2301 = vpop.xlane.xlu0 %2300
    %v2302 = vsel %vm2165, %v2260, 0.0
    %2303 = vadd.xlane.f32.xlu0 %v2302
    %v2304 = vpop.xlane.xlu0 %2303
    %v2305 = vsel %vm2165, %v2261, 0.0
    %2306 = vadd.xlane.f32.xlu0 %v2305
    %v2307 = vpop.xlane.xlu0 %2306
    %v2308 = vsel %vm2165, %v2262, 0.0
    %2309 = vadd.xlane.f32.xlu0 %v2308
    %v2310 = vpop.xlane.xlu0 %2309
    %v2311 = vmul.f32 %v2265, 0.06666667
    %v2312 = vmul.f32 %v2268, 0.06666667
    %v2313 = vmul.f32 %v2271, 0.06666667
    %v2314 = vmul.f32 %v2274, 0.06666667
    %v2315 = vmul.f32 %v2277, 0.06666667
    %v2316 = vmul.f32 %v2280, 0.06666667
    %v2317 = vmul.f32 %v2283, 0.06666667
    %v2318 = vmul.f32 %v2286, 0.06666667
    %v2319 = vmul.f32 %v2289, 0.06666667
    %v2320 = vmul.f32 %v2292, 0.06666667
    %v2321 = vmul.f32 %v2295, 0.06666667
    %v2322 = vmul.f32 %v2298, 0.06666667
    %v2323 = vmul.f32 %v2301, 0.06666667
    %v2324 = vmul.f32 %v2304, 0.06666667
    %v2325 = vmul.f32 %v2307, 0.06666667
    %v2326 = vmul.f32 %v2310, 0.06666667
    %v2327 = vlaneseq
    %v2328 = vshrl.u32 %v2327, 7
    %v2329 = vsub.s32 0, %v2328
    %v2330 = vrot.slane %v97, %v2329
    %v2331 = vmul.f32 %v2330, %v2231
    %v2332 = vmul.f32 %v2330, %v2232
    %v2333 = vmul.f32 %v2330, %v2233
    %v2334 = vmul.f32 %v2330, %v2234
    %v2335 = vmul.f32 %v2330, %v2235
    %v2336 = vmul.f32 %v2330, %v2236
    %v2337 = vmul.f32 %v2330, %v2237
    %v2338 = vmul.f32 %v2330, %v2238
    %v2339 = vmul.f32 %v2330, %v2239
    %v2340 = vmul.f32 %v2330, %v2240
    %v2341 = vmul.f32 %v2330, %v2241
    %v2342 = vmul.f32 %v2330, %v2242
    %v2343 = vmul.f32 %v2330, %v2243
    %v2344 = vmul.f32 %v2330, %v2244
    %v2345 = vmul.f32 %v2330, %v2245
    %v2346 = vmul.f32 %v2330, %v2246
    %v2347 = vrsqrt.pop %v2311
    %v2348 = vmul.f32 %v2311, %v2347
    %vm2349 = vcmp.eq.f32.partialorder %v2311, inf
    %v2350 = vsel %vm2349, %v2311, %v2348
    %vm2351 = vcmp.eq.f32.partialorder %v2311, 0.0
    %v2352 = vand.u32 %v2311, 2147483648
    %v2353 = vsel %vm2351, %v2352, %v2350
    %v2354 = vrsqrt.pop %v2312
    %v2355 = vmul.f32 %v2312, %v2354
    %vm2356 = vcmp.eq.f32.partialorder %v2312, inf
    %v2357 = vsel %vm2356, %v2312, %v2355
    %vm2358 = vcmp.eq.f32.partialorder %v2312, 0.0
    %v2359 = vand.u32 %v2312, 2147483648
    %v2360 = vsel %vm2358, %v2359, %v2357
    %v2361 = vrsqrt.pop %v2313
    %v2362 = vmul.f32 %v2313, %v2361
    %vm2363 = vcmp.eq.f32.partialorder %v2313, inf
    %v2364 = vsel %vm2363, %v2313, %v2362
    %vm2365 = vcmp.eq.f32.partialorder %v2313, 0.0
    %v2366 = vand.u32 %v2313, 2147483648
    %v2367 = vsel %vm2365, %v2366, %v2364
    %v2368 = vrsqrt.pop %v2314
    %v2369 = vmul.f32 %v2314, %v2368
    %vm2370 = vcmp.eq.f32.partialorder %v2314, inf
    %v2371 = vsel %vm2370, %v2314, %v2369
    %vm2372 = vcmp.eq.f32.partialorder %v2314, 0.0
    %v2373 = vand.u32 %v2314, 2147483648
    %v2374 = vsel %vm2372, %v2373, %v2371
    %v2375 = vrsqrt.pop %v2315
    %v2376 = vmul.f32 %v2315, %v2375
    %vm2377 = vcmp.eq.f32.partialorder %v2315, inf
    %v2378 = vsel %vm2377, %v2315, %v2376
    %vm2379 = vcmp.eq.f32.partialorder %v2315, 0.0
    %v2380 = vand.u32 %v2315, 2147483648
    %v2381 = vsel %vm2379, %v2380, %v2378
    %v2382 = vrsqrt.pop %v2316
    %v2383 = vmul.f32 %v2316, %v2382
    %vm2384 = vcmp.eq.f32.partialorder %v2316, inf
    %v2385 = vsel %vm2384, %v2316, %v2383
    %vm2386 = vcmp.eq.f32.partialorder %v2316, 0.0
    %v2387 = vand.u32 %v2316, 2147483648
    %v2388 = vsel %vm2386, %v2387, %v2385
    %v2389 = vrsqrt.pop %v2317
    %v2390 = vmul.f32 %v2317, %v2389
    %vm2391 = vcmp.eq.f32.partialorder %v2317, inf
    %v2392 = vsel %vm2391, %v2317, %v2390
    %vm2393 = vcmp.eq.f32.partialorder %v2317, 0.0
    %v2394 = vand.u32 %v2317, 2147483648
    %v2395 = vsel %vm2393, %v2394, %v2392
    %v2396 = vrsqrt.pop %v2318
    %v2397 = vmul.f32 %v2318, %v2396
    %vm2398 = vcmp.eq.f32.partialorder %v2318, inf
    %v2399 = vsel %vm2398, %v2318, %v2397
    %vm2400 = vcmp.eq.f32.partialorder %v2318, 0.0
    %v2401 = vand.u32 %v2318, 2147483648
    %v2402 = vsel %vm2400, %v2401, %v2399
    %v2403 = vrsqrt.pop %v2319
    %v2404 = vmul.f32 %v2319, %v2403
    %vm2405 = vcmp.eq.f32.partialorder %v2319, inf
    %v2406 = vsel %vm2405, %v2319, %v2404
    %vm2407 = vcmp.eq.f32.partialorder %v2319, 0.0
    %v2408 = vand.u32 %v2319, 2147483648
    %v2409 = vsel %vm2407, %v2408, %v2406
    %v2410 = vrsqrt.pop %v2320
    %v2411 = vmul.f32 %v2320, %v2410
    %vm2412 = vcmp.eq.f32.partialorder %v2320, inf
    %v2413 = vsel %vm2412, %v2320, %v2411
    %vm2414 = vcmp.eq.f32.partialorder %v2320, 0.0
    %v2415 = vand.u32 %v2320, 2147483648
    %v2416 = vsel %vm2414, %v2415, %v2413
    %v2417 = vrsqrt.pop %v2321
    %v2418 = vmul.f32 %v2321, %v2417
    %vm2419 = vcmp.eq.f32.partialorder %v2321, inf
    %v2420 = vsel %vm2419, %v2321, %v2418
    %vm2421 = vcmp.eq.f32.partialorder %v2321, 0.0
    %v2422 = vand.u32 %v2321, 2147483648
    %v2423 = vsel %vm2421, %v2422, %v2420
    %v2424 = vrsqrt.pop %v2322
    %v2425 = vmul.f32 %v2322, %v2424
    %vm2426 = vcmp.eq.f32.partialorder %v2322, inf
    %v2427 = vsel %vm2426, %v2322, %v2425
    %vm2428 = vcmp.eq.f32.partialorder %v2322, 0.0
    %v2429 = vand.u32 %v2322, 2147483648
    %v2430 = vsel %vm2428, %v2429, %v2427
    %v2431 = vrsqrt.pop %v2323
    %v2432 = vmul.f32 %v2323, %v2431
    %vm2433 = vcmp.eq.f32.partialorder %v2323, inf
    %v2434 = vsel %vm2433, %v2323, %v2432
    %vm2435 = vcmp.eq.f32.partialorder %v2323, 0.0
    %v2436 = vand.u32 %v2323, 2147483648
    %v2437 = vsel %vm2435, %v2436, %v2434
    %v2438 = vrsqrt.pop %v2324
    %v2439 = vmul.f32 %v2324, %v2438
    %vm2440 = vcmp.eq.f32.partialorder %v2324, inf
    %v2441 = vsel %vm2440, %v2324, %v2439
    %vm2442 = vcmp.eq.f32.partialorder %v2324, 0.0
    %v2443 = vand.u32 %v2324, 2147483648
    %v2444 = vsel %vm2442, %v2443, %v2441
    %v2445 = vrsqrt.pop %v2325
    %v2446 = vmul.f32 %v2325, %v2445
    %vm2447 = vcmp.eq.f32.partialorder %v2325, inf
    %v2448 = vsel %vm2447, %v2325, %v2446
    %vm2449 = vcmp.eq.f32.partialorder %v2325, 0.0
    %v2450 = vand.u32 %v2325, 2147483648
    %v2451 = vsel %vm2449, %v2450, %v2448
    %v2452 = vrsqrt.pop %v2326
    %v2453 = vmul.f32 %v2326, %v2452
    %vm2454 = vcmp.eq.f32.partialorder %v2326, inf
    %v2455 = vsel %vm2454, %v2326, %v2453
    %vm2456 = vcmp.eq.f32.partialorder %v2326, 0.0
    %v2457 = vand.u32 %v2326, 2147483648
    %v2458 = vsel %vm2456, %v2457, %v2455
    %v2459 = vadd.f32 %v2353, 1e-06
    %v2460 = vadd.f32 %v2360, 1e-06
    %v2461 = vadd.f32 %v2367, 1e-06
    %v2462 = vadd.f32 %v2374, 1e-06
    %v2463 = vadd.f32 %v2381, 1e-06
    %v2464 = vadd.f32 %v2388, 1e-06
    %v2465 = vadd.f32 %v2395, 1e-06
    %v2466 = vadd.f32 %v2402, 1e-06
    %v2467 = vadd.f32 %v2409, 1e-06
    %v2468 = vadd.f32 %v2416, 1e-06
    %v2469 = vadd.f32 %v2423, 1e-06
    %v2470 = vadd.f32 %v2430, 1e-06
    %v2471 = vadd.f32 %v2437, 1e-06
    %v2472 = vadd.f32 %v2444, 1e-06
    %v2473 = vadd.f32 %v2451, 1e-06
    %v2474 = vadd.f32 %v2458, 1e-06
    %v2475 = vrcp.pop %v2459
    %v2476 = vmul.f32 %v2331, %v2475
    %v2477 = vrcp.pop %v2460
    %v2478 = vmul.f32 %v2332, %v2477
    %v2479 = vrcp.pop %v2461
    %v2480 = vmul.f32 %v2333, %v2479
    %v2481 = vrcp.pop %v2462
    %v2482 = vmul.f32 %v2334, %v2481
    %v2483 = vrcp.pop %v2463
    %v2484 = vmul.f32 %v2335, %v2483
    %v2485 = vrcp.pop %v2464
    %v2486 = vmul.f32 %v2336, %v2485
    %v2487 = vrcp.pop %v2465
    %v2488 = vmul.f32 %v2337, %v2487
    %v2489 = vrcp.pop %v2466
    %v2490 = vmul.f32 %v2338, %v2489
    %v2491 = vrcp.pop %v2467
    %v2492 = vmul.f32 %v2339, %v2491
    %v2493 = vrcp.pop %v2468
    %v2494 = vmul.f32 %v2340, %v2493
    %v2495 = vrcp.pop %v2469
    %v2496 = vmul.f32 %v2341, %v2495
    %v2497 = vrcp.pop %v2470
    %v2498 = vmul.f32 %v2342, %v2497
    %v2499 = vrcp.pop %v2471
    %v2500 = vmul.f32 %v2343, %v2499
    %v2501 = vrcp.pop %v2472
    %v2502 = vmul.f32 %v2344, %v2501
    %v2503 = vrcp.pop %v2473
    %v2504 = vmul.f32 %v2345, %v2503
    %v2505 = vrcp.pop %v2474
    %v2506 = vmul.f32 %v2346, %v2505
    %v2507 = vlaneseq
    %v2508 = vshrl.u32 %v2507, 7
    %v2509 = vsub.s32 0, %v2508
    %v2510 = vrot.slane %v98, %v2509
    %v2511 = vadd.f32 %v2476, %v2510
    %v2512 = vadd.f32 %v2478, %v2510
    %v2513 = vadd.f32 %v2480, %v2510
    %v2514 = vadd.f32 %v2482, %v2510
    %v2515 = vadd.f32 %v2484, %v2510
    %v2516 = vadd.f32 %v2486, %v2510
    %v2517 = vadd.f32 %v2488, %v2510
    %v2518 = vadd.f32 %v2490, %v2510
    %v2519 = vadd.f32 %v2492, %v2510
    %v2520 = vadd.f32 %v2494, %v2510
    %v2521 = vadd.f32 %v2496, %v2510
    %v2522 = vadd.f32 %v2498, %v2510
    %v2523 = vadd.f32 %v2500, %v2510
    %v2524 = vadd.f32 %v2502, %v2510
    %v2525 = vadd.f32 %v2504, %v2510
    %v2526 = vadd.f32 %v2506, %v2510
    %2527 = vst.msk [vmem:[%s9] sm:$0xff] %vm2165, %v2511
    %2528 = vst.msk [vmem:[%s9 + $0x8] sm:$0xff] %vm2165, %v2512
    %2529 = vst.msk [vmem:[%s9 + $0x10] sm:$0xff] %vm2165, %v2513
    %2530 = vst.msk [vmem:[%s9 + $0x18] sm:$0xff] %vm2165, %v2514
    %2531 = vst.msk [vmem:[%s9 + $0x20] sm:$0xff] %vm2165, %v2515
    %2532 = vst.msk [vmem:[%s9 + $0x28] sm:$0xff] %vm2165, %v2516
    %2533 = vst.msk [vmem:[%s9 + $0x30] sm:$0xff] %vm2165, %v2517
    %2534 = vst.msk [vmem:[%s9 + $0x38] sm:$0xff] %vm2165, %v2518
    %2535 = vst.msk [vmem:[%s9 + $0x40] sm:$0xff] %vm2165, %v2519
    %2536 = vst.msk [vmem:[%s9 + $0x48] sm:$0xff] %vm2165, %v2520
    %2537 = vst.msk [vmem:[%s9 + $0x50] sm:$0xff] %vm2165, %v2521
    %2538 = vst.msk [vmem:[%s9 + $0x58] sm:$0xff] %vm2165, %v2522
    %2539 = vst.msk [vmem:[%s9 + $0x60] sm:$0xff] %vm2165, %v2523
    %2540 = vst.msk [vmem:[%s9 + $0x68] sm:$0xff] %vm2165, %v2524
    %2541 = vst.msk [vmem:[%s9 + $0x70] sm:$0xff] %vm2165, %v2525
    %2542 = vst.msk [vmem:[%s9 + $0x78] sm:$0xff] %vm2165, %v2526
    // Predicated region
    $region50: #{tpu_custom_call.1} parent=1 // pred_check
      _
    $region51: #{tpu_custom_call.1} parent=1 // pred_check_branch
      %2544 = sbr.rel (0) target = $region53
    $region52: #{tpu_custom_call.1} parent=1 // pred_region
      _
    $region53: #{tpu_custom_call.1} parent=1 // pred_fallthru
      _
    // Predicated region
    $region54: #{tpu_custom_call.1} parent=1 // pred_check
      _
    $region55: #{tpu_custom_call.1} parent=1 // pred_check_branch
      %2546 = sbr.rel (0) target = $region57
    $region56: #{tpu_custom_call.1} parent=1 // pred_region
      _
    $region57: #{tpu_custom_call.1} parent=1 // pred_fallthru
      _
    %2547 = vsyncpa [#allocation3], 1
    %2548 = vsyncpa [#allocation5], 1

</llo_original>
